<compile_context>
chip_gen: v6e
topology: v6e:2x2x1
jax: 0.10.0
libtpu: 0.0.40
codegen_flags: <defaults>
</compile_context>

<pallas_src>
import functools

import jax
import jax.numpy as jnp
from jax.experimental import pallas as pl
from jax.experimental.pallas import tpu as pltpu

INPUT_DIM = 6
EMBED_DIM = 256
NUM_BLOCKS = 4
NUM_HEADS = 16
FFN_DIM = 1024
NUM_CLASSES = 30
HEAD_DIM = EMBED_DIM // NUM_HEADS
LN_EPS = 1e-5


# ------------------------------ fused kernel --------------------------------

def _soh_layer_kernel(
    x_ref, hmask_ref, bias_ref,
    emb_w_ref, emb_b_ref,
    in_w_ref, in_b_ref, out_w_ref, out_b_ref,
    ff1_w_ref, ff1_b_ref, ff2_w_ref, ff2_b_ref,
    ln1_g_ref, ln1_b_ref, ln2_g_ref, ln2_b_ref,
    hln_g_ref, hln_b_ref, h1_w_ref, h1_b_ref, h2_w_ref, h2_b_ref,
    o_ref,
    h_scr,
    *, batch, seq,
):
    li = pl.program_id(0)                       # encoder layer index (grid axis)
    T = batch * seq
    D = EMBED_DIM
    f32 = jnp.float32
    bf16 = jnp.bfloat16
    scale = 1.0 / float(HEAD_DIM) ** 0.5

    def layer_norm(a, g, b):
        mu = jnp.mean(a, axis=-1, keepdims=True)
        var = jnp.mean(jnp.square(a - mu), axis=-1, keepdims=True)
        return (a - mu) * jax.lax.rsqrt(var + LN_EPS) * g + b

    # ---- step 0: embedding Linear(6 -> 256) into the persistent h scratch ----
    @pl.when(li == 0)
    def _():
        h_scr[...] = (jnp.dot(x_ref[...], emb_w_ref[...],
                              preferred_element_type=f32) + emb_b_ref[...])

    h = h_scr[...]                                              # (T, D) f32

    # ---- one post-norm encoder layer (this step's streamed bf16 weights) ----
    qkv = (jnp.dot(h.astype(bf16), in_w_ref[0], preferred_element_type=f32)
           + in_b_ref[0])                                       # (T, 3D) f32
    q = (qkv[:, 0:D] * scale).astype(bf16)                      # scale folded once
    k = qkv[:, D:2 * D].astype(bf16)
    v = qkv[:, 2 * D:3 * D].astype(bf16)

    # Block-diagonal (all heads at once, lane-dense) attention.
    # hmask[r, c] = 1 iff score-row r's head (r // T) == embed-col c's head (c // HEAD_DIM).
    hm = hmask_ref[...]                                         # (H*T, D) bf16 0/1
    k_bd = jnp.concatenate([k] * NUM_HEADS, axis=0) * hm        # (H*T, D)
    v_bd = jnp.concatenate([v] * NUM_HEADS, axis=0) * hm        # (H*T, D)

    # scores for all heads: s[i, h*T + j] = q_h[i] . k_h[j]     -> (T, H*T)
    s = jax.lax.dot_general(q, k_bd, (((1,), (1,)), ((), ())),
                            preferred_element_type=f32)
    s = s + bias_ref[...]                        # -1e30 on cross-sequence positions
    m = jnp.max(s, axis=-1, keepdims=True)       # row max: valid stabilizer for every head
    p = jnp.exp(s - m).astype(bf16)              # (T, H*T) unnormalized probs

    attn_un = jnp.dot(p, v_bd, preferred_element_type=f32)      # (T, D) unnormalized
    denom = jnp.dot(p, hm, preferred_element_type=f32)          # per-head denominators,
    attn = attn_un * pl.reciprocal(denom, approx=True)          # broadcast to head lanes

    attn = (jnp.dot(attn.astype(bf16), out_w_ref[0], preferred_element_type=f32)
            + out_b_ref[0])
    h = layer_norm(h + attn, ln1_g_ref[0], ln1_b_ref[0])

    ff = jnp.maximum(jnp.dot(h.astype(bf16), ff1_w_ref[0],
                             preferred_element_type=f32) + ff1_b_ref[0], 0.0)
    ff = (jnp.dot(ff.astype(bf16), ff2_w_ref[0], preferred_element_type=f32)
          + ff2_b_ref[0])
    h = layer_norm(h + ff, ln2_g_ref[0], ln2_b_ref[0])
    h_scr[...] = h

    # ---- last step: classification head on the last token of each sequence ----
    @pl.when(li == NUM_BLOCKS - 1)
    def _():
        tok = jax.lax.broadcasted_iota(jnp.int32, (batch, T), 1)
        bid = jax.lax.broadcasted_iota(jnp.int32, (batch, T), 0)
        sel = (tok == (bid + 1) * seq - 1).astype(f32)           # (B, T) one-hot rows
        last = jnp.dot(sel, h, preferred_element_type=f32)       # (B, D)
        y = layer_norm(last, hln_g_ref[...], hln_b_ref[...])
        y = jnp.maximum(jnp.dot(y, h1_w_ref[...], preferred_element_type=f32)
                        + h1_b_ref[...], 0.0)
        y = jnp.dot(y, h2_w_ref[...], preferred_element_type=f32) + h2_b_ref[...]
        o_ref[...] = y.astype(o_ref.dtype)


# ------------------------------ params / glue --------------------------------

def init_params(key):
    def dense(k, fan_in, fan_out, dtype=jnp.float32):
        kw, kb = jax.random.split(k)
        w = (jax.random.normal(kw, (fan_in, fan_out), jnp.float32) * 0.02).astype(dtype)
        b = (jax.random.normal(kb, (fan_out,), jnp.float32) * 0.02).reshape(1, fan_out)
        return w, b

    keys = jax.random.split(key, 2 + NUM_BLOCKS)
    params = {}
    params["emb_w"], params["emb_b"] = dense(keys[0], INPUT_DIM, EMBED_DIM)

    stacks = {n: [] for n in ("in_w", "in_b", "out_w", "out_b",
                              "ff1_w", "ff1_b", "ff2_w", "ff2_b")}
    for li in range(NUM_BLOCKS):
        lk = jax.random.split(keys[1 + li], 4)
        for name, (k_, fi, fo) in (
            ("in",  (lk[0], EMBED_DIM, 3 * EMBED_DIM)),
            ("out", (lk[1], EMBED_DIM, EMBED_DIM)),
            ("ff1", (lk[2], EMBED_DIM, FFN_DIM)),
            ("ff2", (lk[3], FFN_DIM, EMBED_DIM)),
        ):
            # Big, bandwidth-bound weights -> bf16 (streamed per layer); biases f32.
            w, b = dense(k_, fi, fo, dtype=jnp.bfloat16)
            stacks[name + "_w"].append(w)
            stacks[name + "_b"].append(b)
    for n, lst in stacks.items():
        params[n] = jnp.stack(lst)       # weights: (L, in, out); biases: (L, 1, out)

    params["ln1_g"] = jnp.ones((NUM_BLOCKS, 1, EMBED_DIM), jnp.float32)
    params["ln1_b"] = jnp.zeros((NUM_BLOCKS, 1, EMBED_DIM), jnp.float32)
    params["ln2_g"] = jnp.ones((NUM_BLOCKS, 1, EMBED_DIM), jnp.float32)
    params["ln2_b"] = jnp.zeros((NUM_BLOCKS, 1, EMBED_DIM), jnp.float32)

    hk = jax.random.split(keys[1 + NUM_BLOCKS], 2)
    params["hln_g"] = jnp.ones((1, EMBED_DIM), jnp.float32)
    params["hln_b"] = jnp.zeros((1, EMBED_DIM), jnp.float32)
    params["h1_w"], params["h1_b"] = dense(hk[0], EMBED_DIM, EMBED_DIM // 2)
    params["h2_w"], params["h2_b"] = dense(hk[1], EMBED_DIM // 2, NUM_CLASSES)
    return params


def soh_transformer_forward(params, x):
    """x: (B, S, INPUT_DIM) float32 -> (B, NUM_CLASSES). One pallas_call."""
    B, S, _ = x.shape
    T = B * S
    D = EMBED_DIM
    SW = NUM_HEADS * T                      # lane-dense score width (all heads)

    x2d = x.reshape(T, INPUT_DIM)

    # Head block-diagonal 0/1 mask in (score-row, embed-col) layout.
    r_head = (jnp.arange(SW, dtype=jnp.int32) // T)[:, None]
    c_head = (jnp.arange(D, dtype=jnp.int32) // HEAD_DIM)[None, :]
    head_mask = (r_head == c_head).astype(jnp.bfloat16)          # (SW, D)

    # Additive cross-sequence mask in the lane-dense score layout (T, SW).
    q_seq = (jnp.arange(T, dtype=jnp.int32) // S)[:, None]
    col = jnp.arange(SW, dtype=jnp.int32)
    k_tok = col - (col // T) * T                                  # key token within head block
    k_seq = (k_tok // S)[None, :]
    attn_bias = jnp.where(q_seq == k_seq, 0.0, -1e30).astype(jnp.float32)  # (T, SW)

    def const_spec(shape):
        return pl.BlockSpec(shape, lambda l, _n=len(shape): (0,) * _n)

    def layer_spec(shape):        # per-layer streamed weight: leading layer dim
        return pl.BlockSpec((1,) + shape,
                            lambda l, _n=len(shape): (l,) + (0,) * _n)

    grid_spec = pltpu.PrefetchScalarGridSpec(
        num_scalar_prefetch=0,
        grid=(NUM_BLOCKS,),
        in_specs=[
            const_spec((T, INPUT_DIM)),         # x2d
            const_spec((SW, D)),                # head_mask
            const_spec((T, SW)),                # attn_bias
            const_spec((INPUT_DIM, D)),         # emb_w
            const_spec((1, D)),                 # emb_b
            layer_spec((D, 3 * D)),             # in_w   (streamed per layer)
            layer_spec((1, 3 * D)),             # in_b
            layer_spec((D, D)),                 # out_w
            layer_spec((1, D)),                 # out_b
            layer_spec((D, FFN_DIM)),           # ff1_w
            layer_spec((1, FFN_DIM)),           # ff1_b
            layer_spec((FFN_DIM, D)),           # ff2_w
            layer_spec((1, D)),                 # ff2_b
            layer_spec((1, D)),                 # ln1_g
            layer_spec((1, D)),                 # ln1_b
            layer_spec((1, D)),                 # ln2_g
            layer_spec((1, D)),                 # ln2_b
            const_spec((1, D)),                 # hln_g
            const_spec((1, D)),                 # hln_b
            const_spec((D, D // 2)),            # h1_w
            const_spec((1, D // 2)),            # h1_b
            const_spec((D // 2, NUM_CLASSES)),  # h2_w
            const_spec((1, NUM_CLASSES)),       # h2_b
        ],
        out_specs=pl.BlockSpec((B, NUM_CLASSES), lambda l: (0, 0)),
        scratch_shapes=[pltpu.VMEM((T, D), jnp.float32)],   # h carried across layers
    )

    # Note: on v7x one could add a leading "parallel" grid axis of size B to use
    # both TensorCores; kept single-core here (correct on all generations).
    return pl.pallas_call(
        functools.partial(_soh_layer_kernel, batch=B, seq=S),
        out_shape=jax.ShapeDtypeStruct((B, NUM_CLASSES), jnp.float32),
        grid_spec=grid_spec,
        compiler_params=pltpu.CompilerParams(
            dimension_semantics=("arbitrary",)),
    )(x2d, head_mask, attn_bias,
      params["emb_w"], params["emb_b"],
      params["in_w"], params["in_b"], params["out_w"], params["out_b"],
      params["ff1_w"], params["ff1_b"], params["ff2_w"], params["ff2_b"],
      params["ln1_g"], params["ln1_b"], params["ln2_g"], params["ln2_b"],
      params["hln_g"], params["hln_b"],
      params["h1_w"], params["h1_b"], params["h2_w"], params["h2_b"])


if __name__ == "__main__":
    key = jax.random.PRNGKey(0)
    pkey, xkey = jax.random.split(key)
    params = init_params(pkey)

    B, S = 2, 8
    x = jax.random.normal(xkey, (B, S, INPUT_DIM), jnp.float32)

    out = jax.jit(soh_transformer_forward)(params, x)
    out = jax.block_until_ready(out)
    assert out.shape == (B, NUM_CLASSES), out.shape
    assert bool(jnp.all(jnp.isfinite(out)))
    print("KERNEL_OK")
</pallas_src>

<mosaic_0001>
module attributes {stable_mosaic.version = 11 : i64} {
  func.func @_soh_layer_kernel(%arg0: i32, %arg1: memref<16x6xf32, #tpu.memory_space<vmem>>, %arg2: memref<256x256xbf16, #tpu.memory_space<vmem>>, %arg3: memref<16x256xf32, #tpu.memory_space<vmem>>, %arg4: memref<6x256xf32, #tpu.memory_space<vmem>>, %arg5: memref<1x256xf32, #tpu.memory_space<vmem>>, %arg6: memref<1x256x768xbf16, #tpu.memory_space<vmem>>, %arg7: memref<1x1x768xf32, #tpu.memory_space<vmem>>, %arg8: memref<1x256x256xbf16, #tpu.memory_space<vmem>>, %arg9: memref<1x1x256xf32, #tpu.memory_space<vmem>>, %arg10: memref<1x256x1024xbf16, #tpu.memory_space<vmem>>, %arg11: memref<1x1x1024xf32, #tpu.memory_space<vmem>>, %arg12: memref<1x1024x256xbf16, #tpu.memory_space<vmem>>, %arg13: memref<1x1x256xf32, #tpu.memory_space<vmem>>, %arg14: memref<1x1x256xf32, #tpu.memory_space<vmem>>, %arg15: memref<1x1x256xf32, #tpu.memory_space<vmem>>, %arg16: memref<1x1x256xf32, #tpu.memory_space<vmem>>, %arg17: memref<1x1x256xf32, #tpu.memory_space<vmem>>, %arg18: memref<1x256xf32, #tpu.memory_space<vmem>>, %arg19: memref<1x256xf32, #tpu.memory_space<vmem>>, %arg20: memref<256x128xf32, #tpu.memory_space<vmem>>, %arg21: memref<1x128xf32, #tpu.memory_space<vmem>>, %arg22: memref<128x30xf32, #tpu.memory_space<vmem>>, %arg23: memref<1x30xf32, #tpu.memory_space<vmem>>, %arg24: memref<2x30xf32, #tpu.memory_space<vmem>>, %arg25: memref<16x256xf32, #tpu.memory_space<vmem>>) attributes {dimension_semantics = [#tpu.dimension_semantics<arbitrary>], iteration_bounds = array<i64: 4>, scalar_prefetch = 0 : i64, scratch_operands = 1 : i64, tpu.core_type = #tpu.core_type<tc>, window_params = [{pipeline_mode = #tpu.pipeline_mode<synchronous>, transform_indices = @transform_0, window_bounds = array<i64: 16, 6>}, {pipeline_mode = #tpu.pipeline_mode<synchronous>, transform_indices = @transform_1, window_bounds = array<i64: 256, 256>}, {pipeline_mode = #tpu.pipeline_mode<synchronous>, transform_indices = @transform_2, window_bounds = array<i64: 16, 256>}, {pipeline_mode = #tpu.pipeline_mode<synchronous>, transform_indices = @transform_3, window_bounds = array<i64: 6, 256>}, {pipeline_mode = #tpu.pipeline_mode<synchronous>, transform_indices = @transform_4, window_bounds = array<i64: 1, 256>}, {transform_indices = @transform_5, window_bounds = array<i64: 1, 256, 768>}, {transform_indices = @transform_6, window_bounds = array<i64: 1, 1, 768>}, {transform_indices = @transform_7, window_bounds = array<i64: 1, 256, 256>}, {transform_indices = @transform_8, window_bounds = array<i64: 1, 1, 256>}, {transform_indices = @transform_9, window_bounds = array<i64: 1, 256, 1024>}, {transform_indices = @transform_10, window_bounds = array<i64: 1, 1, 1024>}, {transform_indices = @transform_11, window_bounds = array<i64: 1, 1024, 256>}, {transform_indices = @transform_12, window_bounds = array<i64: 1, 1, 256>}, {transform_indices = @transform_13, window_bounds = array<i64: 1, 1, 256>}, {transform_indices = @transform_14, window_bounds = array<i64: 1, 1, 256>}, {transform_indices = @transform_15, window_bounds = array<i64: 1, 1, 256>}, {transform_indices = @transform_16, window_bounds = array<i64: 1, 1, 256>}, {pipeline_mode = #tpu.pipeline_mode<synchronous>, transform_indices = @transform_17, window_bounds = array<i64: 1, 256>}, {pipeline_mode = #tpu.pipeline_mode<synchronous>, transform_indices = @transform_18, window_bounds = array<i64: 1, 256>}, {pipeline_mode = #tpu.pipeline_mode<synchronous>, transform_indices = @transform_19, window_bounds = array<i64: 256, 128>}, {pipeline_mode = #tpu.pipeline_mode<synchronous>, transform_indices = @transform_20, window_bounds = array<i64: 1, 128>}, {pipeline_mode = #tpu.pipeline_mode<synchronous>, transform_indices = @transform_21, window_bounds = array<i64: 128, 30>}, {pipeline_mode = #tpu.pipeline_mode<synchronous>, transform_indices = @transform_22, window_bounds = array<i64: 1, 30>}, {pipeline_mode = #tpu.pipeline_mode<synchronous>, transform_indices = @transform_23, window_bounds = array<i64: 2, 30>}]} {
    %c0_i32 = arith.constant 0 : i32
    %0 = arith.cmpi eq, %arg0, %c0_i32 : i32
    %1 = arith.extui %0 : i1 to i32
    %c0_i32_0 = arith.constant 0 : i32
    %2 = arith.cmpi ne, %1, %c0_i32_0 : i32
    scf.if %2 {
      %c0_64 = arith.constant 0 : index
      %c0_65 = arith.constant 0 : index
      %122 = vector.load %arg1[%c0_64, %c0_65] : memref<16x6xf32, #tpu.memory_space<vmem>>, vector<16x6xf32>
      %c0_66 = arith.constant 0 : index
      %c0_67 = arith.constant 0 : index
      %123 = vector.load %arg4[%c0_66, %c0_67] : memref<6x256xf32, #tpu.memory_space<vmem>>, vector<6x256xf32>
      %cst_68 = arith.constant dense<0.000000e+00> : vector<16x256xf32>
      %124 = tpu.matmul %122, %123, %cst_68 {dimension_numbers = #tpu.dot_dimension_numbers<[1], [0], [0], [1], [0, 0, 1, 1], [], []>} : vector<16x6xf32>, vector<6x256xf32>, vector<16x256xf32> -> vector<16x256xf32>
      %c0_69 = arith.constant 0 : index
      %c0_70 = arith.constant 0 : index
      %125 = vector.load %arg5[%c0_69, %c0_70] : memref<1x256xf32, #tpu.memory_space<vmem>>, vector<1x256xf32>
      %126 = vector.broadcast %125 : vector<1x256xf32> to vector<16x256xf32>
      %127 = arith.addf %124, %126 : vector<16x256xf32>
      %c0_71 = arith.constant 0 : index
      %c0_72 = arith.constant 0 : index
      %128 = vector.load %arg25[%c0_71, %c0_72] : memref<16x256xf32, #tpu.memory_space<vmem>>, vector<16x256xf32>
      tpu.vector_store %arg25[%c0_71, %c0_72], %127 {strides = array<i32>} : memref<16x256xf32, #tpu.memory_space<vmem>>, vector<16x256xf32>,
    } else {
    }
    %c0 = arith.constant 0 : index
    %c0_1 = arith.constant 0 : index
    %3 = vector.load %arg25[%c0, %c0_1] : memref<16x256xf32, #tpu.memory_space<vmem>>, vector<16x256xf32>
    %4 = arith.truncf %3 : vector<16x256xf32> to vector<16x256xbf16>
    %c0_2 = arith.constant 0 : index
    %c0_3 = arith.constant 0 : index
    %c0_4 = arith.constant 0 : index
    %5 = vector.load %arg6[%c0_2, %c0_3, %c0_4] : memref<1x256x768xbf16, #tpu.memory_space<vmem>>, vector<1x256x768xbf16>
    %6 = vector.shape_cast %5 : vector<1x256x768xbf16> to vector<256x768xbf16>
    %cst = arith.constant dense<0.000000e+00> : vector<16x768xf32>
    %7 = tpu.matmul %4, %6, %cst {dimension_numbers = #tpu.dot_dimension_numbers<[1], [0], [0], [1], [0, 0, 1, 1], [], []>} : vector<16x256xbf16>, vector<256x768xbf16>, vector<16x768xf32> -> vector<16x768xf32>
    %c0_5 = arith.constant 0 : index
    %c0_6 = arith.constant 0 : index
    %c0_7 = arith.constant 0 : index
    %8 = vector.load %arg7[%c0_5, %c0_6, %c0_7] : memref<1x1x768xf32, #tpu.memory_space<vmem>>, vector<1x1x768xf32>
    %9 = vector.shape_cast %8 : vector<1x1x768xf32> to vector<1x768xf32>
    %10 = vector.broadcast %9 : vector<1x768xf32> to vector<16x768xf32>
    %11 = arith.addf %7, %10 : vector<16x768xf32>
    %12 = vector.extract_strided_slice %11 {offsets = [0, 0], sizes = [16, 256], strides = [1, 1]} : vector<16x768xf32> to vector<16x256xf32>
    %cst_8 = arith.constant 2.500000e-01 : f32
    %13 = vector.broadcast %cst_8 : f32 to vector<16x256xf32>
    %14 = arith.mulf %12, %13 : vector<16x256xf32>
    %15 = arith.truncf %14 : vector<16x256xf32> to vector<16x256xbf16>
    %16 = vector.extract_strided_slice %11 {offsets = [0, 256], sizes = [16, 256], strides = [1, 1]} : vector<16x768xf32> to vector<16x256xf32>
    %17 = arith.truncf %16 : vector<16x256xf32> to vector<16x256xbf16>
    %18 = vector.extract_strided_slice %11 {offsets = [0, 512], sizes = [16, 256], strides = [1, 1]} : vector<16x768xf32> to vector<16x256xf32>
    %19 = arith.truncf %18 : vector<16x256xf32> to vector<16x256xbf16>
    %c0_9 = arith.constant 0 : index
    %c0_10 = arith.constant 0 : index
    %20 = vector.load %arg2[%c0_9, %c0_10] : memref<256x256xbf16, #tpu.memory_space<vmem>>, vector<256x256xbf16>
    %21 = tpu.concatenate %17, %17, %17, %17, %17, %17, %17, %17, %17, %17, %17, %17, %17, %17, %17, %17 in 0 : vector<16x256xbf16>, vector<16x256xbf16>, vector<16x256xbf16>, vector<16x256xbf16>, vector<16x256xbf16>, vector<16x256xbf16>, vector<16x256xbf16>, vector<16x256xbf16>, vector<16x256xbf16>, vector<16x256xbf16>, vector<16x256xbf16>, vector<16x256xbf16>, vector<16x256xbf16>, vector<16x256xbf16>, vector<16x256xbf16>, vector<16x256xbf16> -> vector<256x256xbf16>
    %22 = arith.mulf %21, %20 : vector<256x256xbf16>
    %23 = tpu.concatenate %19, %19, %19, %19, %19, %19, %19, %19, %19, %19, %19, %19, %19, %19, %19, %19 in 0 : vector<16x256xbf16>, vector<16x256xbf16>, vector<16x256xbf16>, vector<16x256xbf16>, vector<16x256xbf16>, vector<16x256xbf16>, vector<16x256xbf16>, vector<16x256xbf16>, vector<16x256xbf16>, vector<16x256xbf16>, vector<16x256xbf16>, vector<16x256xbf16>, vector<16x256xbf16>, vector<16x256xbf16>, vector<16x256xbf16>, vector<16x256xbf16> -> vector<256x256xbf16>
    %24 = arith.mulf %23, %20 : vector<256x256xbf16>
    %cst_11 = arith.constant dense<0.000000e+00> : vector<16x256xf32>
    %25 = tpu.matmul %15, %22, %cst_11 {dimension_numbers = #tpu.dot_dimension_numbers<[1], [1], [0], [0], [0, 0, 1, 0], [], []>} : vector<16x256xbf16>, vector<256x256xbf16>, vector<16x256xf32> -> vector<16x256xf32>
    %c0_12 = arith.constant 0 : index
    %c0_13 = arith.constant 0 : index
    %26 = vector.load %arg3[%c0_12, %c0_13] : memref<16x256xf32, #tpu.memory_space<vmem>>, vector<16x256xf32>
    %27 = arith.addf %25, %26 : vector<16x256xf32>
    %cst_14 = arith.constant dense<0xFF800000> : vector<16xf32>
    %28 = vector.multi_reduction <maximumf>, %27, %cst_14 [1] : vector<16x256xf32> to vector<16xf32>
    %29 = vector.shape_cast %28 : vector<16xf32> to vector<16x1xf32>
    %30 = vector.broadcast %29 : vector<16x1xf32> to vector<16x256xf32>
    %31 = arith.subf %27, %30 : vector<16x256xf32>
    %32 = math.exp %31 : vector<16x256xf32>
    %33 = arith.truncf %32 : vector<16x256xf32> to vector<16x256xbf16>
    %cst_15 = arith.constant dense<0.000000e+00> : vector<16x256xf32>
    %34 = tpu.matmul %33, %24, %cst_15 {dimension_numbers = #tpu.dot_dimension_numbers<[1], [0], [0], [1], [0, 0, 1, 1], [], []>} : vector<16x256xbf16>, vector<256x256xbf16>, vector<16x256xf32> -> vector<16x256xf32>
    %cst_16 = arith.constant dense<0.000000e+00> : vector<16x256xf32>
    %35 = tpu.matmul %33, %20, %cst_16 {dimension_numbers = #tpu.dot_dimension_numbers<[1], [0], [0], [1], [0, 0, 1, 1], [], []>} : vector<16x256xbf16>, vector<256x256xbf16>, vector<16x256xf32> -> vector<16x256xf32>
    %36 = tpu.reciprocal %35 {approx = true} : vector<16x256xf32> -> vector<16x256xf32>
    %37 = arith.mulf %34, %36 : vector<16x256xf32>
    %38 = arith.truncf %37 : vector<16x256xf32> to vector<16x256xbf16>
    %c0_17 = arith.constant 0 : index
    %c0_18 = arith.constant 0 : index
    %c0_19 = arith.constant 0 : index
    %39 = vector.load %arg8[%c0_17, %c0_18, %c0_19] : memref<1x256x256xbf16, #tpu.memory_space<vmem>>, vector<1x256x256xbf16>
    %40 = vector.shape_cast %39 : vector<1x256x256xbf16> to vector<256x256xbf16>
    %cst_20 = arith.constant dense<0.000000e+00> : vector<16x256xf32>
    %41 = tpu.matmul %38, %40, %cst_20 {dimension_numbers = #tpu.dot_dimension_numbers<[1], [0], [0], [1], [0, 0, 1, 1], [], []>} : vector<16x256xbf16>, vector<256x256xbf16>, vector<16x256xf32> -> vector<16x256xf32>
    %c0_21 = arith.constant 0 : index
    %c0_22 = arith.constant 0 : index
    %c0_23 = arith.constant 0 : index
    %42 = vector.load %arg9[%c0_21, %c0_22, %c0_23] : memref<1x1x256xf32, #tpu.memory_space<vmem>>, vector<1x1x256xf32>
    %43 = vector.shape_cast %42 : vector<1x1x256xf32> to vector<1x256xf32>
    %44 = vector.broadcast %43 : vector<1x256xf32> to vector<16x256xf32>
    %45 = arith.addf %41, %44 : vector<16x256xf32>
    %46 = arith.addf %3, %45 : vector<16x256xf32>
    %c0_24 = arith.constant 0 : index
    %c0_25 = arith.constant 0 : index
    %c0_26 = arith.constant 0 : index
    %47 = vector.load %arg14[%c0_24, %c0_25, %c0_26] : memref<1x1x256xf32, #tpu.memory_space<vmem>>, vector<1x1x256xf32>
    %48 = vector.shape_cast %47 : vector<1x1x256xf32> to vector<1x256xf32>
    %c0_27 = arith.constant 0 : index
    %c0_28 = arith.constant 0 : index
    %c0_29 = arith.constant 0 : index
    %49 = vector.load %arg15[%c0_27, %c0_28, %c0_29] : memref<1x1x256xf32, #tpu.memory_space<vmem>>, vector<1x1x256xf32>
    %50 = vector.shape_cast %49 : vector<1x1x256xf32> to vector<1x256xf32>
    %cst_30 = arith.constant dense<0.000000e+00> : vector<16xf32>
    %51 = vector.multi_reduction <add>, %46, %cst_30 [1] : vector<16x256xf32> to vector<16xf32>
    %52 = vector.shape_cast %51 : vector<16xf32> to vector<16x1xf32>
    %cst_31 = arith.constant 2.560000e+02 : f32
    %53 = vector.broadcast %cst_31 : f32 to vector<16x1xf32>
    %54 = arith.divf %52, %53 : vector<16x1xf32>
    %55 = vector.broadcast %54 : vector<16x1xf32> to vector<16x256xf32>
    %56 = arith.subf %46, %55 : vector<16x256xf32>
    %57 = arith.mulf %56, %56 : vector<16x256xf32>
    %cst_32 = arith.constant dense<0.000000e+00> : vector<16xf32>
    %58 = vector.multi_reduction <add>, %57, %cst_32 [1] : vector<16x256xf32> to vector<16xf32>
    %59 = vector.shape_cast %58 : vector<16xf32> to vector<16x1xf32>
    %cst_33 = arith.constant 2.560000e+02 : f32
    %60 = vector.broadcast %cst_33 : f32 to vector<16x1xf32>
    %61 = arith.divf %59, %60 : vector<16x1xf32>
    %62 = vector.broadcast %54 : vector<16x1xf32> to vector<16x256xf32>
    %63 = arith.subf %46, %62 : vector<16x256xf32>
    %cst_34 = arith.constant 9.99999974E-6 : f32
    %64 = vector.broadcast %cst_34 : f32 to vector<16x1xf32>
    %65 = arith.addf %61, %64 : vector<16x1xf32>
    %66 = math.rsqrt %65 : vector<16x1xf32>
    %67 = vector.broadcast %66 : vector<16x1xf32> to vector<16x256xf32>
    %68 = arith.mulf %63, %67 : vector<16x256xf32>
    %69 = vector.broadcast %48 : vector<1x256xf32> to vector<16x256xf32>
    %70 = arith.mulf %68, %69 : vector<16x256xf32>
    %71 = vector.broadcast %50 : vector<1x256xf32> to vector<16x256xf32>
    %72 = arith.addf %70, %71 : vector<16x256xf32>
    %73 = arith.truncf %72 : vector<16x256xf32> to vector<16x256xbf16>
    %c0_35 = arith.constant 0 : index
    %c0_36 = arith.constant 0 : index
    %c0_37 = arith.constant 0 : index
    %74 = vector.load %arg10[%c0_35, %c0_36, %c0_37] : memref<1x256x1024xbf16, #tpu.memory_space<vmem>>, vector<1x256x1024xbf16>
    %75 = vector.shape_cast %74 : vector<1x256x1024xbf16> to vector<256x1024xbf16>
    %cst_38 = arith.constant dense<0.000000e+00> : vector<16x1024xf32>
    %76 = tpu.matmul %73, %75, %cst_38 {dimension_numbers = #tpu.dot_dimension_numbers<[1], [0], [0], [1], [0, 0, 1, 1], [], []>} : vector<16x256xbf16>, vector<256x1024xbf16>, vector<16x1024xf32> -> vector<16x1024xf32>
    %c0_39 = arith.constant 0 : index
    %c0_40 = arith.constant 0 : index
    %c0_41 = arith.constant 0 : index
    %77 = vector.load %arg11[%c0_39, %c0_40, %c0_41] : memref<1x1x1024xf32, #tpu.memory_space<vmem>>, vector<1x1x1024xf32>
    %78 = vector.shape_cast %77 : vector<1x1x1024xf32> to vector<1x1024xf32>
    %79 = vector.broadcast %78 : vector<1x1024xf32> to vector<16x1024xf32>
    %80 = arith.addf %76, %79 : vector<16x1024xf32>
    %cst_42 = arith.constant 0.000000e+00 : f32
    %81 = vector.broadcast %cst_42 : f32 to vector<16x1024xf32>
    %82 = arith.maximumf %80, %81 : vector<16x1024xf32>
    %83 = arith.truncf %82 : vector<16x1024xf32> to vector<16x1024xbf16>
    %c0_43 = arith.constant 0 : index
    %c0_44 = arith.constant 0 : index
    %c0_45 = arith.constant 0 : index
    %84 = vector.load %arg12[%c0_43, %c0_44, %c0_45] : memref<1x1024x256xbf16, #tpu.memory_space<vmem>>, vector<1x1024x256xbf16>
    %85 = vector.shape_cast %84 : vector<1x1024x256xbf16> to vector<1024x256xbf16>
    %cst_46 = arith.constant dense<0.000000e+00> : vector<16x256xf32>
    %86 = tpu.matmul %83, %85, %cst_46 {dimension_numbers = #tpu.dot_dimension_numbers<[1], [0], [0], [1], [0, 0, 1, 1], [], []>} : vector<16x1024xbf16>, vector<1024x256xbf16>, vector<16x256xf32> -> vector<16x256xf32>
    %c0_47 = arith.constant 0 : index
    %c0_48 = arith.constant 0 : index
    %c0_49 = arith.constant 0 : index
    %87 = vector.load %arg13[%c0_47, %c0_48, %c0_49] : memref<1x1x256xf32, #tpu.memory_space<vmem>>, vector<1x1x256xf32>
    %88 = vector.shape_cast %87 : vector<1x1x256xf32> to vector<1x256xf32>
    %89 = vector.broadcast %88 : vector<1x256xf32> to vector<16x256xf32>
    %90 = arith.addf %86, %89 : vector<16x256xf32>
    %91 = arith.addf %72, %90 : vector<16x256xf32>
    %c0_50 = arith.constant 0 : index
    %c0_51 = arith.constant 0 : index
    %c0_52 = arith.constant 0 : index
    %92 = vector.load %arg16[%c0_50, %c0_51, %c0_52] : memref<1x1x256xf32, #tpu.memory_space<vmem>>, vector<1x1x256xf32>
    %93 = vector.shape_cast %92 : vector<1x1x256xf32> to vector<1x256xf32>
    %c0_53 = arith.constant 0 : index
    %c0_54 = arith.constant 0 : index
    %c0_55 = arith.constant 0 : index
    %94 = vector.load %arg17[%c0_53, %c0_54, %c0_55] : memref<1x1x256xf32, #tpu.memory_space<vmem>>, vector<1x1x256xf32>
    %95 = vector.shape_cast %94 : vector<1x1x256xf32> to vector<1x256xf32>
    %cst_56 = arith.constant dense<0.000000e+00> : vector<16xf32>
    %96 = vector.multi_reduction <add>, %91, %cst_56 [1] : vector<16x256xf32> to vector<16xf32>
    %97 = vector.shape_cast %96 : vector<16xf32> to vector<16x1xf32>
    %cst_57 = arith.constant 2.560000e+02 : f32
    %98 = vector.broadcast %cst_57 : f32 to vector<16x1xf32>
    %99 = arith.divf %97, %98 : vector<16x1xf32>
    %100 = vector.broadcast %99 : vector<16x1xf32> to vector<16x256xf32>
    %101 = arith.subf %91, %100 : vector<16x256xf32>
    %102 = arith.mulf %101, %101 : vector<16x256xf32>
    %cst_58 = arith.constant dense<0.000000e+00> : vector<16xf32>
    %103 = vector.multi_reduction <add>, %102, %cst_58 [1] : vector<16x256xf32> to vector<16xf32>
    %104 = vector.shape_cast %103 : vector<16xf32> to vector<16x1xf32>
    %cst_59 = arith.constant 2.560000e+02 : f32
    %105 = vector.broadcast %cst_59 : f32 to vector<16x1xf32>
    %106 = arith.divf %104, %105 : vector<16x1xf32>
    %107 = vector.broadcast %99 : vector<16x1xf32> to vector<16x256xf32>
    %108 = arith.subf %91, %107 : vector<16x256xf32>
    %cst_60 = arith.constant 9.99999974E-6 : f32
    %109 = vector.broadcast %cst_60 : f32 to vector<16x1xf32>
    %110 = arith.addf %106, %109 : vector<16x1xf32>
    %111 = math.rsqrt %110 : vector<16x1xf32>
    %112 = vector.broadcast %111 : vector<16x1xf32> to vector<16x256xf32>
    %113 = arith.mulf %108, %112 : vector<16x256xf32>
    %114 = vector.broadcast %93 : vector<1x256xf32> to vector<16x256xf32>
    %115 = arith.mulf %113, %114 : vector<16x256xf32>
    %116 = vector.broadcast %95 : vector<1x256xf32> to vector<16x256xf32>
    %117 = arith.addf %115, %116 : vector<16x256xf32>
    %c0_61 = arith.constant 0 : index
    %c0_62 = arith.constant 0 : index
    %118 = vector.load %arg25[%c0_61, %c0_62] : memref<16x256xf32, #tpu.memory_space<vmem>>, vector<16x256xf32>
    tpu.vector_store %arg25[%c0_61, %c0_62], %117 {strides = array<i32>} : memref<16x256xf32, #tpu.memory_space<vmem>>, vector<16x256xf32>,
    %c3_i32 = arith.constant 3 : i32
    %119 = arith.cmpi eq, %arg0, %c3_i32 : i32
    %120 = arith.extui %119 : i1 to i32
    %c0_i32_63 = arith.constant 0 : i32
    %121 = arith.cmpi ne, %120, %c0_i32_63 : i32
    scf.if %121 {
      %122 = tpu.iota {dimensions = array<i32: 1>} : vector<2x16xi32>
      %123 = tpu.iota {dimensions = array<i32: 0>} : vector<2x16xi32>
      %c1_i32 = arith.constant 1 : i32
      %124 = vector.broadcast %c1_i32 : i32 to vector<2x16xi32>
      %125 = arith.addi %123, %124 : vector<2x16xi32>
      %c8_i32 = arith.constant 8 : i32
      %126 = vector.broadcast %c8_i32 : i32 to vector<2x16xi32>
      %127 = arith.muli %125, %126 : vector<2x16xi32>
      %c1_i32_64 = arith.constant 1 : i32
      %128 = vector.broadcast %c1_i32_64 : i32 to vector<2x16xi32>
      %129 = arith.subi %127, %128 : vector<2x16xi32>
      %130 = arith.cmpi eq, %122, %129 : vector<2x16xi32>
      %131 = arith.extui %130 : vector<2x16xi1> to vector<2x16xi32>
      %132 = arith.sitofp %131 : vector<2x16xi32> to vector<2x16xf32>
      %cst_65 = arith.constant dense<0.000000e+00> : vector<2x256xf32>
      %133 = tpu.matmul %132, %117, %cst_65 {dimension_numbers = #tpu.dot_dimension_numbers<[1], [0], [0], [1], [0, 0, 1, 1], [], []>} : vector<2x16xf32>, vector<16x256xf32>, vector<2x256xf32> -> vector<2x256xf32>
      %c0_66 = arith.constant 0 : index
      %c0_67 = arith.constant 0 : index
      %134 = vector.load %arg18[%c0_66, %c0_67] : memref<1x256xf32, #tpu.memory_space<vmem>>, vector<1x256xf32>
      %c0_68 = arith.constant 0 : index
      %c0_69 = arith.constant 0 : index
      %135 = vector.load %arg19[%c0_68, %c0_69] : memref<1x256xf32, #tpu.memory_space<vmem>>, vector<1x256xf32>
      %cst_70 = arith.constant dense<0.000000e+00> : vector<2xf32>
      %136 = vector.multi_reduction <add>, %133, %cst_70 [1] : vector<2x256xf32> to vector<2xf32>
      %137 = vector.shape_cast %136 : vector<2xf32> to vector<2x1xf32>
      %cst_71 = arith.constant 2.560000e+02 : f32
      %138 = vector.broadcast %cst_71 : f32 to vector<2x1xf32>
      %139 = arith.divf %137, %138 : vector<2x1xf32>
      %140 = vector.broadcast %139 : vector<2x1xf32> to vector<2x256xf32>
      %141 = arith.subf %133, %140 : vector<2x256xf32>
      %142 = arith.mulf %141, %141 : vector<2x256xf32>
      %cst_72 = arith.constant dense<0.000000e+00> : vector<2xf32>
      %143 = vector.multi_reduction <add>, %142, %cst_72 [1] : vector<2x256xf32> to vector<2xf32>
      %144 = vector.shape_cast %143 : vector<2xf32> to vector<2x1xf32>
      %cst_73 = arith.constant 2.560000e+02 : f32
      %145 = vector.broadcast %cst_73 : f32 to vector<2x1xf32>
      %146 = arith.divf %144, %145 : vector<2x1xf32>
      %147 = vector.broadcast %139 : vector<2x1xf32> to vector<2x256xf32>
      %148 = arith.subf %133, %147 : vector<2x256xf32>
      %cst_74 = arith.constant 9.99999974E-6 : f32
      %149 = vector.broadcast %cst_74 : f32 to vector<2x1xf32>
      %150 = arith.addf %146, %149 : vector<2x1xf32>
      %151 = math.rsqrt %150 : vector<2x1xf32>
      %152 = vector.broadcast %151 : vector<2x1xf32> to vector<2x256xf32>
      %153 = arith.mulf %148, %152 : vector<2x256xf32>
      %154 = vector.broadcast %134 : vector<1x256xf32> to vector<2x256xf32>
      %155 = arith.mulf %153, %154 : vector<2x256xf32>
      %156 = vector.broadcast %135 : vector<1x256xf32> to vector<2x256xf32>
      %157 = arith.addf %155, %156 : vector<2x256xf32>
      %c0_75 = arith.constant 0 : index
      %c0_76 = arith.constant 0 : index
      %158 = vector.load %arg20[%c0_75, %c0_76] : memref<256x128xf32, #tpu.memory_space<vmem>>, vector<256x128xf32>
      %cst_77 = arith.constant dense<0.000000e+00> : vector<2x128xf32>
      %159 = tpu.matmul %157, %158, %cst_77 {dimension_numbers = #tpu.dot_dimension_numbers<[1], [0], [0], [1], [0, 0, 1, 1], [], []>} : vector<2x256xf32>, vector<256x128xf32>, vector<2x128xf32> -> vector<2x128xf32>
      %c0_78 = arith.constant 0 : index
      %c0_79 = arith.constant 0 : index
      %160 = vector.load %arg21[%c0_78, %c0_79] : memref<1x128xf32, #tpu.memory_space<vmem>>, vector<1x128xf32>
      %161 = vector.broadcast %160 : vector<1x128xf32> to vector<2x128xf32>
      %162 = arith.addf %159, %161 : vector<2x128xf32>
      %cst_80 = arith.constant 0.000000e+00 : f32
      %163 = vector.broadcast %cst_80 : f32 to vector<2x128xf32>
      %164 = arith.maximumf %162, %163 : vector<2x128xf32>
      %c0_81 = arith.constant 0 : index
      %c0_82 = arith.constant 0 : index
      %165 = vector.load %arg22[%c0_81, %c0_82] : memref<128x30xf32, #tpu.memory_space<vmem>>, vector<128x30xf32>
      %cst_83 = arith.constant dense<0.000000e+00> : vector<2x30xf32>
      %166 = tpu.matmul %164, %165, %cst_83 {dimension_numbers = #tpu.dot_dimension_numbers<[1], [0], [0], [1], [0, 0, 1, 1], [], []>} : vector<2x128xf32>, vector<128x30xf32>, vector<2x30xf32> -> vector<2x30xf32>
      %c0_84 = arith.constant 0 : index
      %c0_85 = arith.constant 0 : index
      %167 = vector.load %arg23[%c0_84, %c0_85] : memref<1x30xf32, #tpu.memory_space<vmem>>, vector<1x30xf32>
      %168 = vector.broadcast %167 : vector<1x30xf32> to vector<2x30xf32>
      %169 = arith.addf %166, %168 : vector<2x30xf32>
      %c0_86 = arith.constant 0 : index
      %c0_87 = arith.constant 0 : index
      %170 = vector.load %arg24[%c0_86, %c0_87] : memref<2x30xf32, #tpu.memory_space<vmem>>, vector<2x30xf32>
      tpu.vector_store %arg24[%c0_86, %c0_87], %169 {strides = array<i32>} : memref<2x30xf32, #tpu.memory_space<vmem>>, vector<2x30xf32>,
    } else {
    }
    return
  }
  func.func @transform_0(%arg0: i32) -> (i32, i32) {
    %c0_i32 = arith.constant 0 : i32
    %c0_i32_0 = arith.constant 0 : i32
    %c0_i32_1 = arith.constant 0 : i32
    return %c0_i32, %c0_i32_0 : i32, i32
  }
  func.func @transform_1(%arg0: i32) -> (i32, i32) {
    %c0_i32 = arith.constant 0 : i32
    %c0_i32_0 = arith.constant 0 : i32
    %c0_i32_1 = arith.constant 0 : i32
    return %c0_i32, %c0_i32_0 : i32, i32
  }
  func.func @transform_2(%arg0: i32) -> (i32, i32) {
    %c0_i32 = arith.constant 0 : i32
    %c0_i32_0 = arith.constant 0 : i32
    %c0_i32_1 = arith.constant 0 : i32
    return %c0_i32, %c0_i32_0 : i32, i32
  }
  func.func @transform_3(%arg0: i32) -> (i32, i32) {
    %c0_i32 = arith.constant 0 : i32
    %c0_i32_0 = arith.constant 0 : i32
    %c0_i32_1 = arith.constant 0 : i32
    return %c0_i32, %c0_i32_0 : i32, i32
  }
  func.func @transform_4(%arg0: i32) -> (i32, i32) {
    %c0_i32 = arith.constant 0 : i32
    %c0_i32_0 = arith.constant 0 : i32
    %c0_i32_1 = arith.constant 0 : i32
    return %c0_i32, %c0_i32_0 : i32, i32
  }
  func.func @transform_5(%arg0: i32) -> (i32, i32, i32) {
    %c0_i32 = arith.constant 0 : i32
    %c0_i32_0 = arith.constant 0 : i32
    %c0_i32_1 = arith.constant 0 : i32
    return %arg0, %c0_i32, %c0_i32_0 : i32, i32, i32
  }
  func.func @transform_6(%arg0: i32) -> (i32, i32, i32) {
    %c0_i32 = arith.constant 0 : i32
    %c0_i32_0 = arith.constant 0 : i32
    %c0_i32_1 = arith.constant 0 : i32
    return %arg0, %c0_i32, %c0_i32_0 : i32, i32, i32
  }
  func.func @transform_7(%arg0: i32) -> (i32, i32, i32) {
    %c0_i32 = arith.constant 0 : i32
    %c0_i32_0 = arith.constant 0 : i32
    %c0_i32_1 = arith.constant 0 : i32
    return %arg0, %c0_i32, %c0_i32_0 : i32, i32, i32
  }
  func.func @transform_8(%arg0: i32) -> (i32, i32, i32) {
    %c0_i32 = arith.constant 0 : i32
    %c0_i32_0 = arith.constant 0 : i32
    %c0_i32_1 = arith.constant 0 : i32
    return %arg0, %c0_i32, %c0_i32_0 : i32, i32, i32
  }
  func.func @transform_9(%arg0: i32) -> (i32, i32, i32) {
    %c0_i32 = arith.constant 0 : i32
    %c0_i32_0 = arith.constant 0 : i32
    %c0_i32_1 = arith.constant 0 : i32
    return %arg0, %c0_i32, %c0_i32_0 : i32, i32, i32
  }
  func.func @transform_10(%arg0: i32) -> (i32, i32, i32) {
    %c0_i32 = arith.constant 0 : i32
    %c0_i32_0 = arith.constant 0 : i32
    %c0_i32_1 = arith.constant 0 : i32
    return %arg0, %c0_i32, %c0_i32_0 : i32, i32, i32
  }
  func.func @transform_11(%arg0: i32) -> (i32, i32, i32) {
    %c0_i32 = arith.constant 0 : i32
    %c0_i32_0 = arith.constant 0 : i32
    %c0_i32_1 = arith.constant 0 : i32
    return %arg0, %c0_i32, %c0_i32_0 : i32, i32, i32
  }
  func.func @transform_12(%arg0: i32) -> (i32, i32, i32) {
    %c0_i32 = arith.constant 0 : i32
    %c0_i32_0 = arith.constant 0 : i32
    %c0_i32_1 = arith.constant 0 : i32
    return %arg0, %c0_i32, %c0_i32_0 : i32, i32, i32
  }
  func.func @transform_13(%arg0: i32) -> (i32, i32, i32) {
    %c0_i32 = arith.constant 0 : i32
    %c0_i32_0 = arith.constant 0 : i32
    %c0_i32_1 = arith.constant 0 : i32
    return %arg0, %c0_i32, %c0_i32_0 : i32, i32, i32
  }
  func.func @transform_14(%arg0: i32) -> (i32, i32, i32) {
    %c0_i32 = arith.constant 0 : i32
    %c0_i32_0 = arith.constant 0 : i32
    %c0_i32_1 = arith.constant 0 : i32
    return %arg0, %c0_i32, %c0_i32_0 : i32, i32, i32
  }
  func.func @transform_15(%arg0: i32) -> (i32, i32, i32) {
    %c0_i32 = arith.constant 0 : i32
    %c0_i32_0 = arith.constant 0 : i32
    %c0_i32_1 = arith.constant 0 : i32
    return %arg0, %c0_i32, %c0_i32_0 : i32, i32, i32
  }
  func.func @transform_16(%arg0: i32) -> (i32, i32, i32) {
    %c0_i32 = arith.constant 0 : i32
    %c0_i32_0 = arith.constant 0 : i32
    %c0_i32_1 = arith.constant 0 : i32
    return %arg0, %c0_i32, %c0_i32_0 : i32, i32, i32
  }
  func.func @transform_17(%arg0: i32) -> (i32, i32) {
    %c0_i32 = arith.constant 0 : i32
    %c0_i32_0 = arith.constant 0 : i32
    %c0_i32_1 = arith.constant 0 : i32
    return %c0_i32, %c0_i32_0 : i32, i32
  }
  func.func @transform_18(%arg0: i32) -> (i32, i32) {
    %c0_i32 = arith.constant 0 : i32
    %c0_i32_0 = arith.constant 0 : i32
    %c0_i32_1 = arith.constant 0 : i32
    return %c0_i32, %c0_i32_0 : i32, i32
  }
  func.func @transform_19(%arg0: i32) -> (i32, i32) {
    %c0_i32 = arith.constant 0 : i32
    %c0_i32_0 = arith.constant 0 : i32
    %c0_i32_1 = arith.constant 0 : i32
    return %c0_i32, %c0_i32_0 : i32, i32
  }
  func.func @transform_20(%arg0: i32) -> (i32, i32) {
    %c0_i32 = arith.constant 0 : i32
    %c0_i32_0 = arith.constant 0 : i32
    %c0_i32_1 = arith.constant 0 : i32
    return %c0_i32, %c0_i32_0 : i32, i32
  }
  func.func @transform_21(%arg0: i32) -> (i32, i32) {
    %c0_i32 = arith.constant 0 : i32
    %c0_i32_0 = arith.constant 0 : i32
    %c0_i32_1 = arith.constant 0 : i32
    return %c0_i32, %c0_i32_0 : i32, i32
  }
  func.func @transform_22(%arg0: i32) -> (i32, i32) {
    %c0_i32 = arith.constant 0 : i32
    %c0_i32_0 = arith.constant 0 : i32
    %c0_i32_1 = arith.constant 0 : i32
    return %c0_i32, %c0_i32_0 : i32, i32
  }
  func.func @transform_23(%arg0: i32) -> (i32, i32) {
    %c0_i32 = arith.constant 0 : i32
    %c0_i32_0 = arith.constant 0 : i32
    %c0_i32_1 = arith.constant 0 : i32
    return %c0_i32, %c0_i32_0 : i32, i32
  }
}

</mosaic_0001>

<llo_original>
// kernel: soh_transformer_forward.1
$region0: #{soh_transformer_forward.1}
  #allocation0 [shape = 'u32[]', space=smem, size = 0x4, offset = 0x4, fixed_abs, tag = 'smem constant byte address 0x4 - core index']
  #allocation1 [shape = 'u32[144,128]{1,0:T(1,128)}', space=vmem, size = 0x12000, scoped, tag = 'internal scratch']
  #allocation2 [shape = 'f32[16,256]{1,0:T(8,128)}', space=vmem, size = 0x4000, scoped, tag = 'scratch operand']
  %s0 = inlined_call_operand.vmem [shape: f32[16,6], index: 0, kind: input, shape index: {}]
  %s1 = inlined_call_operand.vmem [shape: bf16[256,256], index: 1, kind: input, shape index: {}]
  %s2 = inlined_call_operand.vmem [shape: f32[16,256], index: 2, kind: input, shape index: {}]
  %s3 = inlined_call_operand.hbm [shape: f32[6,256], index: 3, kind: input, shape index: {}]
  %s4 = inlined_call_operand.hbm [shape: f32[1,256], index: 4, kind: input, shape index: {}]
  %s5 = inlined_call_operand.hbm [shape: bf16[4,256,768], index: 5, kind: input, shape index: {}]
  %s6 = inlined_call_operand.hbm [shape: f32[4,1,768], index: 6, kind: input, shape index: {}]
  %s7 = inlined_call_operand.hbm [shape: bf16[4,256,256], index: 7, kind: input, shape index: {}]
  %s8 = inlined_call_operand.hbm [shape: f32[4,1,256], index: 8, kind: input, shape index: {}]
  %s9 = inlined_call_operand.hbm [shape: bf16[4,256,1024], index: 9, kind: input, shape index: {}]
  %s10 = inlined_call_operand.hbm [shape: f32[4,1,1024], index: 10, kind: input, shape index: {}]
  %s11 = inlined_call_operand.hbm [shape: bf16[4,1024,256], index: 11, kind: input, shape index: {}]
  %s12 = inlined_call_operand.hbm [shape: f32[4,1,256], index: 12, kind: input, shape index: {}]
  %s13 = inlined_call_operand.hbm [shape: f32[4,1,256], index: 13, kind: input, shape index: {}]
  %s14 = inlined_call_operand.hbm [shape: f32[4,1,256], index: 14, kind: input, shape index: {}]
  %s15 = inlined_call_operand.hbm [shape: f32[4,1,256], index: 15, kind: input, shape index: {}]
  %s16 = inlined_call_operand.hbm [shape: f32[4,1,256], index: 16, kind: input, shape index: {}]
  %s17 = inlined_call_operand.hbm [shape: f32[1,256], index: 17, kind: input, shape index: {}]
  %s18 = inlined_call_operand.hbm [shape: f32[1,256], index: 18, kind: input, shape index: {}]
  %s19 = inlined_call_operand.hbm [shape: f32[256,128], index: 19, kind: input, shape index: {}]
  %s20 = inlined_call_operand.hbm [shape: f32[1,128], index: 20, kind: input, shape index: {}]
  %s21 = inlined_call_operand.vmem [shape: f32[128,30], index: 21, kind: input, shape index: {}]
  %s22 = inlined_call_operand.hbm [shape: f32[1,30], index: 22, kind: input, shape index: {}]
  %s23 = inlined_call_operand.hbm [shape: f32[2,30], index: 23, kind: output, shape index: {}]
  %s24 = sld [smem:[#allocation0]]
  $region209: #{soh_transformer_forward.1} parent=0
    _
  %s26 = ssub.s32 1, %s24
  %s27 = scalar_select 0, %s26, %s24
  $region1: #{soh_transformer_forward.1} parent=0
    #allocation3 [shape = 'u8[8192]{0}', space=vmem, size = 0x2000, scoped, tag = 'input window, operand 3, single buffered']
    #allocation4 [shape = 's32[2]{0}', space=sflag, size = 0x8, scoped, tag = 'scoped memory for soh_transformer_forward.1']
    #allocation5 [shape = 's32[2]{0}', space=sflag, size = 0x8, scoped, tag = 'scoped memory for soh_transformer_forward.1']
    #allocation6 [shape = 'u8[1024]{0}', space=vmem, size = 0x400, scoped, tag = 'input window, operand 4, single buffered']
    #allocation7 [shape = 's32[1]{0}', space=sflag, size = 0x4, scoped, tag = 'scoped memory for soh_transformer_forward.1']
    #allocation8 [shape = 'u8[786432]{0}', space=vmem, size = 0xc0000, scoped, tag = 'input window, operand 5']
    #allocation9 [shape = 'u8[6144]{0}', space=vmem, size = 0x1800, scoped, tag = 'input window, operand 6']
    #allocation10 [shape = 'u8[262144]{0}', space=vmem, size = 0x40000, scoped, tag = 'input window, operand 7']
    #allocation11 [shape = 'u8[2048]{0}', space=vmem, size = 0x800, scoped, tag = 'input window, operand 8']
    #allocation12 [shape = 'u8[1048576]{0}', space=vmem, size = 0x100000, scoped, tag = 'input window, operand 9']
    #allocation13 [shape = 'u8[8192]{0}', space=vmem, size = 0x2000, scoped, tag = 'input window, operand 10']
    #allocation14 [shape = 'u8[1048576]{0}', space=vmem, size = 0x100000, scoped, tag = 'input window, operand 11']
    #allocation15 [shape = 'u8[2048]{0}', space=vmem, size = 0x800, scoped, tag = 'input window, operand 12']
    #allocation16 [shape = 'u8[2048]{0}', space=vmem, size = 0x800, scoped, tag = 'input window, operand 13']
    #allocation17 [shape = 'u8[2048]{0}', space=vmem, size = 0x800, scoped, tag = 'input window, operand 14']
    #allocation18 [shape = 'u8[2048]{0}', space=vmem, size = 0x800, scoped, tag = 'input window, operand 15']
    #allocation19 [shape = 'u8[2048]{0}', space=vmem, size = 0x800, scoped, tag = 'input window, operand 16']
    #allocation20 [shape = 'u8[1024]{0}', space=vmem, size = 0x400, scoped, tag = 'input window, operand 17, single buffered']
    #allocation21 [shape = 'u8[1024]{0}', space=vmem, size = 0x400, scoped, tag = 'input window, operand 18, single buffered']
    #allocation22 [shape = 's32[1]{0}', space=sflag, size = 0x4, scoped, tag = 'scoped memory for soh_transformer_forward.1']
    #allocation23 [shape = 'u8[131072]{0}', space=vmem, size = 0x20000, scoped, tag = 'input window, operand 19, single buffered']
    #allocation24 [shape = 'u8[512]{0}', space=vmem, size = 0x400, scoped, tag = 'input window, operand 20, single buffered']
    #allocation25 [shape = 's32[1]{0}', space=sflag, size = 0x4, scoped, tag = 'scoped memory for soh_transformer_forward.1']
    #allocation26 [shape = 'u8[512]{0}', space=vmem, size = 0x400, scoped, tag = 'input window, operand 22, single buffered']
    #allocation27 [shape = 'u8[1024]{0}', space=vmem, size = 0x400, scoped, tag = 'output window, operand 0, single buffered']
    %28 = vsyncpa [#allocation4], 0
    %29 = vsyncpa [#allocation7], 0
    %30 = vsyncpa [#allocation22], 0
    %31 = vsyncpa [#allocation25], 0
    %32 = vsyncpa [#allocation5], 0
    loop: start=0, step=1, limit=6
    $region2: #{soh_transformer_forward.1} parent=1 // loop_pre_header
      _
    $region3: #{soh_transformer_forward.1} parent=1 // loop_header
      %s34 = sphi 0, %s38
      %p35 = scmp.ge.s32.totalorder %s34, 6
      %s42 = sphi 0, %s42
      %s44 = sphi 0, %s42
      %s45 = sphi 0, %s44
      %s59 = sphi 0, %s45
      %s63 = sphi 0, %s63
      %s65 = sphi 0, %s63
      %s66 = sphi 0, %s65
      %s80 = sphi 0, %s66
      %s84 = sphi 0, %s84
      %s86 = sphi 0, %s84
      %s87 = sphi 0, %s86
      %s101 = sphi 0, %s87
      %s105 = sphi 0, %s105
      %s107 = sphi 0, %s105
      %s108 = sphi 0, %s107
      %s122 = sphi 0, %s108
      %s126 = sphi 0, %s126
      %s128 = sphi 0, %s126
      %s129 = sphi 0, %s128
      %s143 = sphi 0, %s129
      %s149 = sphi 0, %s151
      %s152 = sphi 0, %s149
      %s153 = sphi 0, %s152
      %s169 = sphi 0, %s153
      %s175 = sphi 0, %s177
      %s178 = sphi 0, %s175
      %s179 = sphi 0, %s178
      %s195 = sphi 0, %s179
      %s201 = sphi 0, %s203
      %s204 = sphi 0, %s201
      %s205 = sphi 0, %s204
      %s221 = sphi 0, %s205
      %s227 = sphi 0, %s229
      %s230 = sphi 0, %s227
      %s231 = sphi 0, %s230
      %s247 = sphi 0, %s231
      %s253 = sphi 0, %s255
      %s256 = sphi 0, %s253
      %s257 = sphi 0, %s256
      %s273 = sphi 0, %s257
      %s279 = sphi 0, %s281
      %s282 = sphi 0, %s279
      %s283 = sphi 0, %s282
      %s299 = sphi 0, %s283
      %s305 = sphi 0, %s307
      %s308 = sphi 0, %s305
      %s309 = sphi 0, %s308
      %s325 = sphi 0, %s309
      %s331 = sphi 0, %s333
      %s334 = sphi 0, %s331
      %s335 = sphi 0, %s334
      %s351 = sphi 0, %s335
      %s357 = sphi 0, %s359
      %s360 = sphi 0, %s357
      %s361 = sphi 0, %s360
      %s377 = sphi 0, %s361
      %s383 = sphi 0, %s385
      %s386 = sphi 0, %s383
      %s387 = sphi 0, %s386
      %s403 = sphi 0, %s387
      %s409 = sphi 0, %s411
      %s412 = sphi 0, %s409
      %s413 = sphi 0, %s412
      %s429 = sphi 0, %s413
      %s435 = sphi 0, %s437
      %s438 = sphi 0, %s435
      %s439 = sphi 0, %s438
      %s455 = sphi 0, %s439
      %s459 = sphi 0, %s459
      %s461 = sphi 0, %s459
      %s462 = sphi 0, %s461
      %s476 = sphi 0, %s462
      %s480 = sphi 0, %s480
      %s482 = sphi 0, %s480
      %s483 = sphi 0, %s482
      %s497 = sphi 0, %s483
      %s501 = sphi 0, %s501
      %s503 = sphi 0, %s501
      %s504 = sphi 0, %s503
      %s518 = sphi 0, %s504
      %s522 = sphi 0, %s522
      %s524 = sphi 0, %s522
      %s525 = sphi 0, %s524
      %s539 = sphi 0, %s525
      %s543 = sphi 0, %s543
      %s545 = sphi 0, %s543
      %s546 = sphi 0, %s545
      %s560 = sphi 0, %s546
      %s564 = sphi 0, %s564
      %s566 = sphi 0, %s564
      %s567 = sphi 0, %s566
      %s581 = sphi 0, %s567
      %s585 = sphi 0, %s585
      %s587 = sphi 0, %s585
      %s588 = sphi 0, %s587
      %s602 = sphi 0, %s588
    $region4: #{soh_transformer_forward.1} parent=1 // loop_header_branch
      %37 = sbr.rel (%p35) target = $region8
    $region5: #{soh_transformer_forward.1} parent=1 // loop_body
      %s39 = ssub.s32 %s34, 1
      %s40 = ssub.s32 %s34, 2
      %s41 = sadd.s32 %s34, 1
      %s43 = sadd.s32 %s42, 1
      %p46 = scmp.eq.s32.totalorder %s34, 3
      %p47 = scmp.ne.s32.totalorder %s42, %s44
      %p48 = scmp.eq.s32.totalorder %s34, 0
      %p49 = por %p47, %p48
      %p50 = scmp.ne.s32.totalorder %s42, %s44
      %p51 = scmp.eq.s32.totalorder %s39, 3
      %p52 = por %p50, %p51
      %p53 = scmp.ne.s32.totalorder %s44, %s45
      %p54 = scmp.eq.s32.totalorder %s39, 0
      %p55 = por %p53, %p54
      %p56 = scmp.ne.s32.totalorder %s44, %s45
      %p57 = scmp.eq.s32.totalorder %s40, 3
      %p58 = por %p56, %p57
      %p60 = scmp.ne.s32.totalorder %s45, %s59
      %p61 = scmp.eq.s32.totalorder %s40, 0
      %p62 = por %p60, %p61
      %s64 = sadd.s32 %s63, 1
      %p67 = scmp.eq.s32.totalorder %s34, 3
      %p68 = scmp.ne.s32.totalorder %s63, %s65
      %p69 = scmp.eq.s32.totalorder %s34, 0
      %p70 = por %p68, %p69
      %p71 = scmp.ne.s32.totalorder %s63, %s65
      %p72 = scmp.eq.s32.totalorder %s39, 3
      %p73 = por %p71, %p72
      %p74 = scmp.ne.s32.totalorder %s65, %s66
      %p75 = scmp.eq.s32.totalorder %s39, 0
      %p76 = por %p74, %p75
      %p77 = scmp.ne.s32.totalorder %s65, %s66
      %p78 = scmp.eq.s32.totalorder %s40, 3
      %p79 = por %p77, %p78
      %p81 = scmp.ne.s32.totalorder %s66, %s80
      %p82 = scmp.eq.s32.totalorder %s40, 0
      %p83 = por %p81, %p82
      %s85 = sadd.s32 %s84, 1
      %p88 = scmp.eq.s32.totalorder %s34, 3
      %p89 = scmp.ne.s32.totalorder %s84, %s86
      %p90 = scmp.eq.s32.totalorder %s34, 0
      %p91 = por %p89, %p90
      %p92 = scmp.ne.s32.totalorder %s84, %s86
      %p93 = scmp.eq.s32.totalorder %s39, 3
      %p94 = por %p92, %p93
      %p95 = scmp.ne.s32.totalorder %s86, %s87
      %p96 = scmp.eq.s32.totalorder %s39, 0
      %p97 = por %p95, %p96
      %p98 = scmp.ne.s32.totalorder %s86, %s87
      %p99 = scmp.eq.s32.totalorder %s40, 3
      %p100 = por %p98, %p99
      %p102 = scmp.ne.s32.totalorder %s87, %s101
      %p103 = scmp.eq.s32.totalorder %s40, 0
      %p104 = por %p102, %p103
      %s106 = sadd.s32 %s105, 1
      %p109 = scmp.eq.s32.totalorder %s34, 3
      %p110 = scmp.ne.s32.totalorder %s105, %s107
      %p111 = scmp.eq.s32.totalorder %s34, 0
      %p112 = por %p110, %p111
      %p113 = scmp.ne.s32.totalorder %s105, %s107
      %p114 = scmp.eq.s32.totalorder %s39, 3
      %p115 = por %p113, %p114
      %p116 = scmp.ne.s32.totalorder %s107, %s108
      %p117 = scmp.eq.s32.totalorder %s39, 0
      %p118 = por %p116, %p117
      %p119 = scmp.ne.s32.totalorder %s107, %s108
      %p120 = scmp.eq.s32.totalorder %s40, 3
      %p121 = por %p119, %p120
      %p123 = scmp.ne.s32.totalorder %s108, %s122
      %p124 = scmp.eq.s32.totalorder %s40, 0
      %p125 = por %p123, %p124
      %s127 = sadd.s32 %s126, 1
      %p130 = scmp.eq.s32.totalorder %s34, 3
      %p131 = scmp.ne.s32.totalorder %s126, %s128
      %p132 = scmp.eq.s32.totalorder %s34, 0
      %p133 = por %p131, %p132
      %p134 = scmp.ne.s32.totalorder %s126, %s128
      %p135 = scmp.eq.s32.totalorder %s39, 3
      %p136 = por %p134, %p135
      %p137 = scmp.ne.s32.totalorder %s128, %s129
      %p138 = scmp.eq.s32.totalorder %s39, 0
      %p139 = por %p137, %p138
      %p140 = scmp.ne.s32.totalorder %s128, %s129
      %p141 = scmp.eq.s32.totalorder %s40, 3
      %p142 = por %p140, %p141
      %p144 = scmp.ne.s32.totalorder %s129, %s143
      %p145 = scmp.eq.s32.totalorder %s40, 0
      %p146 = por %p144, %p145
      %s147 = ssub.s32 %s34, %s41
      %p148 = scmp.eq.s32.totalorder %s147, 0
      %s150 = sadd.s32 %s149, 1
      %s151 = scalar_select %p148, %s149, %s150
      %p154 = pneg %p148
      %p155 = scmp.eq.s32.totalorder %s34, 3
      %p156 = por %p154, %p155
      %p157 = scmp.ne.s32.totalorder %s149, %s152
      %p158 = scmp.eq.s32.totalorder %s34, 0
      %p159 = por %p157, %p158
      %p160 = scmp.ne.s32.totalorder %s149, %s152
      %p161 = scmp.eq.s32.totalorder %s39, 3
      %p162 = por %p160, %p161
      %p163 = scmp.ne.s32.totalorder %s152, %s153
      %p164 = scmp.eq.s32.totalorder %s39, 0
      %p165 = por %p163, %p164
      %p166 = scmp.ne.s32.totalorder %s152, %s153
      %p167 = scmp.eq.s32.totalorder %s40, 3
      %p168 = por %p166, %p167
      %p170 = scmp.ne.s32.totalorder %s153, %s169
      %p171 = scmp.eq.s32.totalorder %s40, 0
      %p172 = por %p170, %p171
      %s173 = ssub.s32 %s34, %s41
      %p174 = scmp.eq.s32.totalorder %s173, 0
      %s176 = sadd.s32 %s175, 1
      %s177 = scalar_select %p174, %s175, %s176
      %p180 = pneg %p174
      %p181 = scmp.eq.s32.totalorder %s34, 3
      %p182 = por %p180, %p181
      %p183 = scmp.ne.s32.totalorder %s175, %s178
      %p184 = scmp.eq.s32.totalorder %s34, 0
      %p185 = por %p183, %p184
      %p186 = scmp.ne.s32.totalorder %s175, %s178
      %p187 = scmp.eq.s32.totalorder %s39, 3
      %p188 = por %p186, %p187
      %p189 = scmp.ne.s32.totalorder %s178, %s179
      %p190 = scmp.eq.s32.totalorder %s39, 0
      %p191 = por %p189, %p190
      %p192 = scmp.ne.s32.totalorder %s178, %s179
      %p193 = scmp.eq.s32.totalorder %s40, 3
      %p194 = por %p192, %p193
      %p196 = scmp.ne.s32.totalorder %s179, %s195
      %p197 = scmp.eq.s32.totalorder %s40, 0
      %p198 = por %p196, %p197
      %s199 = ssub.s32 %s34, %s41
      %p200 = scmp.eq.s32.totalorder %s199, 0
      %s202 = sadd.s32 %s201, 1
      %s203 = scalar_select %p200, %s201, %s202
      %p206 = pneg %p200
      %p207 = scmp.eq.s32.totalorder %s34, 3
      %p208 = por %p206, %p207
      %p209 = scmp.ne.s32.totalorder %s201, %s204
      %p210 = scmp.eq.s32.totalorder %s34, 0
      %p211 = por %p209, %p210
      %p212 = scmp.ne.s32.totalorder %s201, %s204
      %p213 = scmp.eq.s32.totalorder %s39, 3
      %p214 = por %p212, %p213
      %p215 = scmp.ne.s32.totalorder %s204, %s205
      %p216 = scmp.eq.s32.totalorder %s39, 0
      %p217 = por %p215, %p216
      %p218 = scmp.ne.s32.totalorder %s204, %s205
      %p219 = scmp.eq.s32.totalorder %s40, 3
      %p220 = por %p218, %p219
      %p222 = scmp.ne.s32.totalorder %s205, %s221
      %p223 = scmp.eq.s32.totalorder %s40, 0
      %p224 = por %p222, %p223
      %s225 = ssub.s32 %s34, %s41
      %p226 = scmp.eq.s32.totalorder %s225, 0
      %s228 = sadd.s32 %s227, 1
      %s229 = scalar_select %p226, %s227, %s228
      %p232 = pneg %p226
      %p233 = scmp.eq.s32.totalorder %s34, 3
      %p234 = por %p232, %p233
      %p235 = scmp.ne.s32.totalorder %s227, %s230
      %p236 = scmp.eq.s32.totalorder %s34, 0
      %p237 = por %p235, %p236
      %p238 = scmp.ne.s32.totalorder %s227, %s230
      %p239 = scmp.eq.s32.totalorder %s39, 3
      %p240 = por %p238, %p239
      %p241 = scmp.ne.s32.totalorder %s230, %s231
      %p242 = scmp.eq.s32.totalorder %s39, 0
      %p243 = por %p241, %p242
      %p244 = scmp.ne.s32.totalorder %s230, %s231
      %p245 = scmp.eq.s32.totalorder %s40, 3
      %p246 = por %p244, %p245
      %p248 = scmp.ne.s32.totalorder %s231, %s247
      %p249 = scmp.eq.s32.totalorder %s40, 0
      %p250 = por %p248, %p249
      %s251 = ssub.s32 %s34, %s41
      %p252 = scmp.eq.s32.totalorder %s251, 0
      %s254 = sadd.s32 %s253, 1
      %s255 = scalar_select %p252, %s253, %s254
      %p258 = pneg %p252
      %p259 = scmp.eq.s32.totalorder %s34, 3
      %p260 = por %p258, %p259
      %p261 = scmp.ne.s32.totalorder %s253, %s256
      %p262 = scmp.eq.s32.totalorder %s34, 0
      %p263 = por %p261, %p262
      %p264 = scmp.ne.s32.totalorder %s253, %s256
      %p265 = scmp.eq.s32.totalorder %s39, 3
      %p266 = por %p264, %p265
      %p267 = scmp.ne.s32.totalorder %s256, %s257
      %p268 = scmp.eq.s32.totalorder %s39, 0
      %p269 = por %p267, %p268
      %p270 = scmp.ne.s32.totalorder %s256, %s257
      %p271 = scmp.eq.s32.totalorder %s40, 3
      %p272 = por %p270, %p271
      %p274 = scmp.ne.s32.totalorder %s257, %s273
      %p275 = scmp.eq.s32.totalorder %s40, 0
      %p276 = por %p274, %p275
      %s277 = ssub.s32 %s34, %s41
      %p278 = scmp.eq.s32.totalorder %s277, 0
      %s280 = sadd.s32 %s279, 1
      %s281 = scalar_select %p278, %s279, %s280
      %p284 = pneg %p278
      %p285 = scmp.eq.s32.totalorder %s34, 3
      %p286 = por %p284, %p285
      %p287 = scmp.ne.s32.totalorder %s279, %s282
      %p288 = scmp.eq.s32.totalorder %s34, 0
      %p289 = por %p287, %p288
      %p290 = scmp.ne.s32.totalorder %s279, %s282
      %p291 = scmp.eq.s32.totalorder %s39, 3
      %p292 = por %p290, %p291
      %p293 = scmp.ne.s32.totalorder %s282, %s283
      %p294 = scmp.eq.s32.totalorder %s39, 0
      %p295 = por %p293, %p294
      %p296 = scmp.ne.s32.totalorder %s282, %s283
      %p297 = scmp.eq.s32.totalorder %s40, 3
      %p298 = por %p296, %p297
      %p300 = scmp.ne.s32.totalorder %s283, %s299
      %p301 = scmp.eq.s32.totalorder %s40, 0
      %p302 = por %p300, %p301
      %s303 = ssub.s32 %s34, %s41
      %p304 = scmp.eq.s32.totalorder %s303, 0
      %s306 = sadd.s32 %s305, 1
      %s307 = scalar_select %p304, %s305, %s306
      %p310 = pneg %p304
      %p311 = scmp.eq.s32.totalorder %s34, 3
      %p312 = por %p310, %p311
      %p313 = scmp.ne.s32.totalorder %s305, %s308
      %p314 = scmp.eq.s32.totalorder %s34, 0
      %p315 = por %p313, %p314
      %p316 = scmp.ne.s32.totalorder %s305, %s308
      %p317 = scmp.eq.s32.totalorder %s39, 3
      %p318 = por %p316, %p317
      %p319 = scmp.ne.s32.totalorder %s308, %s309
      %p320 = scmp.eq.s32.totalorder %s39, 0
      %p321 = por %p319, %p320
      %p322 = scmp.ne.s32.totalorder %s308, %s309
      %p323 = scmp.eq.s32.totalorder %s40, 3
      %p324 = por %p322, %p323
      %p326 = scmp.ne.s32.totalorder %s309, %s325
      %p327 = scmp.eq.s32.totalorder %s40, 0
      %p328 = por %p326, %p327
      %s329 = ssub.s32 %s34, %s41
      %p330 = scmp.eq.s32.totalorder %s329, 0
      %s332 = sadd.s32 %s331, 1
      %s333 = scalar_select %p330, %s331, %s332
      %p336 = pneg %p330
      %p337 = scmp.eq.s32.totalorder %s34, 3
      %p338 = por %p336, %p337
      %p339 = scmp.ne.s32.totalorder %s331, %s334
      %p340 = scmp.eq.s32.totalorder %s34, 0
      %p341 = por %p339, %p340
      %p342 = scmp.ne.s32.totalorder %s331, %s334
      %p343 = scmp.eq.s32.totalorder %s39, 3
      %p344 = por %p342, %p343
      %p345 = scmp.ne.s32.totalorder %s334, %s335
      %p346 = scmp.eq.s32.totalorder %s39, 0
      %p347 = por %p345, %p346
      %p348 = scmp.ne.s32.totalorder %s334, %s335
      %p349 = scmp.eq.s32.totalorder %s40, 3
      %p350 = por %p348, %p349
      %p352 = scmp.ne.s32.totalorder %s335, %s351
      %p353 = scmp.eq.s32.totalorder %s40, 0
      %p354 = por %p352, %p353
      %s355 = ssub.s32 %s34, %s41
      %p356 = scmp.eq.s32.totalorder %s355, 0
      %s358 = sadd.s32 %s357, 1
      %s359 = scalar_select %p356, %s357, %s358
      %p362 = pneg %p356
      %p363 = scmp.eq.s32.totalorder %s34, 3
      %p364 = por %p362, %p363
      %p365 = scmp.ne.s32.totalorder %s357, %s360
      %p366 = scmp.eq.s32.totalorder %s34, 0
      %p367 = por %p365, %p366
      %p368 = scmp.ne.s32.totalorder %s357, %s360
      %p369 = scmp.eq.s32.totalorder %s39, 3
      %p370 = por %p368, %p369
      %p371 = scmp.ne.s32.totalorder %s360, %s361
      %p372 = scmp.eq.s32.totalorder %s39, 0
      %p373 = por %p371, %p372
      %p374 = scmp.ne.s32.totalorder %s360, %s361
      %p375 = scmp.eq.s32.totalorder %s40, 3
      %p376 = por %p374, %p375
      %p378 = scmp.ne.s32.totalorder %s361, %s377
      %p379 = scmp.eq.s32.totalorder %s40, 0
      %p380 = por %p378, %p379
      %s381 = ssub.s32 %s34, %s41
      %p382 = scmp.eq.s32.totalorder %s381, 0
      %s384 = sadd.s32 %s383, 1
      %s385 = scalar_select %p382, %s383, %s384
      %p388 = pneg %p382
      %p389 = scmp.eq.s32.totalorder %s34, 3
      %p390 = por %p388, %p389
      %p391 = scmp.ne.s32.totalorder %s383, %s386
      %p392 = scmp.eq.s32.totalorder %s34, 0
      %p393 = por %p391, %p392
      %p394 = scmp.ne.s32.totalorder %s383, %s386
      %p395 = scmp.eq.s32.totalorder %s39, 3
      %p396 = por %p394, %p395
      %p397 = scmp.ne.s32.totalorder %s386, %s387
      %p398 = scmp.eq.s32.totalorder %s39, 0
      %p399 = por %p397, %p398
      %p400 = scmp.ne.s32.totalorder %s386, %s387
      %p401 = scmp.eq.s32.totalorder %s40, 3
      %p402 = por %p400, %p401
      %p404 = scmp.ne.s32.totalorder %s387, %s403
      %p405 = scmp.eq.s32.totalorder %s40, 0
      %p406 = por %p404, %p405
      %s407 = ssub.s32 %s34, %s41
      %p408 = scmp.eq.s32.totalorder %s407, 0
      %s410 = sadd.s32 %s409, 1
      %s411 = scalar_select %p408, %s409, %s410
      %p414 = pneg %p408
      %p415 = scmp.eq.s32.totalorder %s34, 3
      %p416 = por %p414, %p415
      %p417 = scmp.ne.s32.totalorder %s409, %s412
      %p418 = scmp.eq.s32.totalorder %s34, 0
      %p419 = por %p417, %p418
      %p420 = scmp.ne.s32.totalorder %s409, %s412
      %p421 = scmp.eq.s32.totalorder %s39, 3
      %p422 = por %p420, %p421
      %p423 = scmp.ne.s32.totalorder %s412, %s413
      %p424 = scmp.eq.s32.totalorder %s39, 0
      %p425 = por %p423, %p424
      %p426 = scmp.ne.s32.totalorder %s412, %s413
      %p427 = scmp.eq.s32.totalorder %s40, 3
      %p428 = por %p426, %p427
      %p430 = scmp.ne.s32.totalorder %s413, %s429
      %p431 = scmp.eq.s32.totalorder %s40, 0
      %p432 = por %p430, %p431
      %s433 = ssub.s32 %s34, %s41
      %p434 = scmp.eq.s32.totalorder %s433, 0
      %s436 = sadd.s32 %s435, 1
      %s437 = scalar_select %p434, %s435, %s436
      %p440 = pneg %p434
      %p441 = scmp.eq.s32.totalorder %s34, 3
      %p442 = por %p440, %p441
      %p443 = scmp.ne.s32.totalorder %s435, %s438
      %p444 = scmp.eq.s32.totalorder %s34, 0
      %p445 = por %p443, %p444
      %p446 = scmp.ne.s32.totalorder %s435, %s438
      %p447 = scmp.eq.s32.totalorder %s39, 3
      %p448 = por %p446, %p447
      %p449 = scmp.ne.s32.totalorder %s438, %s439
      %p450 = scmp.eq.s32.totalorder %s39, 0
      %p451 = por %p449, %p450
      %p452 = scmp.ne.s32.totalorder %s438, %s439
      %p453 = scmp.eq.s32.totalorder %s40, 3
      %p454 = por %p452, %p453
      %p456 = scmp.ne.s32.totalorder %s439, %s455
      %p457 = scmp.eq.s32.totalorder %s40, 0
      %p458 = por %p456, %p457
      %s460 = sadd.s32 %s459, 1
      %p463 = scmp.eq.s32.totalorder %s34, 3
      %p464 = scmp.ne.s32.totalorder %s459, %s461
      %p465 = scmp.eq.s32.totalorder %s34, 0
      %p466 = por %p464, %p465
      %p467 = scmp.ne.s32.totalorder %s459, %s461
      %p468 = scmp.eq.s32.totalorder %s39, 3
      %p469 = por %p467, %p468
      %p470 = scmp.ne.s32.totalorder %s461, %s462
      %p471 = scmp.eq.s32.totalorder %s39, 0
      %p472 = por %p470, %p471
      %p473 = scmp.ne.s32.totalorder %s461, %s462
      %p474 = scmp.eq.s32.totalorder %s40, 3
      %p475 = por %p473, %p474
      %p477 = scmp.ne.s32.totalorder %s462, %s476
      %p478 = scmp.eq.s32.totalorder %s40, 0
      %p479 = por %p477, %p478
      %s481 = sadd.s32 %s480, 1
      %p484 = scmp.eq.s32.totalorder %s34, 3
      %p485 = scmp.ne.s32.totalorder %s480, %s482
      %p486 = scmp.eq.s32.totalorder %s34, 0
      %p487 = por %p485, %p486
      %p488 = scmp.ne.s32.totalorder %s480, %s482
      %p489 = scmp.eq.s32.totalorder %s39, 3
      %p490 = por %p488, %p489
      %p491 = scmp.ne.s32.totalorder %s482, %s483
      %p492 = scmp.eq.s32.totalorder %s39, 0
      %p493 = por %p491, %p492
      %p494 = scmp.ne.s32.totalorder %s482, %s483
      %p495 = scmp.eq.s32.totalorder %s40, 3
      %p496 = por %p494, %p495
      %p498 = scmp.ne.s32.totalorder %s483, %s497
      %p499 = scmp.eq.s32.totalorder %s40, 0
      %p500 = por %p498, %p499
      %s502 = sadd.s32 %s501, 1
      %p505 = scmp.eq.s32.totalorder %s34, 3
      %p506 = scmp.ne.s32.totalorder %s501, %s503
      %p507 = scmp.eq.s32.totalorder %s34, 0
      %p508 = por %p506, %p507
      %p509 = scmp.ne.s32.totalorder %s501, %s503
      %p510 = scmp.eq.s32.totalorder %s39, 3
      %p511 = por %p509, %p510
      %p512 = scmp.ne.s32.totalorder %s503, %s504
      %p513 = scmp.eq.s32.totalorder %s39, 0
      %p514 = por %p512, %p513
      %p515 = scmp.ne.s32.totalorder %s503, %s504
      %p516 = scmp.eq.s32.totalorder %s40, 3
      %p517 = por %p515, %p516
      %p519 = scmp.ne.s32.totalorder %s504, %s518
      %p520 = scmp.eq.s32.totalorder %s40, 0
      %p521 = por %p519, %p520
      %s523 = sadd.s32 %s522, 1
      %p526 = scmp.eq.s32.totalorder %s34, 3
      %p527 = scmp.ne.s32.totalorder %s522, %s524
      %p528 = scmp.eq.s32.totalorder %s34, 0
      %p529 = por %p527, %p528
      %p530 = scmp.ne.s32.totalorder %s522, %s524
      %p531 = scmp.eq.s32.totalorder %s39, 3
      %p532 = por %p530, %p531
      %p533 = scmp.ne.s32.totalorder %s524, %s525
      %p534 = scmp.eq.s32.totalorder %s39, 0
      %p535 = por %p533, %p534
      %p536 = scmp.ne.s32.totalorder %s524, %s525
      %p537 = scmp.eq.s32.totalorder %s40, 3
      %p538 = por %p536, %p537
      %p540 = scmp.ne.s32.totalorder %s525, %s539
      %p541 = scmp.eq.s32.totalorder %s40, 0
      %p542 = por %p540, %p541
      %s544 = sadd.s32 %s543, 1
      %p547 = scmp.eq.s32.totalorder %s34, 3
      %p548 = scmp.ne.s32.totalorder %s543, %s545
      %p549 = scmp.eq.s32.totalorder %s34, 0
      %p550 = por %p548, %p549
      %p551 = scmp.ne.s32.totalorder %s543, %s545
      %p552 = scmp.eq.s32.totalorder %s39, 3
      %p553 = por %p551, %p552
      %p554 = scmp.ne.s32.totalorder %s545, %s546
      %p555 = scmp.eq.s32.totalorder %s39, 0
      %p556 = por %p554, %p555
      %p557 = scmp.ne.s32.totalorder %s545, %s546
      %p558 = scmp.eq.s32.totalorder %s40, 3
      %p559 = por %p557, %p558
      %p561 = scmp.ne.s32.totalorder %s546, %s560
      %p562 = scmp.eq.s32.totalorder %s40, 0
      %p563 = por %p561, %p562
      %s565 = sadd.s32 %s564, 1
      %p568 = scmp.eq.s32.totalorder %s34, 3
      %p569 = scmp.ne.s32.totalorder %s564, %s566
      %p570 = scmp.eq.s32.totalorder %s34, 0
      %p571 = por %p569, %p570
      %p572 = scmp.ne.s32.totalorder %s564, %s566
      %p573 = scmp.eq.s32.totalorder %s39, 3
      %p574 = por %p572, %p573
      %p575 = scmp.ne.s32.totalorder %s566, %s567
      %p576 = scmp.eq.s32.totalorder %s39, 0
      %p577 = por %p575, %p576
      %p578 = scmp.ne.s32.totalorder %s566, %s567
      %p579 = scmp.eq.s32.totalorder %s40, 3
      %p580 = por %p578, %p579
      %p582 = scmp.ne.s32.totalorder %s567, %s581
      %p583 = scmp.eq.s32.totalorder %s40, 0
      %p584 = por %p582, %p583
      %s586 = sadd.s32 %s585, 1
      %p589 = scmp.eq.s32.totalorder %s34, 3
      %p590 = scmp.ne.s32.totalorder %s585, %s587
      %p591 = scmp.eq.s32.totalorder %s34, 0
      %p592 = por %p590, %p591
      %p593 = scmp.ne.s32.totalorder %s585, %s587
      %p594 = scmp.eq.s32.totalorder %s39, 3
      %p595 = por %p593, %p594
      %p596 = scmp.ne.s32.totalorder %s587, %s588
      %p597 = scmp.eq.s32.totalorder %s39, 0
      %p598 = por %p596, %p597
      %p599 = scmp.ne.s32.totalorder %s587, %s588
      %p600 = scmp.eq.s32.totalorder %s40, 3
      %p601 = por %p599, %p600
      %p603 = scmp.ne.s32.totalorder %s588, %s602
      %p604 = scmp.eq.s32.totalorder %s40, 0
      %p605 = por %p603, %p604
      %p606 = scmp.le.s32.totalorder 1, %s34
      %p607 = scmp.lt.s32.totalorder %s34, 5
      %p608 = pnand %p606, %p607
      %p609 = pneg %p608
      // Predicated region
      $region9: #{soh_transformer_forward.1} parent=5 // pred_check
        _
      $region10: #{soh_transformer_forward.1} parent=5 // pred_check_branch
        %611 = sbr.rel (%p608) target = $region12
      $region11: #{soh_transformer_forward.1} parent=5 // pred_region
        %s612 = ssub.s32 %s34, 1
        // Predicated region
        $region13: #{soh_transformer_forward.1} parent=11 // pred_check
          %p613 = pneg %p55
        $region14: #{soh_transformer_forward.1} parent=11 // pred_check_branch
          %615 = sbr.rel (%p613) target = $region16
        $region15: #{soh_transformer_forward.1} parent=11 // pred_region
          _
        $region16: #{soh_transformer_forward.1} parent=11 // pred_fallthru
          _
        // Predicated region
        $region17: #{soh_transformer_forward.1} parent=11 // pred_check
          %p616 = pneg %p76
        $region18: #{soh_transformer_forward.1} parent=11 // pred_check_branch
          %618 = sbr.rel (%p616) target = $region20
        $region19: #{soh_transformer_forward.1} parent=11 // pred_region
          _
        $region20: #{soh_transformer_forward.1} parent=11 // pred_fallthru
          _
        // Predicated region
        $region21: #{soh_transformer_forward.1} parent=11 // pred_check
          %p619 = pneg %p97
        $region22: #{soh_transformer_forward.1} parent=11 // pred_check_branch
          %621 = sbr.rel (%p619) target = $region24
        $region23: #{soh_transformer_forward.1} parent=11 // pred_region
          _
        $region24: #{soh_transformer_forward.1} parent=11 // pred_fallthru
          _
        // Predicated region
        $region25: #{soh_transformer_forward.1} parent=11 // pred_check
          %p622 = pneg %p118
        $region26: #{soh_transformer_forward.1} parent=11 // pred_check_branch
          %624 = sbr.rel (%p622) target = $region28
        $region27: #{soh_transformer_forward.1} parent=11 // pred_region
          %s626 = ssub.s32 256, 256
          %627 = vsyncadd [#allocation4], %s626
          %s629 = sshll.u32 [#allocation3], 4
          %s630 = int_to_ptr.vmem [resolvable:$true] %s629
          %632 = dma.hbm_to_vmem [thread:$0]  %s3, 256, %s630, [#allocation4]
        $region28: #{soh_transformer_forward.1} parent=11 // pred_fallthru
          _
        // Predicated region
        $region29: #{soh_transformer_forward.1} parent=11 // pred_check
          %p633 = pneg %p139
        $region30: #{soh_transformer_forward.1} parent=11 // pred_check_branch
          %635 = sbr.rel (%p633) target = $region32
        $region31: #{soh_transformer_forward.1} parent=11 // pred_region
          %s637 = ssub.s32 32, 32
          %638 = vsyncadd [#allocation7], %s637
          %s640 = sshll.u32 [#allocation6], 4
          %s641 = int_to_ptr.vmem [resolvable:$true] %s640
          %643 = dma.hbm_to_vmem [thread:$0]  %s4, 32, %s641, [#allocation7]
        $region32: #{soh_transformer_forward.1} parent=11 // pred_fallthru
          _
        // Predicated region
        $region33: #{soh_transformer_forward.1} parent=11 // pred_check
          %p644 = pneg %p472
        $region34: #{soh_transformer_forward.1} parent=11 // pred_check_branch
          %646 = sbr.rel (%p644) target = $region36
        $region35: #{soh_transformer_forward.1} parent=11 // pred_region
          %s648 = ssub.s32 32, 32
          %649 = vsyncadd [#allocation7], %s648
          %s651 = sshll.u32 [#allocation20], 4
          %s652 = int_to_ptr.vmem [resolvable:$true] %s651
          %654 = dma.hbm_to_vmem [thread:$0]  %s17, 32, %s652, [#allocation7]
        $region36: #{soh_transformer_forward.1} parent=11 // pred_fallthru
          _
        // Predicated region
        $region37: #{soh_transformer_forward.1} parent=11 // pred_check
          %p655 = pneg %p493
        $region38: #{soh_transformer_forward.1} parent=11 // pred_check_branch
          %657 = sbr.rel (%p655) target = $region40
        $region39: #{soh_transformer_forward.1} parent=11 // pred_region
          %s659 = ssub.s32 32, 32
          %660 = vsyncadd [#allocation22], %s659
          %s662 = sshll.u32 [#allocation21], 4
          %s663 = int_to_ptr.vmem [resolvable:$true] %s662
          %665 = dma.hbm_to_vmem [thread:$0]  %s18, 32, %s663, [#allocation22]
        $region40: #{soh_transformer_forward.1} parent=11 // pred_fallthru
          _
        // Predicated region
        $region41: #{soh_transformer_forward.1} parent=11 // pred_check
          %p666 = pneg %p514
        $region42: #{soh_transformer_forward.1} parent=11 // pred_check_branch
          %668 = sbr.rel (%p666) target = $region44
        $region43: #{soh_transformer_forward.1} parent=11 // pred_region
          %s670 = ssub.s32 4096, 4096
          %671 = vsyncadd [#allocation22], %s670
          %s672 = sshll.u32 [#allocation23], 4
          %s673 = int_to_ptr.vmem [resolvable:$true] %s672
          %678 = dma.hbm_to_vmem [thread:$0]  %s19, 4096, %s673, [#allocation22], 128, 128, 8
        $region44: #{soh_transformer_forward.1} parent=11 // pred_fallthru
          _
        // Predicated region
        $region45: #{soh_transformer_forward.1} parent=11 // pred_check
          %p679 = pneg %p535
        $region46: #{soh_transformer_forward.1} parent=11 // pred_check_branch
          %681 = sbr.rel (%p679) target = $region48
        $region47: #{soh_transformer_forward.1} parent=11 // pred_region
          %s683 = ssub.s32 16, 16
          %684 = vsyncadd [#allocation25], %s683
          %s686 = sshll.u32 [#allocation24], 4
          %s687 = int_to_ptr.vmem [resolvable:$true] %s686
          %689 = dma.hbm_to_vmem [thread:$0]  %s20, 16, %s687, [#allocation25]
        $region48: #{soh_transformer_forward.1} parent=11 // pred_fallthru
          _
        // Predicated region
        $region49: #{soh_transformer_forward.1} parent=11 // pred_check
          %p690 = pneg %p556
        $region50: #{soh_transformer_forward.1} parent=11 // pred_check_branch
          %692 = sbr.rel (%p690) target = $region52
        $region51: #{soh_transformer_forward.1} parent=11 // pred_region
          _
        $region52: #{soh_transformer_forward.1} parent=11 // pred_fallthru
          _
        // Predicated region
        $region53: #{soh_transformer_forward.1} parent=11 // pred_check
          %p693 = pneg %p577
        $region54: #{soh_transformer_forward.1} parent=11 // pred_check_branch
          %695 = sbr.rel (%p693) target = $region56
        $region55: #{soh_transformer_forward.1} parent=11 // pred_region
          %s697 = ssub.s32 16, 16
          %698 = vsyncadd [#allocation25], %s697
          %s700 = sshll.u32 [#allocation26], 4
          %s701 = int_to_ptr.vmem [resolvable:$true] %s700
          %703 = dma.hbm_to_vmem [thread:$0]  %s22, 16, %s701, [#allocation25]
        $region56: #{soh_transformer_forward.1} parent=11 // pred_fallthru
          _
      $region12: #{soh_transformer_forward.1} parent=5 // pred_fallthru
        _
      %p704 = scmp.lt.s32.totalorder %s34, 4
      // Predicated region
      $region57: #{soh_transformer_forward.1} parent=5 // pred_check
        %p705 = pneg %p704
      $region58: #{soh_transformer_forward.1} parent=5 // pred_check_branch
        %707 = sbr.rel (%p705) target = $region60
      $region59: #{soh_transformer_forward.1} parent=5 // pred_region
        // Predicated region
        $region61: #{soh_transformer_forward.1} parent=59 // pred_check
          %p708 = pneg %p159
        $region62: #{soh_transformer_forward.1} parent=59 // pred_check_branch
          %710 = sbr.rel (%p708) target = $region64
        $region63: #{soh_transformer_forward.1} parent=59 // pred_region
          %s711 = sand.u32 %s34, 1
          %s712 = scalar_lea.sflag [#allocation4], %s711
          %s713 = sand.u32 %s149, 1
          %s714 = smul.addr %s713, 768
          %s715 = scalar_lea.vmem [#allocation8], %s714
          %s717 = ssub.s32 12288, 12288
          %718 = vsyncadd %s712, %s717
          %s719 = smul.addr %s34, 192
          %s720 = smul.addr %s719, 64
          %s721 = scalar_lea.hbm %s5, %s720
          %s722 = sshll.u32 %s715, 4
          %s723 = int_to_ptr.vmem [resolvable:$true] %s722
          %728 = dma.hbm_to_vmem [thread:$0]  %s721, 12288, %s723, %s712, 384, 384, 24
        $region64: #{soh_transformer_forward.1} parent=59 // pred_fallthru
          _
        // Predicated region
        $region65: #{soh_transformer_forward.1} parent=59 // pred_check
          %p729 = pneg %p185
        $region66: #{soh_transformer_forward.1} parent=59 // pred_check_branch
          %731 = sbr.rel (%p729) target = $region68
        $region67: #{soh_transformer_forward.1} parent=59 // pred_region
          %s732 = sand.u32 %s34, 1
          %s733 = scalar_lea.sflag [#allocation4], %s732
          %s734 = sand.u32 %s175, 1
          %s735 = smul.addr %s734, 6
          %s736 = scalar_lea.vmem [#allocation9], %s735
          %s738 = ssub.s32 96, 96
          %739 = vsyncadd %s733, %s738
          %s740 = smul.addr %s34, 6
          %s741 = smul.addr %s740, 16
          %s742 = scalar_lea.hbm %s6, %s741
          %s744 = sshll.u32 %s736, 4
          %s745 = int_to_ptr.vmem [resolvable:$true] %s744
          %747 = dma.hbm_to_vmem [thread:$0]  %s742, 96, %s745, %s733
        $region68: #{soh_transformer_forward.1} parent=59 // pred_fallthru
          _
        // Predicated region
        $region69: #{soh_transformer_forward.1} parent=59 // pred_check
          %p748 = pneg %p211
        $region70: #{soh_transformer_forward.1} parent=59 // pred_check_branch
          %750 = sbr.rel (%p748) target = $region72
        $region71: #{soh_transformer_forward.1} parent=59 // pred_region
          %s751 = sand.u32 %s34, 1
          %s752 = scalar_lea.sflag [#allocation4], %s751
          %s753 = sand.u32 %s201, 1
          %s754 = smul.addr %s753, 256
          %s755 = scalar_lea.vmem [#allocation10], %s754
          %s757 = ssub.s32 4096, 4096
          %758 = vsyncadd %s752, %s757
          %s759 = smul.addr %s34, 64
          %s760 = smul.addr %s759, 64
          %s761 = scalar_lea.hbm %s7, %s760
          %s762 = sshll.u32 %s755, 4
          %s763 = int_to_ptr.vmem [resolvable:$true] %s762
          %768 = dma.hbm_to_vmem [thread:$0]  %s761, 4096, %s763, %s752, 128, 128, 8
        $region72: #{soh_transformer_forward.1} parent=59 // pred_fallthru
          _
        // Predicated region
        $region73: #{soh_transformer_forward.1} parent=59 // pred_check
          %p769 = pneg %p237
        $region74: #{soh_transformer_forward.1} parent=59 // pred_check_branch
          %771 = sbr.rel (%p769) target = $region76
        $region75: #{soh_transformer_forward.1} parent=59 // pred_region
          %s772 = sand.u32 %s34, 1
          %s773 = scalar_lea.sflag [#allocation4], %s772
          %s774 = sand.u32 %s227, 1
          %s775 = smul.addr %s774, 2
          %s776 = scalar_lea.vmem [#allocation11], %s775
          %s778 = ssub.s32 32, 32
          %779 = vsyncadd %s773, %s778
          %s780 = smul.addr %s34, 2
          %s781 = smul.addr %s780, 16
          %s782 = scalar_lea.hbm %s8, %s781
          %s784 = sshll.u32 %s776, 4
          %s785 = int_to_ptr.vmem [resolvable:$true] %s784
          %787 = dma.hbm_to_vmem [thread:$0]  %s782, 32, %s785, %s773
        $region76: #{soh_transformer_forward.1} parent=59 // pred_fallthru
          _
        // Predicated region
        $region77: #{soh_transformer_forward.1} parent=59 // pred_check
          %p788 = pneg %p263
        $region78: #{soh_transformer_forward.1} parent=59 // pred_check_branch
          %790 = sbr.rel (%p788) target = $region80
        $region79: #{soh_transformer_forward.1} parent=59 // pred_region
          %s791 = sand.u32 %s34, 1
          %s792 = scalar_lea.sflag [#allocation4], %s791
          %s793 = sand.u32 %s253, 1
          %s794 = smul.addr %s793, 1024
          %s795 = scalar_lea.vmem [#allocation12], %s794
          %s797 = ssub.s32 16384, 16384
          %798 = vsyncadd %s792, %s797
          %s799 = smul.addr %s34, 256
          %s800 = smul.addr %s799, 64
          %s801 = scalar_lea.hbm %s9, %s800
          %s802 = sshll.u32 %s795, 4
          %s803 = int_to_ptr.vmem [resolvable:$true] %s802
          %808 = dma.hbm_to_vmem [thread:$0]  %s801, 16384, %s803, %s792, 512, 512, 32
        $region80: #{soh_transformer_forward.1} parent=59 // pred_fallthru
          _
        // Predicated region
        $region81: #{soh_transformer_forward.1} parent=59 // pred_check
          %p809 = pneg %p289
        $region82: #{soh_transformer_forward.1} parent=59 // pred_check_branch
          %811 = sbr.rel (%p809) target = $region84
        $region83: #{soh_transformer_forward.1} parent=59 // pred_region
          %s812 = sand.u32 %s34, 1
          %s813 = scalar_lea.sflag [#allocation4], %s812
          %s814 = sand.u32 %s279, 1
          %s815 = smul.addr %s814, 8
          %s816 = scalar_lea.vmem [#allocation13], %s815
          %s818 = ssub.s32 128, 128
          %819 = vsyncadd %s813, %s818
          %s820 = smul.addr %s34, 8
          %s821 = smul.addr %s820, 16
          %s822 = scalar_lea.hbm %s10, %s821
          %s824 = sshll.u32 %s816, 4
          %s825 = int_to_ptr.vmem [resolvable:$true] %s824
          %827 = dma.hbm_to_vmem [thread:$0]  %s822, 128, %s825, %s813
        $region84: #{soh_transformer_forward.1} parent=59 // pred_fallthru
          _
        // Predicated region
        $region85: #{soh_transformer_forward.1} parent=59 // pred_check
          %p828 = pneg %p315
        $region86: #{soh_transformer_forward.1} parent=59 // pred_check_branch
          %830 = sbr.rel (%p828) target = $region88
        $region87: #{soh_transformer_forward.1} parent=59 // pred_region
          %s831 = sand.u32 %s34, 1
          %s832 = scalar_lea.sflag [#allocation4], %s831
          %s833 = sand.u32 %s305, 1
          %s834 = smul.addr %s833, 1024
          %s835 = scalar_lea.vmem [#allocation14], %s834
          %s837 = ssub.s32 16384, 16384
          %838 = vsyncadd %s832, %s837
          %s839 = smul.addr %s34, 256
          %s840 = smul.addr %s839, 64
          %s841 = scalar_lea.hbm %s11, %s840
          %s842 = sshll.u32 %s835, 4
          %s843 = int_to_ptr.vmem [resolvable:$true] %s842
          %848 = dma.hbm_to_vmem [thread:$0]  %s841, 16384, %s843, %s832, 128, 128, 8
        $region88: #{soh_transformer_forward.1} parent=59 // pred_fallthru
          _
        // Predicated region
        $region89: #{soh_transformer_forward.1} parent=59 // pred_check
          %p849 = pneg %p341
        $region90: #{soh_transformer_forward.1} parent=59 // pred_check_branch
          %851 = sbr.rel (%p849) target = $region92
        $region91: #{soh_transformer_forward.1} parent=59 // pred_region
          %s852 = sand.u32 %s34, 1
          %s853 = scalar_lea.sflag [#allocation4], %s852
          %s854 = sand.u32 %s331, 1
          %s855 = smul.addr %s854, 2
          %s856 = scalar_lea.vmem [#allocation15], %s855
          %s858 = ssub.s32 32, 32
          %859 = vsyncadd %s853, %s858
          %s860 = smul.addr %s34, 2
          %s861 = smul.addr %s860, 16
          %s862 = scalar_lea.hbm %s12, %s861
          %s864 = sshll.u32 %s856, 4
          %s865 = int_to_ptr.vmem [resolvable:$true] %s864
          %867 = dma.hbm_to_vmem [thread:$0]  %s862, 32, %s865, %s853
        $region92: #{soh_transformer_forward.1} parent=59 // pred_fallthru
          _
        // Predicated region
        $region93: #{soh_transformer_forward.1} parent=59 // pred_check
          %p868 = pneg %p367
        $region94: #{soh_transformer_forward.1} parent=59 // pred_check_branch
          %870 = sbr.rel (%p868) target = $region96
        $region95: #{soh_transformer_forward.1} parent=59 // pred_region
          %s871 = sand.u32 %s34, 1
          %s872 = scalar_lea.sflag [#allocation4], %s871
          %s873 = sand.u32 %s357, 1
          %s874 = smul.addr %s873, 2
          %s875 = scalar_lea.vmem [#allocation16], %s874
          %s877 = ssub.s32 32, 32
          %878 = vsyncadd %s872, %s877
          %s879 = smul.addr %s34, 2
          %s880 = smul.addr %s879, 16
          %s881 = scalar_lea.hbm %s13, %s880
          %s883 = sshll.u32 %s875, 4
          %s884 = int_to_ptr.vmem [resolvable:$true] %s883
          %886 = dma.hbm_to_vmem [thread:$0]  %s881, 32, %s884, %s872
        $region96: #{soh_transformer_forward.1} parent=59 // pred_fallthru
          _
        // Predicated region
        $region97: #{soh_transformer_forward.1} parent=59 // pred_check
          %p887 = pneg %p393
        $region98: #{soh_transformer_forward.1} parent=59 // pred_check_branch
          %889 = sbr.rel (%p887) target = $region100
        $region99: #{soh_transformer_forward.1} parent=59 // pred_region
          %s890 = sand.u32 %s34, 1
          %s891 = scalar_lea.sflag [#allocation4], %s890
          %s892 = sand.u32 %s383, 1
          %s893 = smul.addr %s892, 2
          %s894 = scalar_lea.vmem [#allocation17], %s893
          %s896 = ssub.s32 32, 32
          %897 = vsyncadd %s891, %s896
          %s898 = smul.addr %s34, 2
          %s899 = smul.addr %s898, 16
          %s900 = scalar_lea.hbm %s14, %s899
          %s902 = sshll.u32 %s894, 4
          %s903 = int_to_ptr.vmem [resolvable:$true] %s902
          %905 = dma.hbm_to_vmem [thread:$0]  %s900, 32, %s903, %s891
        $region100: #{soh_transformer_forward.1} parent=59 // pred_fallthru
          _
        // Predicated region
        $region101: #{soh_transformer_forward.1} parent=59 // pred_check
          %p906 = pneg %p419
        $region102: #{soh_transformer_forward.1} parent=59 // pred_check_branch
          %908 = sbr.rel (%p906) target = $region104
        $region103: #{soh_transformer_forward.1} parent=59 // pred_region
          %s909 = sand.u32 %s34, 1
          %s910 = scalar_lea.sflag [#allocation4], %s909
          %s911 = sand.u32 %s409, 1
          %s912 = smul.addr %s911, 2
          %s913 = scalar_lea.vmem [#allocation18], %s912
          %s915 = ssub.s32 32, 32
          %916 = vsyncadd %s910, %s915
          %s917 = smul.addr %s34, 2
          %s918 = smul.addr %s917, 16
          %s919 = scalar_lea.hbm %s15, %s918
          %s921 = sshll.u32 %s913, 4
          %s922 = int_to_ptr.vmem [resolvable:$true] %s921
          %924 = dma.hbm_to_vmem [thread:$0]  %s919, 32, %s922, %s910
        $region104: #{soh_transformer_forward.1} parent=59 // pred_fallthru
          _
        // Predicated region
        $region105: #{soh_transformer_forward.1} parent=59 // pred_check
          %p925 = pneg %p445
        $region106: #{soh_transformer_forward.1} parent=59 // pred_check_branch
          %927 = sbr.rel (%p925) target = $region108
        $region107: #{soh_transformer_forward.1} parent=59 // pred_region
          %s928 = sand.u32 %s34, 1
          %s929 = scalar_lea.sflag [#allocation4], %s928
          %s930 = sand.u32 %s435, 1
          %s931 = smul.addr %s930, 2
          %s932 = scalar_lea.vmem [#allocation19], %s931
          %s934 = ssub.s32 32, 32
          %935 = vsyncadd %s929, %s934
          %s936 = smul.addr %s34, 2
          %s937 = smul.addr %s936, 16
          %s938 = scalar_lea.hbm %s16, %s937
          %s940 = sshll.u32 %s932, 4
          %s941 = int_to_ptr.vmem [resolvable:$true] %s940
          %943 = dma.hbm_to_vmem [thread:$0]  %s938, 32, %s941, %s929
        $region108: #{soh_transformer_forward.1} parent=59 // pred_fallthru
          _
      $region60: #{soh_transformer_forward.1} parent=5 // pred_fallthru
        _
      %p944 = scmp.le.s32.totalorder 1, %s34
      %p945 = scmp.lt.s32.totalorder %s34, 5
      %p946 = pnand %p944, %p945
      %p947 = pneg %p946
      // Predicated region
      $region109: #{soh_transformer_forward.1} parent=5 // pred_check
        _
      $region110: #{soh_transformer_forward.1} parent=5 // pred_check_branch
        %949 = sbr.rel (%p946) target = $region112
      $region111: #{soh_transformer_forward.1} parent=5 // pred_region
        %s950 = ssub.s32 %s34, 1
        // Predicated region
        $region113: #{soh_transformer_forward.1} parent=111 // pred_check
          %p951 = pneg %p118
        $region114: #{soh_transformer_forward.1} parent=111 // pred_check_branch
          %953 = sbr.rel (%p951) target = $region116
        $region115: #{soh_transformer_forward.1} parent=111 // pred_region
          %954 = dma.done [#allocation4], 256
        $region116: #{soh_transformer_forward.1} parent=111 // pred_fallthru
          _
        // Predicated region
        $region117: #{soh_transformer_forward.1} parent=111 // pred_check
          %p955 = pneg %p139
        $region118: #{soh_transformer_forward.1} parent=111 // pred_check_branch
          %957 = sbr.rel (%p955) target = $region120
        $region119: #{soh_transformer_forward.1} parent=111 // pred_region
          %958 = dma.done [#allocation7], 32
        $region120: #{soh_transformer_forward.1} parent=111 // pred_fallthru
          _
        %s959 = sand.u32 %s39, 1
        %s960 = scalar_lea.sflag [#allocation4], %s959
        %s961 = sand.u32 %s152, 1
        %s962 = smul.addr %s961, 768
        %s963 = scalar_lea.vmem [#allocation8], %s962
        // Predicated region
        $region121: #{soh_transformer_forward.1} parent=111 // pred_check
          %p964 = pneg %p165
        $region122: #{soh_transformer_forward.1} parent=111 // pred_check_branch
          %966 = sbr.rel (%p964) target = $region124
        $region123: #{soh_transformer_forward.1} parent=111 // pred_region
          %967 = dma.done %s960, 12288
        $region124: #{soh_transformer_forward.1} parent=111 // pred_fallthru
          _
        %s968 = sand.u32 %s39, 1
        %s969 = scalar_lea.sflag [#allocation4], %s968
        %s970 = sand.u32 %s178, 1
        %s971 = smul.addr %s970, 6
        %s972 = scalar_lea.vmem [#allocation9], %s971
        // Predicated region
        $region125: #{soh_transformer_forward.1} parent=111 // pred_check
          %p973 = pneg %p191
        $region126: #{soh_transformer_forward.1} parent=111 // pred_check_branch
          %975 = sbr.rel (%p973) target = $region128
        $region127: #{soh_transformer_forward.1} parent=111 // pred_region
          %976 = dma.done %s969, 96
        $region128: #{soh_transformer_forward.1} parent=111 // pred_fallthru
          _
        %s977 = sand.u32 %s39, 1
        %s978 = scalar_lea.sflag [#allocation4], %s977
        %s979 = sand.u32 %s204, 1
        %s980 = smul.addr %s979, 256
        %s981 = scalar_lea.vmem [#allocation10], %s980
        // Predicated region
        $region129: #{soh_transformer_forward.1} parent=111 // pred_check
          %p982 = pneg %p217
        $region130: #{soh_transformer_forward.1} parent=111 // pred_check_branch
          %984 = sbr.rel (%p982) target = $region132
        $region131: #{soh_transformer_forward.1} parent=111 // pred_region
          %985 = dma.done %s978, 4096
        $region132: #{soh_transformer_forward.1} parent=111 // pred_fallthru
          _
        %s986 = sand.u32 %s39, 1
        %s987 = scalar_lea.sflag [#allocation4], %s986
        %s988 = sand.u32 %s230, 1
        %s989 = smul.addr %s988, 2
        %s990 = scalar_lea.vmem [#allocation11], %s989
        // Predicated region
        $region133: #{soh_transformer_forward.1} parent=111 // pred_check
          %p991 = pneg %p243
        $region134: #{soh_transformer_forward.1} parent=111 // pred_check_branch
          %993 = sbr.rel (%p991) target = $region136
        $region135: #{soh_transformer_forward.1} parent=111 // pred_region
          %994 = dma.done %s987, 32
        $region136: #{soh_transformer_forward.1} parent=111 // pred_fallthru
          _
        %s995 = sand.u32 %s39, 1
        %s996 = scalar_lea.sflag [#allocation4], %s995
        %s997 = sand.u32 %s256, 1
        %s998 = smul.addr %s997, 1024
        %s999 = scalar_lea.vmem [#allocation12], %s998
        // Predicated region
        $region137: #{soh_transformer_forward.1} parent=111 // pred_check
          %p1000 = pneg %p269
        $region138: #{soh_transformer_forward.1} parent=111 // pred_check_branch
          %1002 = sbr.rel (%p1000) target = $region140
        $region139: #{soh_transformer_forward.1} parent=111 // pred_region
          %1003 = dma.done %s996, 16384
        $region140: #{soh_transformer_forward.1} parent=111 // pred_fallthru
          _
        %s1004 = sand.u32 %s39, 1
        %s1005 = scalar_lea.sflag [#allocation4], %s1004
        %s1006 = sand.u32 %s282, 1
        %s1007 = smul.addr %s1006, 8
        %s1008 = scalar_lea.vmem [#allocation13], %s1007
        // Predicated region
        $region141: #{soh_transformer_forward.1} parent=111 // pred_check
          %p1009 = pneg %p295
        $region142: #{soh_transformer_forward.1} parent=111 // pred_check_branch
          %1011 = sbr.rel (%p1009) target = $region144
        $region143: #{soh_transformer_forward.1} parent=111 // pred_region
          %1012 = dma.done %s1005, 128
        $region144: #{soh_transformer_forward.1} parent=111 // pred_fallthru
          _
        %s1013 = sand.u32 %s39, 1
        %s1014 = scalar_lea.sflag [#allocation4], %s1013
        %s1015 = sand.u32 %s308, 1
        %s1016 = smul.addr %s1015, 1024
        %s1017 = scalar_lea.vmem [#allocation14], %s1016
        // Predicated region
        $region145: #{soh_transformer_forward.1} parent=111 // pred_check
          %p1018 = pneg %p321
        $region146: #{soh_transformer_forward.1} parent=111 // pred_check_branch
          %1020 = sbr.rel (%p1018) target = $region148
        $region147: #{soh_transformer_forward.1} parent=111 // pred_region
          %1021 = dma.done %s1014, 16384
        $region148: #{soh_transformer_forward.1} parent=111 // pred_fallthru
          _
        %s1022 = sand.u32 %s39, 1
        %s1023 = scalar_lea.sflag [#allocation4], %s1022
        %s1024 = sand.u32 %s334, 1
        %s1025 = smul.addr %s1024, 2
        %s1026 = scalar_lea.vmem [#allocation15], %s1025
        // Predicated region
        $region149: #{soh_transformer_forward.1} parent=111 // pred_check
          %p1027 = pneg %p347
        $region150: #{soh_transformer_forward.1} parent=111 // pred_check_branch
          %1029 = sbr.rel (%p1027) target = $region152
        $region151: #{soh_transformer_forward.1} parent=111 // pred_region
          %1030 = dma.done %s1023, 32
        $region152: #{soh_transformer_forward.1} parent=111 // pred_fallthru
          _
        %s1031 = sand.u32 %s39, 1
        %s1032 = scalar_lea.sflag [#allocation4], %s1031
        %s1033 = sand.u32 %s360, 1
        %s1034 = smul.addr %s1033, 2
        %s1035 = scalar_lea.vmem [#allocation16], %s1034
        // Predicated region
        $region153: #{soh_transformer_forward.1} parent=111 // pred_check
          %p1036 = pneg %p373
        $region154: #{soh_transformer_forward.1} parent=111 // pred_check_branch
          %1038 = sbr.rel (%p1036) target = $region156
        $region155: #{soh_transformer_forward.1} parent=111 // pred_region
          %1039 = dma.done %s1032, 32
        $region156: #{soh_transformer_forward.1} parent=111 // pred_fallthru
          _
        %s1040 = sand.u32 %s39, 1
        %s1041 = scalar_lea.sflag [#allocation4], %s1040
        %s1042 = sand.u32 %s386, 1
        %s1043 = smul.addr %s1042, 2
        %s1044 = scalar_lea.vmem [#allocation17], %s1043
        // Predicated region
        $region157: #{soh_transformer_forward.1} parent=111 // pred_check
          %p1045 = pneg %p399
        $region158: #{soh_transformer_forward.1} parent=111 // pred_check_branch
          %1047 = sbr.rel (%p1045) target = $region160
        $region159: #{soh_transformer_forward.1} parent=111 // pred_region
          %1048 = dma.done %s1041, 32
        $region160: #{soh_transformer_forward.1} parent=111 // pred_fallthru
          _
        %s1049 = sand.u32 %s39, 1
        %s1050 = scalar_lea.sflag [#allocation4], %s1049
        %s1051 = sand.u32 %s412, 1
        %s1052 = smul.addr %s1051, 2
        %s1053 = scalar_lea.vmem [#allocation18], %s1052
        // Predicated region
        $region161: #{soh_transformer_forward.1} parent=111 // pred_check
          %p1054 = pneg %p425
        $region162: #{soh_transformer_forward.1} parent=111 // pred_check_branch
          %1056 = sbr.rel (%p1054) target = $region164
        $region163: #{soh_transformer_forward.1} parent=111 // pred_region
          %1057 = dma.done %s1050, 32
        $region164: #{soh_transformer_forward.1} parent=111 // pred_fallthru
          _
        %s1058 = sand.u32 %s39, 1
        %s1059 = scalar_lea.sflag [#allocation4], %s1058
        %s1060 = sand.u32 %s438, 1
        %s1061 = smul.addr %s1060, 2
        %s1062 = scalar_lea.vmem [#allocation19], %s1061
        // Predicated region
        $region165: #{soh_transformer_forward.1} parent=111 // pred_check
          %p1063 = pneg %p451
        $region166: #{soh_transformer_forward.1} parent=111 // pred_check_branch
          %1065 = sbr.rel (%p1063) target = $region168
        $region167: #{soh_transformer_forward.1} parent=111 // pred_region
          %1066 = dma.done %s1059, 32
        $region168: #{soh_transformer_forward.1} parent=111 // pred_fallthru
          _
        // Predicated region
        $region169: #{soh_transformer_forward.1} parent=111 // pred_check
          %p1067 = pneg %p472
        $region170: #{soh_transformer_forward.1} parent=111 // pred_check_branch
          %1069 = sbr.rel (%p1067) target = $region172
        $region171: #{soh_transformer_forward.1} parent=111 // pred_region
          %1070 = dma.done [#allocation7], 32
        $region172: #{soh_transformer_forward.1} parent=111 // pred_fallthru
          _
        // Predicated region
        $region173: #{soh_transformer_forward.1} parent=111 // pred_check
          %p1071 = pneg %p493
        $region174: #{soh_transformer_forward.1} parent=111 // pred_check_branch
          %1073 = sbr.rel (%p1071) target = $region176
        $region175: #{soh_transformer_forward.1} parent=111 // pred_region
          %1074 = dma.done [#allocation22], 32
        $region176: #{soh_transformer_forward.1} parent=111 // pred_fallthru
          _
        // Predicated region
        $region177: #{soh_transformer_forward.1} parent=111 // pred_check
          %p1075 = pneg %p514
        $region178: #{soh_transformer_forward.1} parent=111 // pred_check_branch
          %1077 = sbr.rel (%p1075) target = $region180
        $region179: #{soh_transformer_forward.1} parent=111 // pred_region
          %1078 = dma.done [#allocation22], 4096
        $region180: #{soh_transformer_forward.1} parent=111 // pred_fallthru
          _
        // Predicated region
        $region181: #{soh_transformer_forward.1} parent=111 // pred_check
          %p1079 = pneg %p535
        $region182: #{soh_transformer_forward.1} parent=111 // pred_check_branch
          %1081 = sbr.rel (%p1079) target = $region184
        $region183: #{soh_transformer_forward.1} parent=111 // pred_region
          %1082 = dma.done [#allocation25], 16
        $region184: #{soh_transformer_forward.1} parent=111 // pred_fallthru
          _
        // Predicated region
        $region185: #{soh_transformer_forward.1} parent=111 // pred_check
          %p1083 = pneg %p577
        $region186: #{soh_transformer_forward.1} parent=111 // pred_check_branch
          %1085 = sbr.rel (%p1083) target = $region188
        $region187: #{soh_transformer_forward.1} parent=111 // pred_region
          %1086 = dma.done [#allocation25], 16
        $region188: #{soh_transformer_forward.1} parent=111 // pred_fallthru
          _
        %p1087 = pneg %p55
        %p1088 = pneg %p52
        %p1089 = pneg %p76
        %p1090 = pneg %p73
        %p1091 = pneg %p97
        %p1092 = pneg %p94
        %p1093 = pneg %p118
        %p1094 = pneg %p115
        %p1095 = pneg %p139
        %p1096 = pneg %p136
        %s1097 = sand.u32 %s39, 1
        %s1098 = scalar_lea.sflag [#allocation4], %s1097
        %s1099 = sand.u32 %s152, 1
        %s1100 = smul.addr %s1099, 768
        %s1101 = scalar_lea.vmem [#allocation8], %s1100
        %p1102 = pneg %p165
        %p1103 = pneg %p162
        %s1104 = sand.u32 %s39, 1
        %s1105 = scalar_lea.sflag [#allocation4], %s1104
        %s1106 = sand.u32 %s178, 1
        %s1107 = smul.addr %s1106, 6
        %s1108 = scalar_lea.vmem [#allocation9], %s1107
        %p1109 = pneg %p191
        %p1110 = pneg %p188
        %s1111 = sand.u32 %s39, 1
        %s1112 = scalar_lea.sflag [#allocation4], %s1111
        %s1113 = sand.u32 %s204, 1
        %s1114 = smul.addr %s1113, 256
        %s1115 = scalar_lea.vmem [#allocation10], %s1114
        %p1116 = pneg %p217
        %p1117 = pneg %p214
        %s1118 = sand.u32 %s39, 1
        %s1119 = scalar_lea.sflag [#allocation4], %s1118
        %s1120 = sand.u32 %s230, 1
        %s1121 = smul.addr %s1120, 2
        %s1122 = scalar_lea.vmem [#allocation11], %s1121
        %p1123 = pneg %p243
        %p1124 = pneg %p240
        %s1125 = sand.u32 %s39, 1
        %s1126 = scalar_lea.sflag [#allocation4], %s1125
        %s1127 = sand.u32 %s256, 1
        %s1128 = smul.addr %s1127, 1024
        %s1129 = scalar_lea.vmem [#allocation12], %s1128
        %p1130 = pneg %p269
        %p1131 = pneg %p266
        %s1132 = sand.u32 %s39, 1
        %s1133 = scalar_lea.sflag [#allocation4], %s1132
        %s1134 = sand.u32 %s282, 1
        %s1135 = smul.addr %s1134, 8
        %s1136 = scalar_lea.vmem [#allocation13], %s1135
        %p1137 = pneg %p295
        %p1138 = pneg %p292
        %s1139 = sand.u32 %s39, 1
        %s1140 = scalar_lea.sflag [#allocation4], %s1139
        %s1141 = sand.u32 %s308, 1
        %s1142 = smul.addr %s1141, 1024
        %s1143 = scalar_lea.vmem [#allocation14], %s1142
        %p1144 = pneg %p321
        %p1145 = pneg %p318
        %s1146 = sand.u32 %s39, 1
        %s1147 = scalar_lea.sflag [#allocation4], %s1146
        %s1148 = sand.u32 %s334, 1
        %s1149 = smul.addr %s1148, 2
        %s1150 = scalar_lea.vmem [#allocation15], %s1149
        %p1151 = pneg %p347
        %p1152 = pneg %p344
        %s1153 = sand.u32 %s39, 1
        %s1154 = scalar_lea.sflag [#allocation4], %s1153
        %s1155 = sand.u32 %s360, 1
        %s1156 = smul.addr %s1155, 2
        %s1157 = scalar_lea.vmem [#allocation16], %s1156
        %p1158 = pneg %p373
        %p1159 = pneg %p370
        %s1160 = sand.u32 %s39, 1
        %s1161 = scalar_lea.sflag [#allocation4], %s1160
        %s1162 = sand.u32 %s386, 1
        %s1163 = smul.addr %s1162, 2
        %s1164 = scalar_lea.vmem [#allocation17], %s1163
        %p1165 = pneg %p399
        %p1166 = pneg %p396
        %s1167 = sand.u32 %s39, 1
        %s1168 = scalar_lea.sflag [#allocation4], %s1167
        %s1169 = sand.u32 %s412, 1
        %s1170 = smul.addr %s1169, 2
        %s1171 = scalar_lea.vmem [#allocation18], %s1170
        %p1172 = pneg %p425
        %p1173 = pneg %p422
        %s1174 = sand.u32 %s39, 1
        %s1175 = scalar_lea.sflag [#allocation4], %s1174
        %s1176 = sand.u32 %s438, 1
        %s1177 = smul.addr %s1176, 2
        %s1178 = scalar_lea.vmem [#allocation19], %s1177
        %p1179 = pneg %p451
        %p1180 = pneg %p448
        %p1181 = pneg %p472
        %p1182 = pneg %p469
        %p1183 = pneg %p493
        %p1184 = pneg %p490
        %p1185 = pneg %p514
        %p1186 = pneg %p511
        %p1187 = pneg %p535
        %p1188 = pneg %p532
        %p1189 = pneg %p556
        %p1190 = pneg %p553
        %p1191 = pneg %p577
        %p1192 = pneg %p574
        %p1193 = pneg %p598
        %p1194 = pneg %p595
        %p1195 = scmp.eq.s32.totalorder %s39, 0
        // Predicated region
        $region189: #{soh_transformer_forward.1} parent=111 // pred_check
          %p1196 = pneg %p1195
        $region190: #{soh_transformer_forward.1} parent=111 // pred_check_branch
          %1198 = sbr.rel (%p1196) target = $region192
        $region191: #{soh_transformer_forward.1} parent=111 // pred_region
          %v1199 = vld [vmem:[%s0] sm:$0xff]
          %v1200 = vld [vmem:[%s0 + $0x8] sm:$0xff]
          %v1201 = vld [vmem:[#allocation3] sm:$0x3f]
          %v1202 = vld [vmem:[#allocation3 + $0x8] sm:$0x3f]
          %v1203 = vld [vmem:[#allocation6] sm:$0x3]
          %v1205 = vlaneseq
          %v1206 = vshrl.u32 %v1205, 7
          %v1207 = vsub.s32 0, %v1206
          %v1208 = vrot.slane %v1203, %v1207
          %v1209 = vlaneseq
          %v1210 = vshrl.u32 %v1209, 7
          %v1211 = vsub.s32 1, %v1210
          %v1212 = vrot.slane %v1203, %v1211
          %vm1215 = vcmask 48128
          %v1217 = vsel %vm1215, %v1199, 0
          %v1220 = vsel %vm1215, %v1200, 0
          %vm1222 = vcmask 1045504
          %v1224 = vsel %vm1222, %v1201, 0
          %v1227 = vsel %vm1222, %v1202, 0
          %1229 = vmatprep.subr.mxu0 0.0
          %1230 = vmatpush1.msra.mxu0 0.0
          %1231 = vmatprep.subr.mxu0 0.0
          %1232 = vmatpush1.msra.mxu0 0.0
          %1233 = vmatprep.subr.mxu0 0.0
          %1234 = vmatpush1.msra.mxu0 0.0
          %1235 = vmatprep.subr.mxu0 0.0
          %1236 = vmatpush1.msra.mxu0 0.0
          %1237 = vmatprep.subr.mxu0 0.0
          %1238 = vmatpush1.msra.mxu0 0.0
          %1239 = vmatprep.subr.mxu0 0.0
          %1240 = vmatpush1.msra.mxu0 0.0
          %1241 = vmatprep.subr.mxu0 0.0
          %1242 = vmatpush1.msra.mxu0 0.0
          %1243 = vmatprep.subr.mxu0 0.0
          %1244 = vmatpush1.msra.mxu0 0.0
          %1245 = vmatprep.subr.mxu0 0.0
          %1246 = vmatpush1.msra.mxu0 0.0
          %1247 = vmatprep.subr.mxu0 0.0
          %1248 = vmatpush1.msra.mxu0 0.0
          %1249 = vmatprep.subr.mxu0 0.0
          %1250 = vmatpush1.msra.mxu0 0.0
          %1251 = vmatprep.subr.mxu0 0.0
          %1252 = vmatpush1.msra.mxu0 0.0
          %1253 = vmatprep.subr.mxu0 0.0
          %1254 = vmatpush1.msra.mxu0 0.0
          %1255 = vmatprep.subr.mxu0 0.0
          %1256 = vmatpush1.msra.mxu0 0.0
          %1257 = vmatprep.subr.mxu0 0.0
          %1258 = vmatpush1.msra.mxu0 0.0
          %1259 = vmatprep.subr.mxu0 %v1227
          %1260 = vmatpush1.msra.mxu0 %v1224
          %1261 = vmatprep.subr.mxu0 0.0
          %1262 = vmatpush2.msra.mxu0 0.0
          %1263 = vmatprep.subr.mxu0 0.0
          %1264 = vmatpush2.msra.mxu0 0.0
          %1265 = vmatprep.subr.mxu0 0.0
          %1266 = vmatpush2.msra.mxu0 0.0
          %1267 = vmatprep.subr.mxu0 0.0
          %1268 = vmatpush2.msra.mxu0 0.0
          %1269 = vmatprep.subr.mxu0 0.0
          %1270 = vmatpush2.msra.mxu0 0.0
          %1271 = vmatprep.subr.mxu0 0.0
          %1272 = vmatpush2.msra.mxu0 0.0
          %1273 = vmatprep.subr.mxu0 0.0
          %1274 = vmatpush2.msra.mxu0 0.0
          %1275 = vmatprep.subr.mxu0 0.0
          %1276 = vmatpush2.msra.mxu0 0.0
          %1277 = vmatprep.subr.mxu0 0.0
          %1278 = vmatpush2.msra.mxu0 0.0
          %1279 = vmatprep.subr.mxu0 0.0
          %1280 = vmatpush2.msra.mxu0 0.0
          %1281 = vmatprep.subr.mxu0 0.0
          %1282 = vmatpush2.msra.mxu0 0.0
          %1283 = vmatprep.subr.mxu0 0.0
          %1284 = vmatpush2.msra.mxu0 0.0
          %1285 = vmatprep.subr.mxu0 0.0
          %1286 = vmatpush2.msra.mxu0 0.0
          %1287 = vmatprep.subr.mxu0 0.0
          %1288 = vmatpush2.msra.mxu0 0.0
          %1289 = vmatprep.subr.mxu0 0.0
          %1290 = vmatpush2.msra.mxu0 0.0
          %1291 = vmatprep.subr.mxu0 0.0
          %1292 = vmatpush2.msra.mxu0 0.0
          %1293 = vmatprep.mubr.f32.mxu0 0.0
          %1294 = vmatmul.mubr.f32.gmra.mxu0 %v1217
          %v1295 = vpop.f32.mrf.mxu0
          %v1296 = vadd.f32 %v1208, %v1295
          %v1297 = vpop.f32.mrf.mxu0
          %v1298 = vadd.f32 %v1212, %v1297
          %1299 = vmatprep.mubr.f32.mxu0 0.0
          %1300 = vmatmul.mubr.f32.gmra.mxu0 %v1220
          %v1301 = vpop.f32.mrf.mxu0
          %v1302 = vadd.f32 %v1208, %v1301
          %v1303 = vpop.f32.mrf.mxu0
          %v1304 = vadd.f32 %v1212, %v1303
          %1305 = vdwg.mxu0
          %1306 = vst [vmem:[#allocation2] sm:$0xff] %v1296
          %1307 = vst [vmem:[#allocation2 + $0x8] sm:$0xff] %v1298
          %1308 = vst [vmem:[#allocation2 + $0x10] sm:$0xff] %v1302
          %1309 = vst [vmem:[#allocation2 + $0x18] sm:$0xff] %v1304
        $region192: #{soh_transformer_forward.1} parent=111 // pred_fallthru
          _
        %v1310 = vld [vmem:[#allocation2] sm:$0xff]
        %v1311 = vld [vmem:[#allocation2 + $0x8] sm:$0xff]
        %v1312 = vld [vmem:[#allocation2 + $0x10] sm:$0xff]
        %v1313 = vld [vmem:[#allocation2 + $0x18] sm:$0xff]
        %v1314 = vpack.c.bf16 %v1312, %v1310
        %v1315 = vpack.c.bf16 %v1313, %v1311
        %v1316 = vld [vmem:[%s963] sm:$0xff]
        %v1317 = vld [vmem:[%s963 + $0x8] sm:$0xff]
        %v1318 = vld [vmem:[%s963 + $0x10] sm:$0xff]
        %v1319 = vld [vmem:[%s963 + $0x18] sm:$0xff]
        %v1320 = vld [vmem:[%s963 + $0x20] sm:$0xff]
        %v1321 = vld [vmem:[%s963 + $0x28] sm:$0xff]
        %v1322 = vld [vmem:[%s963 + $0x30] sm:$0xff]
        %v1323 = vld [vmem:[%s963 + $0x38] sm:$0xff]
        %v1324 = vld [vmem:[%s963 + $0x40] sm:$0xff]
        %v1325 = vld [vmem:[%s963 + $0x48] sm:$0xff]
        %v1326 = vld [vmem:[%s963 + $0x50] sm:$0xff]
        %v1327 = vld [vmem:[%s963 + $0x58] sm:$0xff]
        %v1328 = vld [vmem:[%s963 + $0x60] sm:$0xff]
        %v1329 = vld [vmem:[%s963 + $0x68] sm:$0xff]
        %v1330 = vld [vmem:[%s963 + $0x70] sm:$0xff]
        %v1331 = vld [vmem:[%s963 + $0x78] sm:$0xff]
        %v1332 = vld [vmem:[%s963 + $0x80] sm:$0xff]
        %v1333 = vld [vmem:[%s963 + $0x88] sm:$0xff]
        %v1334 = vld [vmem:[%s963 + $0x90] sm:$0xff]
        %v1335 = vld [vmem:[%s963 + $0x98] sm:$0xff]
        %v1336 = vld [vmem:[%s963 + $0xa0] sm:$0xff]
        %v1337 = vld [vmem:[%s963 + $0xa8] sm:$0xff]
        %v1338 = vld [vmem:[%s963 + $0xb0] sm:$0xff]
        %v1339 = vld [vmem:[%s963 + $0xb8] sm:$0xff]
        %v1340 = vld [vmem:[%s963 + $0xc0] sm:$0xff]
        %v1341 = vld [vmem:[%s963 + $0xc8] sm:$0xff]
        %v1342 = vld [vmem:[%s963 + $0xd0] sm:$0xff]
        %v1343 = vld [vmem:[%s963 + $0xd8] sm:$0xff]
        %v1344 = vld [vmem:[%s963 + $0xe0] sm:$0xff]
        %v1345 = vld [vmem:[%s963 + $0xe8] sm:$0xff]
        %v1346 = vld [vmem:[%s963 + $0xf0] sm:$0xff]
        %v1347 = vld [vmem:[%s963 + $0xf8] sm:$0xff]
        %v1348 = vld [vmem:[%s963 + $0x100] sm:$0xff]
        %v1349 = vld [vmem:[%s963 + $0x108] sm:$0xff]
        %v1350 = vld [vmem:[%s963 + $0x110] sm:$0xff]
        %v1351 = vld [vmem:[%s963 + $0x118] sm:$0xff]
        %v1352 = vld [vmem:[%s963 + $0x120] sm:$0xff]
        %v1353 = vld [vmem:[%s963 + $0x128] sm:$0xff]
        %v1354 = vld [vmem:[%s963 + $0x130] sm:$0xff]
        %v1355 = vld [vmem:[%s963 + $0x138] sm:$0xff]
        %v1356 = vld [vmem:[%s963 + $0x140] sm:$0xff]
        %v1357 = vld [vmem:[%s963 + $0x148] sm:$0xff]
        %v1358 = vld [vmem:[%s963 + $0x150] sm:$0xff]
        %v1359 = vld [vmem:[%s963 + $0x158] sm:$0xff]
        %v1360 = vld [vmem:[%s963 + $0x160] sm:$0xff]
        %v1361 = vld [vmem:[%s963 + $0x168] sm:$0xff]
        %v1362 = vld [vmem:[%s963 + $0x170] sm:$0xff]
        %v1363 = vld [vmem:[%s963 + $0x178] sm:$0xff]
        %v1364 = vld [vmem:[%s963 + $0x180] sm:$0xff]
        %v1365 = vld [vmem:[%s963 + $0x188] sm:$0xff]
        %v1366 = vld [vmem:[%s963 + $0x190] sm:$0xff]
        %v1367 = vld [vmem:[%s963 + $0x198] sm:$0xff]
        %v1368 = vld [vmem:[%s963 + $0x1a0] sm:$0xff]
        %v1369 = vld [vmem:[%s963 + $0x1a8] sm:$0xff]
        %v1370 = vld [vmem:[%s963 + $0x1b0] sm:$0xff]
        %v1371 = vld [vmem:[%s963 + $0x1b8] sm:$0xff]
        %v1372 = vld [vmem:[%s963 + $0x1c0] sm:$0xff]
        %v1373 = vld [vmem:[%s963 + $0x1c8] sm:$0xff]
        %v1374 = vld [vmem:[%s963 + $0x1d0] sm:$0xff]
        %v1375 = vld [vmem:[%s963 + $0x1d8] sm:$0xff]
        %v1376 = vld [vmem:[%s963 + $0x1e0] sm:$0xff]
        %v1377 = vld [vmem:[%s963 + $0x1e8] sm:$0xff]
        %v1378 = vld [vmem:[%s963 + $0x1f0] sm:$0xff]
        %v1379 = vld [vmem:[%s963 + $0x1f8] sm:$0xff]
        %v1380 = vld [vmem:[%s963 + $0x200] sm:$0xff]
        %v1381 = vld [vmem:[%s963 + $0x208] sm:$0xff]
        %v1382 = vld [vmem:[%s963 + $0x210] sm:$0xff]
        %v1383 = vld [vmem:[%s963 + $0x218] sm:$0xff]
        %v1384 = vld [vmem:[%s963 + $0x220] sm:$0xff]
        %v1385 = vld [vmem:[%s963 + $0x228] sm:$0xff]
        %v1386 = vld [vmem:[%s963 + $0x230] sm:$0xff]
        %v1387 = vld [vmem:[%s963 + $0x238] sm:$0xff]
        %v1388 = vld [vmem:[%s963 + $0x240] sm:$0xff]
        %v1389 = vld [vmem:[%s963 + $0x248] sm:$0xff]
        %v1390 = vld [vmem:[%s963 + $0x250] sm:$0xff]
        %v1391 = vld [vmem:[%s963 + $0x258] sm:$0xff]
        %v1392 = vld [vmem:[%s963 + $0x260] sm:$0xff]
        %v1393 = vld [vmem:[%s963 + $0x268] sm:$0xff]
        %v1394 = vld [vmem:[%s963 + $0x270] sm:$0xff]
        %v1395 = vld [vmem:[%s963 + $0x278] sm:$0xff]
        %v1396 = vld [vmem:[%s963 + $0x280] sm:$0xff]
        %v1397 = vld [vmem:[%s963 + $0x288] sm:$0xff]
        %v1398 = vld [vmem:[%s963 + $0x290] sm:$0xff]
        %v1399 = vld [vmem:[%s963 + $0x298] sm:$0xff]
        %v1400 = vld [vmem:[%s963 + $0x2a0] sm:$0xff]
        %v1401 = vld [vmem:[%s963 + $0x2a8] sm:$0xff]
        %v1402 = vld [vmem:[%s963 + $0x2b0] sm:$0xff]
        %v1403 = vld [vmem:[%s963 + $0x2b8] sm:$0xff]
        %v1404 = vld [vmem:[%s963 + $0x2c0] sm:$0xff]
        %v1405 = vld [vmem:[%s963 + $0x2c8] sm:$0xff]
        %v1406 = vld [vmem:[%s963 + $0x2d0] sm:$0xff]
        %v1407 = vld [vmem:[%s963 + $0x2d8] sm:$0xff]
        %v1408 = vld [vmem:[%s963 + $0x2e0] sm:$0xff]
        %v1409 = vld [vmem:[%s963 + $0x2e8] sm:$0xff]
        %v1410 = vld [vmem:[%s963 + $0x2f0] sm:$0xff]
        %v1411 = vld [vmem:[%s963 + $0x2f8] sm:$0xff]
        %v1412 = vld [vmem:[%s972] sm:$0x3f]
        %v1414 = vlaneseq
        %v1415 = vshrl.u32 %v1414, 7
        %v1416 = vsub.s32 0, %v1415
        %v1417 = vrot.slane %v1412, %v1416
        %v1418 = vlaneseq
        %v1419 = vshrl.u32 %v1418, 7
        %v1420 = vsub.s32 1, %v1419
        %v1421 = vrot.slane %v1412, %v1420
        %v1422 = vlaneseq
        %v1423 = vshrl.u32 %v1422, 7
        %v1424 = vsub.s32 2, %v1423
        %v1425 = vrot.slane %v1412, %v1424
        %v1426 = vlaneseq
        %v1427 = vshrl.u32 %v1426, 7
        %v1428 = vsub.s32 3, %v1427
        %v1429 = vrot.slane %v1412, %v1428
        %v1430 = vlaneseq
        %v1431 = vshrl.u32 %v1430, 7
        %v1432 = vsub.s32 4, %v1431
        %v1433 = vrot.slane %v1412, %v1432
        %v1434 = vlaneseq
        %v1435 = vshrl.u32 %v1434, 7
        %v1436 = vsub.s32 5, %v1435
        %v1437 = vrot.slane %v1412, %v1436
        %v1540 = vunpack.c.l.b16 %v1316
        %v1541 = vunpack.c.h.b16 %v1316
        %v1542 = vunpack.c.l.b16 %v1317
        %v1543 = vunpack.c.h.b16 %v1317
        %v1544 = vunpack.c.l.b16 %v1318
        %v1545 = vunpack.c.h.b16 %v1318
        %v1546 = vunpack.c.l.b16 %v1319
        %v1547 = vunpack.c.h.b16 %v1319
        %v1548 = vunpack.c.l.b16 %v1320
        %v1549 = vunpack.c.h.b16 %v1320
        %v1550 = vunpack.c.l.b16 %v1321
        %v1551 = vunpack.c.h.b16 %v1321
        %v1552 = vunpack.c.l.b16 %v1322
        %v1553 = vunpack.c.h.b16 %v1322
        %v1554 = vunpack.c.l.b16 %v1323
        %v1555 = vunpack.c.h.b16 %v1323
        %v1556 = vunpack.c.l.b16 %v1324
        %v1557 = vunpack.c.h.b16 %v1324
        %v1558 = vunpack.c.l.b16 %v1325
        %v1559 = vunpack.c.h.b16 %v1325
        %v1560 = vunpack.c.l.b16 %v1326
        %v1561 = vunpack.c.h.b16 %v1326
        %v1562 = vunpack.c.l.b16 %v1327
        %v1563 = vunpack.c.h.b16 %v1327
        %v1564 = vunpack.c.l.b16 %v1328
        %v1565 = vunpack.c.h.b16 %v1328
        %v1566 = vunpack.c.l.b16 %v1329
        %v1567 = vunpack.c.h.b16 %v1329
        %v1568 = vunpack.c.l.b16 %v1330
        %v1569 = vunpack.c.h.b16 %v1330
        %v1570 = vunpack.c.l.b16 %v1331
        %v1571 = vunpack.c.h.b16 %v1331
        %v1572 = vunpack.c.l.b16 %v1332
        %v1573 = vunpack.c.h.b16 %v1332
        %v1574 = vunpack.c.l.b16 %v1333
        %v1575 = vunpack.c.h.b16 %v1333
        %v1576 = vunpack.c.l.b16 %v1334
        %v1577 = vunpack.c.h.b16 %v1334
        %v1578 = vunpack.c.l.b16 %v1335
        %v1579 = vunpack.c.h.b16 %v1335
        %v1580 = vunpack.c.l.b16 %v1336
        %v1581 = vunpack.c.h.b16 %v1336
        %v1582 = vunpack.c.l.b16 %v1337
        %v1583 = vunpack.c.h.b16 %v1337
        %v1584 = vunpack.c.l.b16 %v1338
        %v1585 = vunpack.c.h.b16 %v1338
        %v1586 = vunpack.c.l.b16 %v1339
        %v1587 = vunpack.c.h.b16 %v1339
        %v1588 = vunpack.c.l.b16 %v1340
        %v1589 = vunpack.c.h.b16 %v1340
        %v1590 = vunpack.c.l.b16 %v1341
        %v1591 = vunpack.c.h.b16 %v1341
        %v1592 = vunpack.c.l.b16 %v1342
        %v1593 = vunpack.c.h.b16 %v1342
        %v1594 = vunpack.c.l.b16 %v1343
        %v1595 = vunpack.c.h.b16 %v1343
        %v1596 = vunpack.c.l.b16 %v1344
        %v1597 = vunpack.c.h.b16 %v1344
        %v1598 = vunpack.c.l.b16 %v1345
        %v1599 = vunpack.c.h.b16 %v1345
        %v1600 = vunpack.c.l.b16 %v1346
        %v1601 = vunpack.c.h.b16 %v1346
        %v1602 = vunpack.c.l.b16 %v1347
        %v1603 = vunpack.c.h.b16 %v1347
        %v1604 = vunpack.c.l.b16 %v1348
        %v1605 = vunpack.c.h.b16 %v1348
        %v1606 = vunpack.c.l.b16 %v1349
        %v1607 = vunpack.c.h.b16 %v1349
        %v1608 = vunpack.c.l.b16 %v1350
        %v1609 = vunpack.c.h.b16 %v1350
        %v1610 = vunpack.c.l.b16 %v1351
        %v1611 = vunpack.c.h.b16 %v1351
        %v1612 = vunpack.c.l.b16 %v1352
        %v1613 = vunpack.c.h.b16 %v1352
        %v1614 = vunpack.c.l.b16 %v1353
        %v1615 = vunpack.c.h.b16 %v1353
        %v1616 = vunpack.c.l.b16 %v1354
        %v1617 = vunpack.c.h.b16 %v1354
        %v1618 = vunpack.c.l.b16 %v1355
        %v1619 = vunpack.c.h.b16 %v1355
        %v1620 = vunpack.c.l.b16 %v1356
        %v1621 = vunpack.c.h.b16 %v1356
        %v1622 = vunpack.c.l.b16 %v1357
        %v1623 = vunpack.c.h.b16 %v1357
        %v1624 = vunpack.c.l.b16 %v1358
        %v1625 = vunpack.c.h.b16 %v1358
        %v1626 = vunpack.c.l.b16 %v1359
        %v1627 = vunpack.c.h.b16 %v1359
        %v1628 = vunpack.c.l.b16 %v1360
        %v1629 = vunpack.c.h.b16 %v1360
        %v1630 = vunpack.c.l.b16 %v1361
        %v1631 = vunpack.c.h.b16 %v1361
        %v1632 = vunpack.c.l.b16 %v1362
        %v1633 = vunpack.c.h.b16 %v1362
        %v1634 = vunpack.c.l.b16 %v1363
        %v1635 = vunpack.c.h.b16 %v1363
        %v1636 = vunpack.c.l.b16 %v1364
        %v1637 = vunpack.c.h.b16 %v1364
        %v1638 = vunpack.c.l.b16 %v1365
        %v1639 = vunpack.c.h.b16 %v1365
        %v1640 = vunpack.c.l.b16 %v1366
        %v1641 = vunpack.c.h.b16 %v1366
        %v1642 = vunpack.c.l.b16 %v1367
        %v1643 = vunpack.c.h.b16 %v1367
        %v1644 = vunpack.c.l.b16 %v1368
        %v1645 = vunpack.c.h.b16 %v1368
        %v1646 = vunpack.c.l.b16 %v1369
        %v1647 = vunpack.c.h.b16 %v1369
        %v1648 = vunpack.c.l.b16 %v1370
        %v1649 = vunpack.c.h.b16 %v1370
        %v1650 = vunpack.c.l.b16 %v1371
        %v1651 = vunpack.c.h.b16 %v1371
        %v1652 = vunpack.c.l.b16 %v1372
        %v1653 = vunpack.c.h.b16 %v1372
        %v1654 = vunpack.c.l.b16 %v1373
        %v1655 = vunpack.c.h.b16 %v1373
        %v1656 = vunpack.c.l.b16 %v1374
        %v1657 = vunpack.c.h.b16 %v1374
        %v1658 = vunpack.c.l.b16 %v1375
        %v1659 = vunpack.c.h.b16 %v1375
        %v1660 = vunpack.c.l.b16 %v1376
        %v1661 = vunpack.c.h.b16 %v1376
        %v1662 = vunpack.c.l.b16 %v1377
        %v1663 = vunpack.c.h.b16 %v1377
        %v1664 = vunpack.c.l.b16 %v1378
        %v1665 = vunpack.c.h.b16 %v1378
        %v1666 = vunpack.c.l.b16 %v1379
        %v1667 = vunpack.c.h.b16 %v1379
        %v1668 = vunpack.c.l.b16 %v1380
        %v1669 = vunpack.c.h.b16 %v1380
        %v1670 = vunpack.c.l.b16 %v1381
        %v1671 = vunpack.c.h.b16 %v1381
        %v1672 = vunpack.c.l.b16 %v1382
        %v1673 = vunpack.c.h.b16 %v1382
        %v1674 = vunpack.c.l.b16 %v1383
        %v1675 = vunpack.c.h.b16 %v1383
        %v1676 = vunpack.c.l.b16 %v1384
        %v1677 = vunpack.c.h.b16 %v1384
        %v1678 = vunpack.c.l.b16 %v1385
        %v1679 = vunpack.c.h.b16 %v1385
        %v1680 = vunpack.c.l.b16 %v1386
        %v1681 = vunpack.c.h.b16 %v1386
        %v1682 = vunpack.c.l.b16 %v1387
        %v1683 = vunpack.c.h.b16 %v1387
        %v1684 = vunpack.c.l.b16 %v1388
        %v1685 = vunpack.c.h.b16 %v1388
        %v1686 = vunpack.c.l.b16 %v1389
        %v1687 = vunpack.c.h.b16 %v1389
        %v1688 = vunpack.c.l.b16 %v1390
        %v1689 = vunpack.c.h.b16 %v1390
        %v1690 = vunpack.c.l.b16 %v1391
        %v1691 = vunpack.c.h.b16 %v1391
        %v1692 = vunpack.c.l.b16 %v1392
        %v1693 = vunpack.c.h.b16 %v1392
        %v1694 = vunpack.c.l.b16 %v1393
        %v1695 = vunpack.c.h.b16 %v1393
        %v1696 = vunpack.c.l.b16 %v1394
        %v1697 = vunpack.c.h.b16 %v1394
        %v1698 = vunpack.c.l.b16 %v1395
        %v1699 = vunpack.c.h.b16 %v1395
        %v1700 = vunpack.c.l.b16 %v1396
        %v1701 = vunpack.c.h.b16 %v1396
        %v1702 = vunpack.c.l.b16 %v1397
        %v1703 = vunpack.c.h.b16 %v1397
        %v1704 = vunpack.c.l.b16 %v1398
        %v1705 = vunpack.c.h.b16 %v1398
        %v1706 = vunpack.c.l.b16 %v1399
        %v1707 = vunpack.c.h.b16 %v1399
        %v1708 = vunpack.c.l.b16 %v1400
        %v1709 = vunpack.c.h.b16 %v1400
        %v1710 = vunpack.c.l.b16 %v1401
        %v1711 = vunpack.c.h.b16 %v1401
        %v1712 = vunpack.c.l.b16 %v1402
        %v1713 = vunpack.c.h.b16 %v1402
        %v1714 = vunpack.c.l.b16 %v1403
        %v1715 = vunpack.c.h.b16 %v1403
        %v1716 = vunpack.c.l.b16 %v1404
        %v1717 = vunpack.c.h.b16 %v1404
        %v1718 = vunpack.c.l.b16 %v1405
        %v1719 = vunpack.c.h.b16 %v1405
        %v1720 = vunpack.c.l.b16 %v1406
        %v1721 = vunpack.c.h.b16 %v1406
        %v1722 = vunpack.c.l.b16 %v1407
        %v1723 = vunpack.c.h.b16 %v1407
        %v1724 = vunpack.c.l.b16 %v1408
        %v1725 = vunpack.c.h.b16 %v1408
        %v1726 = vunpack.c.l.b16 %v1409
        %v1727 = vunpack.c.h.b16 %v1409
        %v1728 = vunpack.c.l.b16 %v1410
        %v1729 = vunpack.c.h.b16 %v1410
        %v1730 = vunpack.c.l.b16 %v1411
        %v1731 = vunpack.c.h.b16 %v1411
        %v1732 = vpack.c.b16 %v1546, %v1540
        %v1733 = vpack.c.b16 %v1547, %v1541
        %v1734 = vpack.c.b16 %v1548, %v1542
        %v1735 = vpack.c.b16 %v1549, %v1543
        %v1736 = vpack.c.b16 %v1550, %v1544
        %v1737 = vpack.c.b16 %v1551, %v1545
        %v1738 = vpack.c.b16 %v1558, %v1552
        %v1739 = vpack.c.b16 %v1559, %v1553
        %v1740 = vpack.c.b16 %v1560, %v1554
        %v1741 = vpack.c.b16 %v1561, %v1555
        %v1742 = vpack.c.b16 %v1562, %v1556
        %v1743 = vpack.c.b16 %v1563, %v1557
        %v1744 = vpack.c.b16 %v1570, %v1564
        %v1745 = vpack.c.b16 %v1571, %v1565
        %v1746 = vpack.c.b16 %v1572, %v1566
        %v1747 = vpack.c.b16 %v1573, %v1567
        %v1748 = vpack.c.b16 %v1574, %v1568
        %v1749 = vpack.c.b16 %v1575, %v1569
        %v1750 = vpack.c.b16 %v1582, %v1576
        %v1751 = vpack.c.b16 %v1583, %v1577
        %v1752 = vpack.c.b16 %v1584, %v1578
        %v1753 = vpack.c.b16 %v1585, %v1579
        %v1754 = vpack.c.b16 %v1586, %v1580
        %v1755 = vpack.c.b16 %v1587, %v1581
        %v1756 = vpack.c.b16 %v1594, %v1588
        %v1757 = vpack.c.b16 %v1595, %v1589
        %v1758 = vpack.c.b16 %v1596, %v1590
        %v1759 = vpack.c.b16 %v1597, %v1591
        %v1760 = vpack.c.b16 %v1598, %v1592
        %v1761 = vpack.c.b16 %v1599, %v1593
        %v1762 = vpack.c.b16 %v1606, %v1600
        %v1763 = vpack.c.b16 %v1607, %v1601
        %v1764 = vpack.c.b16 %v1608, %v1602
        %v1765 = vpack.c.b16 %v1609, %v1603
        %v1766 = vpack.c.b16 %v1610, %v1604
        %v1767 = vpack.c.b16 %v1611, %v1605
        %v1768 = vpack.c.b16 %v1618, %v1612
        %v1769 = vpack.c.b16 %v1619, %v1613
        %v1770 = vpack.c.b16 %v1620, %v1614
        %v1771 = vpack.c.b16 %v1621, %v1615
        %v1772 = vpack.c.b16 %v1622, %v1616
        %v1773 = vpack.c.b16 %v1623, %v1617
        %v1774 = vpack.c.b16 %v1630, %v1624
        %v1775 = vpack.c.b16 %v1631, %v1625
        %v1776 = vpack.c.b16 %v1632, %v1626
        %v1777 = vpack.c.b16 %v1633, %v1627
        %v1778 = vpack.c.b16 %v1634, %v1628
        %v1779 = vpack.c.b16 %v1635, %v1629
        %v1780 = vpack.c.b16 %v1642, %v1636
        %v1781 = vpack.c.b16 %v1643, %v1637
        %v1782 = vpack.c.b16 %v1644, %v1638
        %v1783 = vpack.c.b16 %v1645, %v1639
        %v1784 = vpack.c.b16 %v1646, %v1640
        %v1785 = vpack.c.b16 %v1647, %v1641
        %v1786 = vpack.c.b16 %v1654, %v1648
        %v1787 = vpack.c.b16 %v1655, %v1649
        %v1788 = vpack.c.b16 %v1656, %v1650
        %v1789 = vpack.c.b16 %v1657, %v1651
        %v1790 = vpack.c.b16 %v1658, %v1652
        %v1791 = vpack.c.b16 %v1659, %v1653
        %v1792 = vpack.c.b16 %v1666, %v1660
        %v1793 = vpack.c.b16 %v1667, %v1661
        %v1794 = vpack.c.b16 %v1668, %v1662
        %v1795 = vpack.c.b16 %v1669, %v1663
        %v1796 = vpack.c.b16 %v1670, %v1664
        %v1797 = vpack.c.b16 %v1671, %v1665
        %v1798 = vpack.c.b16 %v1678, %v1672
        %v1799 = vpack.c.b16 %v1679, %v1673
        %v1800 = vpack.c.b16 %v1680, %v1674
        %v1801 = vpack.c.b16 %v1681, %v1675
        %v1802 = vpack.c.b16 %v1682, %v1676
        %v1803 = vpack.c.b16 %v1683, %v1677
        %v1804 = vpack.c.b16 %v1690, %v1684
        %v1805 = vpack.c.b16 %v1691, %v1685
        %v1806 = vpack.c.b16 %v1692, %v1686
        %v1807 = vpack.c.b16 %v1693, %v1687
        %v1808 = vpack.c.b16 %v1694, %v1688
        %v1809 = vpack.c.b16 %v1695, %v1689
        %v1810 = vpack.c.b16 %v1702, %v1696
        %v1811 = vpack.c.b16 %v1703, %v1697
        %v1812 = vpack.c.b16 %v1704, %v1698
        %v1813 = vpack.c.b16 %v1705, %v1699
        %v1814 = vpack.c.b16 %v1706, %v1700
        %v1815 = vpack.c.b16 %v1707, %v1701
        %v1816 = vpack.c.b16 %v1714, %v1708
        %v1817 = vpack.c.b16 %v1715, %v1709
        %v1818 = vpack.c.b16 %v1716, %v1710
        %v1819 = vpack.c.b16 %v1717, %v1711
        %v1820 = vpack.c.b16 %v1718, %v1712
        %v1821 = vpack.c.b16 %v1719, %v1713
        %v1822 = vpack.c.b16 %v1726, %v1720
        %v1823 = vpack.c.b16 %v1727, %v1721
        %v1824 = vpack.c.b16 %v1728, %v1722
        %v1825 = vpack.c.b16 %v1729, %v1723
        %v1826 = vpack.c.b16 %v1730, %v1724
        %v1827 = vpack.c.b16 %v1731, %v1725
        %1924 = vmatprep.subr.bf16.mxu0 %v1775
        %1925 = vmatpush1.bf16.msra.mxu0 %v1774
        %1926 = vmatprep.subr.bf16.mxu0 %v1769
        %1927 = vmatpush1.bf16.msra.mxu0 %v1768
        %1928 = vmatprep.subr.bf16.mxu0 %v1763
        %1929 = vmatpush1.bf16.msra.mxu0 %v1762
        %1930 = vmatprep.subr.bf16.mxu0 %v1757
        %1931 = vmatpush1.bf16.msra.mxu0 %v1756
        %1932 = vmatprep.subr.bf16.mxu0 %v1751
        %1933 = vmatpush1.bf16.msra.mxu0 %v1750
        %1934 = vmatprep.subr.bf16.mxu0 %v1745
        %1935 = vmatpush1.bf16.msra.mxu0 %v1744
        %1936 = vmatprep.subr.bf16.mxu0 %v1739
        %1937 = vmatpush1.bf16.msra.mxu0 %v1738
        %1938 = vmatprep.subr.bf16.mxu0 %v1733
        %1939 = vmatpush1.bf16.msra.mxu0 %v1732
        %1940 = vmatprep.subr.bf16.mxu0 %v1823
        %1941 = vmatpush2.bf16.msra.mxu0 %v1822
        %1942 = vmatprep.subr.bf16.mxu0 %v1817
        %1943 = vmatpush2.bf16.msra.mxu0 %v1816
        %1944 = vmatprep.subr.bf16.mxu0 %v1811
        %1945 = vmatpush2.bf16.msra.mxu0 %v1810
        %1946 = vmatprep.subr.bf16.mxu0 %v1805
        %1947 = vmatpush2.bf16.msra.mxu0 %v1804
        %1948 = vmatprep.subr.bf16.mxu0 %v1799
        %1949 = vmatpush2.bf16.msra.mxu0 %v1798
        %1950 = vmatprep.subr.bf16.mxu0 %v1793
        %1951 = vmatpush2.bf16.msra.mxu0 %v1792
        %1952 = vmatprep.subr.bf16.mxu0 %v1787
        %1953 = vmatpush2.bf16.msra.mxu0 %v1786
        %1954 = vmatprep.subr.bf16.mxu0 %v1781
        %1955 = vmatpush2.bf16.msra.mxu0 %v1780
        %1956 = vmatprep.mubr.bf16.mxu0 %v1315
        %1957 = vmatmul.mubr.bf16.gmra.mxu0 %v1314
        %v1958 = vpop.f32.mrf.mxu0
        %v1959 = vadd.f32 %v1417, %v1958
        %v1960 = vpop.f32.mrf.mxu0
        %v1961 = vadd.f32 %v1421, %v1960
        %v1962 = vpop.f32.mrf.mxu0
        %v1963 = vadd.f32 %v1417, %v1962
        %v1964 = vpop.f32.mrf.mxu0
        %v1965 = vadd.f32 %v1421, %v1964
        %1966 = vdwg.mxu0
        %1967 = vmatprep.subr.bf16.mxu0 %v1777
        %1968 = vmatpush1.bf16.msra.mxu0 %v1776
        %1969 = vmatprep.subr.bf16.mxu0 %v1771
        %1970 = vmatpush1.bf16.msra.mxu0 %v1770
        %1971 = vmatprep.subr.bf16.mxu0 %v1765
        %1972 = vmatpush1.bf16.msra.mxu0 %v1764
        %1973 = vmatprep.subr.bf16.mxu0 %v1759
        %1974 = vmatpush1.bf16.msra.mxu0 %v1758
        %1975 = vmatprep.subr.bf16.mxu0 %v1753
        %1976 = vmatpush1.bf16.msra.mxu0 %v1752
        %1977 = vmatprep.subr.bf16.mxu0 %v1747
        %1978 = vmatpush1.bf16.msra.mxu0 %v1746
        %1979 = vmatprep.subr.bf16.mxu0 %v1741
        %1980 = vmatpush1.bf16.msra.mxu0 %v1740
        %1981 = vmatprep.subr.bf16.mxu0 %v1735
        %1982 = vmatpush1.bf16.msra.mxu0 %v1734
        %1983 = vmatprep.subr.bf16.mxu0 %v1825
        %1984 = vmatpush2.bf16.msra.mxu0 %v1824
        %1985 = vmatprep.subr.bf16.mxu0 %v1819
        %1986 = vmatpush2.bf16.msra.mxu0 %v1818
        %1987 = vmatprep.subr.bf16.mxu0 %v1813
        %1988 = vmatpush2.bf16.msra.mxu0 %v1812
        %1989 = vmatprep.subr.bf16.mxu0 %v1807
        %1990 = vmatpush2.bf16.msra.mxu0 %v1806
        %1991 = vmatprep.subr.bf16.mxu0 %v1801
        %1992 = vmatpush2.bf16.msra.mxu0 %v1800
        %1993 = vmatprep.subr.bf16.mxu0 %v1795
        %1994 = vmatpush2.bf16.msra.mxu0 %v1794
        %1995 = vmatprep.subr.bf16.mxu0 %v1789
        %1996 = vmatpush2.bf16.msra.mxu0 %v1788
        %1997 = vmatprep.subr.bf16.mxu0 %v1783
        %1998 = vmatpush2.bf16.msra.mxu0 %v1782
        %1999 = vmatprep.mubr.bf16.mxu0 %v1315
        %2000 = vmatmul.mubr.bf16.gmra.mxu0 %v1314
        %v2001 = vpop.f32.mrf.mxu0
        %v2002 = vadd.f32 %v1425, %v2001
        %v2003 = vpop.f32.mrf.mxu0
        %v2004 = vadd.f32 %v1429, %v2003
        %v2005 = vpop.f32.mrf.mxu0
        %v2006 = vadd.f32 %v1425, %v2005
        %v2007 = vpop.f32.mrf.mxu0
        %v2008 = vadd.f32 %v1429, %v2007
        %2009 = vdwg.mxu0
        %2010 = vmatprep.subr.bf16.mxu0 %v1779
        %2011 = vmatpush1.bf16.msra.mxu0 %v1778
        %2012 = vmatprep.subr.bf16.mxu0 %v1773
        %2013 = vmatpush1.bf16.msra.mxu0 %v1772
        %2014 = vmatprep.subr.bf16.mxu0 %v1767
        %2015 = vmatpush1.bf16.msra.mxu0 %v1766
        %2016 = vmatprep.subr.bf16.mxu0 %v1761
        %2017 = vmatpush1.bf16.msra.mxu0 %v1760
        %2018 = vmatprep.subr.bf16.mxu0 %v1755
        %2019 = vmatpush1.bf16.msra.mxu0 %v1754
        %2020 = vmatprep.subr.bf16.mxu0 %v1749
        %2021 = vmatpush1.bf16.msra.mxu0 %v1748
        %2022 = vmatprep.subr.bf16.mxu0 %v1743
        %2023 = vmatpush1.bf16.msra.mxu0 %v1742
        %2024 = vmatprep.subr.bf16.mxu0 %v1737
        %2025 = vmatpush1.bf16.msra.mxu0 %v1736
        %2026 = vmatprep.subr.bf16.mxu0 %v1827
        %2027 = vmatpush2.bf16.msra.mxu0 %v1826
        %2028 = vmatprep.subr.bf16.mxu0 %v1821
        %2029 = vmatpush2.bf16.msra.mxu0 %v1820
        %2030 = vmatprep.subr.bf16.mxu0 %v1815
        %2031 = vmatpush2.bf16.msra.mxu0 %v1814
        %2032 = vmatprep.subr.bf16.mxu0 %v1809
        %2033 = vmatpush2.bf16.msra.mxu0 %v1808
        %2034 = vmatprep.subr.bf16.mxu0 %v1803
        %2035 = vmatpush2.bf16.msra.mxu0 %v1802
        %2036 = vmatprep.subr.bf16.mxu0 %v1797
        %2037 = vmatpush2.bf16.msra.mxu0 %v1796
        %2038 = vmatprep.subr.bf16.mxu0 %v1791
        %2039 = vmatpush2.bf16.msra.mxu0 %v1790
        %2040 = vmatprep.subr.bf16.mxu0 %v1785
        %2041 = vmatpush2.bf16.msra.mxu0 %v1784
        %2042 = vmatprep.mubr.bf16.mxu0 %v1315
        %2043 = vmatmul.mubr.bf16.gmra.mxu0 %v1314
        %v2044 = vpop.f32.mrf.mxu0
        %v2045 = vadd.f32 %v1433, %v2044
        %v2046 = vpop.f32.mrf.mxu0
        %v2047 = vadd.f32 %v1437, %v2046
        %v2048 = vpop.f32.mrf.mxu0
        %v2049 = vadd.f32 %v1433, %v2048
        %v2050 = vpop.f32.mrf.mxu0
        %v2051 = vadd.f32 %v1437, %v2050
        %2052 = vdwg.mxu0
        %v2053 = vmul.f32 %v1959, 0.25
        %v2054 = vmul.f32 %v1961, 0.25
        %v2055 = vmul.f32 %v1963, 0.25
        %v2056 = vmul.f32 %v1965, 0.25
        %v2057 = vpack.c.bf16 %v2055, %v2053
        %v2058 = vpack.c.bf16 %v2056, %v2054
        %v2059 = vpack.c.bf16 %v2006, %v2002
        %v2060 = vpack.c.bf16 %v2008, %v2004
        %v2061 = vpack.c.bf16 %v2049, %v2045
        %v2062 = vpack.c.bf16 %v2051, %v2047
        %v2063 = vld [vmem:[%s1] sm:$0xff]
        %v2064 = vld [vmem:[%s1 + $0x8] sm:$0xff]
        %v2065 = vld [vmem:[%s1 + $0x10] sm:$0xff]
        %v2066 = vld [vmem:[%s1 + $0x18] sm:$0xff]
        %v2067 = vld [vmem:[%s1 + $0x20] sm:$0xff]
        %v2068 = vld [vmem:[%s1 + $0x28] sm:$0xff]
        %v2069 = vld [vmem:[%s1 + $0x30] sm:$0xff]
        %v2070 = vld [vmem:[%s1 + $0x38] sm:$0xff]
        %v2071 = vld [vmem:[%s1 + $0x40] sm:$0xff]
        %v2072 = vld [vmem:[%s1 + $0x48] sm:$0xff]
        %v2073 = vld [vmem:[%s1 + $0x50] sm:$0xff]
        %v2074 = vld [vmem:[%s1 + $0x58] sm:$0xff]
        %v2075 = vld [vmem:[%s1 + $0x60] sm:$0xff]
        %v2076 = vld [vmem:[%s1 + $0x68] sm:$0xff]
        %v2077 = vld [vmem:[%s1 + $0x70] sm:$0xff]
        %v2078 = vld [vmem:[%s1 + $0x78] sm:$0xff]
        %v2079 = vld [vmem:[%s1 + $0x80] sm:$0xff]
        %v2080 = vld [vmem:[%s1 + $0x88] sm:$0xff]
        %v2081 = vld [vmem:[%s1 + $0x90] sm:$0xff]
        %v2082 = vld [vmem:[%s1 + $0x98] sm:$0xff]
        %v2083 = vld [vmem:[%s1 + $0xa0] sm:$0xff]
        %v2084 = vld [vmem:[%s1 + $0xa8] sm:$0xff]
        %v2085 = vld [vmem:[%s1 + $0xb0] sm:$0xff]
        %v2086 = vld [vmem:[%s1 + $0xb8] sm:$0xff]
        %v2087 = vld [vmem:[%s1 + $0xc0] sm:$0xff]
        %v2088 = vld [vmem:[%s1 + $0xc8] sm:$0xff]
        %v2089 = vld [vmem:[%s1 + $0xd0] sm:$0xff]
        %v2090 = vld [vmem:[%s1 + $0xd8] sm:$0xff]
        %v2091 = vld [vmem:[%s1 + $0xe0] sm:$0xff]
        %v2092 = vld [vmem:[%s1 + $0xe8] sm:$0xff]
        %v2093 = vld [vmem:[%s1 + $0xf0] sm:$0xff]
        %v2094 = vld [vmem:[%s1 + $0xf8] sm:$0xff]
        %v2127 = vunpack.c.l.b16 %v2063
        %v2128 = vunpack.c.h.b16 %v2063
        %v2129 = vunpack.c.l.b16 %v2064
        %v2130 = vunpack.c.h.b16 %v2064
        %v2131 = vunpack.c.l.b16 %v2065
        %v2132 = vunpack.c.h.b16 %v2065
        %v2133 = vunpack.c.l.b16 %v2066
        %v2134 = vunpack.c.h.b16 %v2066
        %v2135 = vunpack.c.l.b16 %v2067
        %v2136 = vunpack.c.h.b16 %v2067
        %v2137 = vunpack.c.l.b16 %v2068
        %v2138 = vunpack.c.h.b16 %v2068
        %v2139 = vunpack.c.l.b16 %v2069
        %v2140 = vunpack.c.h.b16 %v2069
        %v2141 = vunpack.c.l.b16 %v2070
        %v2142 = vunpack.c.h.b16 %v2070
        %v2143 = vunpack.c.l.b16 %v2071
        %v2144 = vunpack.c.h.b16 %v2071
        %v2145 = vunpack.c.l.b16 %v2072
        %v2146 = vunpack.c.h.b16 %v2072
        %v2147 = vunpack.c.l.b16 %v2073
        %v2148 = vunpack.c.h.b16 %v2073
        %v2149 = vunpack.c.l.b16 %v2074
        %v2150 = vunpack.c.h.b16 %v2074
        %v2151 = vunpack.c.l.b16 %v2075
        %v2152 = vunpack.c.h.b16 %v2075
        %v2153 = vunpack.c.l.b16 %v2076
        %v2154 = vunpack.c.h.b16 %v2076
        %v2155 = vunpack.c.l.b16 %v2077
        %v2156 = vunpack.c.h.b16 %v2077
        %v2157 = vunpack.c.l.b16 %v2078
        %v2158 = vunpack.c.h.b16 %v2078
        %v2159 = vunpack.c.l.b16 %v2079
        %v2160 = vunpack.c.h.b16 %v2079
        %v2161 = vunpack.c.l.b16 %v2080
        %v2162 = vunpack.c.h.b16 %v2080
        %v2163 = vunpack.c.l.b16 %v2081
        %v2164 = vunpack.c.h.b16 %v2081
        %v2165 = vunpack.c.l.b16 %v2082
        %v2166 = vunpack.c.h.b16 %v2082
        %v2167 = vunpack.c.l.b16 %v2083
        %v2168 = vunpack.c.h.b16 %v2083
        %v2169 = vunpack.c.l.b16 %v2084
        %v2170 = vunpack.c.h.b16 %v2084
        %v2171 = vunpack.c.l.b16 %v2085
        %v2172 = vunpack.c.h.b16 %v2085
        %v2173 = vunpack.c.l.b16 %v2086
        %v2174 = vunpack.c.h.b16 %v2086
        %v2175 = vunpack.c.l.b16 %v2087
        %v2176 = vunpack.c.h.b16 %v2087
        %v2177 = vunpack.c.l.b16 %v2088
        %v2178 = vunpack.c.h.b16 %v2088
        %v2179 = vunpack.c.l.b16 %v2089
        %v2180 = vunpack.c.h.b16 %v2089
        %v2181 = vunpack.c.l.b16 %v2090
        %v2182 = vunpack.c.h.b16 %v2090
        %v2183 = vunpack.c.l.b16 %v2091
        %v2184 = vunpack.c.h.b16 %v2091
        %v2185 = vunpack.c.l.b16 %v2092
        %v2186 = vunpack.c.h.b16 %v2092
        %v2187 = vunpack.c.l.b16 %v2093
        %v2188 = vunpack.c.h.b16 %v2093
        %v2189 = vunpack.c.l.b16 %v2094
        %v2190 = vunpack.c.h.b16 %v2094
        %v2191 = vpack.c.b16 %v2129, %v2127
        %v2192 = vpack.c.b16 %v2130, %v2128
        %v2193 = vpack.c.b16 %v2133, %v2131
        %v2194 = vpack.c.b16 %v2134, %v2132
        %v2195 = vpack.c.b16 %v2137, %v2135
        %v2196 = vpack.c.b16 %v2138, %v2136
        %v2197 = vpack.c.b16 %v2141, %v2139
        %v2198 = vpack.c.b16 %v2142, %v2140
        %v2199 = vpack.c.b16 %v2145, %v2143
        %v2200 = vpack.c.b16 %v2146, %v2144
        %v2201 = vpack.c.b16 %v2149, %v2147
        %v2202 = vpack.c.b16 %v2150, %v2148
        %v2203 = vpack.c.b16 %v2153, %v2151
        %v2204 = vpack.c.b16 %v2154, %v2152
        %v2205 = vpack.c.b16 %v2157, %v2155
        %v2206 = vpack.c.b16 %v2158, %v2156
        %v2207 = vpack.c.b16 %v2161, %v2159
        %v2208 = vpack.c.b16 %v2162, %v2160
        %v2209 = vpack.c.b16 %v2165, %v2163
        %v2210 = vpack.c.b16 %v2166, %v2164
        %v2211 = vpack.c.b16 %v2169, %v2167
        %v2212 = vpack.c.b16 %v2170, %v2168
        %v2213 = vpack.c.b16 %v2173, %v2171
        %v2214 = vpack.c.b16 %v2174, %v2172
        %v2215 = vpack.c.b16 %v2177, %v2175
        %v2216 = vpack.c.b16 %v2178, %v2176
        %v2217 = vpack.c.b16 %v2181, %v2179
        %v2218 = vpack.c.b16 %v2182, %v2180
        %v2219 = vpack.c.b16 %v2185, %v2183
        %v2220 = vpack.c.b16 %v2186, %v2184
        %v2221 = vpack.c.b16 %v2189, %v2187
        %v2222 = vpack.c.b16 %v2190, %v2188
        %v2255 = vmul.bf16 %v2059, %v2191
        %v2256 = vmul.bf16 %v2060, %v2192
        %v2257 = vmul.bf16 %v2059, %v2193
        %v2258 = vmul.bf16 %v2060, %v2194
        %v2259 = vmul.bf16 %v2059, %v2195
        %v2260 = vmul.bf16 %v2060, %v2196
        %v2261 = vmul.bf16 %v2059, %v2197
        %v2262 = vmul.bf16 %v2060, %v2198
        %v2263 = vmul.bf16 %v2059, %v2199
        %v2264 = vmul.bf16 %v2060, %v2200
        %v2265 = vmul.bf16 %v2059, %v2201
        %v2266 = vmul.bf16 %v2060, %v2202
        %v2267 = vmul.bf16 %v2059, %v2203
        %v2268 = vmul.bf16 %v2060, %v2204
        %v2269 = vmul.bf16 %v2059, %v2205
        %v2270 = vmul.bf16 %v2060, %v2206
        %v2271 = vmul.bf16 %v2059, %v2207
        %v2272 = vmul.bf16 %v2060, %v2208
        %v2273 = vmul.bf16 %v2059, %v2209
        %v2274 = vmul.bf16 %v2060, %v2210
        %v2275 = vmul.bf16 %v2059, %v2211
        %v2276 = vmul.bf16 %v2060, %v2212
        %v2277 = vmul.bf16 %v2059, %v2213
        %v2278 = vmul.bf16 %v2060, %v2214
        %v2279 = vmul.bf16 %v2059, %v2215
        %v2280 = vmul.bf16 %v2060, %v2216
        %v2281 = vmul.bf16 %v2059, %v2217
        %v2282 = vmul.bf16 %v2060, %v2218
        %v2283 = vmul.bf16 %v2059, %v2219
        %v2284 = vmul.bf16 %v2060, %v2220
        %v2285 = vmul.bf16 %v2059, %v2221
        %v2286 = vmul.bf16 %v2060, %v2222
        %v2287 = vmul.bf16 %v2061, %v2191
        %v2288 = vmul.bf16 %v2062, %v2192
        %v2289 = vmul.bf16 %v2061, %v2193
        %v2290 = vmul.bf16 %v2062, %v2194
        %v2291 = vmul.bf16 %v2061, %v2195
        %v2292 = vmul.bf16 %v2062, %v2196
        %v2293 = vmul.bf16 %v2061, %v2197
        %v2294 = vmul.bf16 %v2062, %v2198
        %v2295 = vmul.bf16 %v2061, %v2199
        %v2296 = vmul.bf16 %v2062, %v2200
        %v2297 = vmul.bf16 %v2061, %v2201
        %v2298 = vmul.bf16 %v2062, %v2202
        %v2299 = vmul.bf16 %v2061, %v2203
        %v2300 = vmul.bf16 %v2062, %v2204
        %v2301 = vmul.bf16 %v2061, %v2205
        %v2302 = vmul.bf16 %v2062, %v2206
        %v2303 = vmul.bf16 %v2061, %v2207
        %v2304 = vmul.bf16 %v2062, %v2208
        %v2305 = vmul.bf16 %v2061, %v2209
        %v2306 = vmul.bf16 %v2062, %v2210
        %v2307 = vmul.bf16 %v2061, %v2211
        %v2308 = vmul.bf16 %v2062, %v2212
        %v2309 = vmul.bf16 %v2061, %v2213
        %v2310 = vmul.bf16 %v2062, %v2214
        %v2311 = vmul.bf16 %v2061, %v2215
        %v2312 = vmul.bf16 %v2062, %v2216
        %v2313 = vmul.bf16 %v2061, %v2217
        %v2314 = vmul.bf16 %v2062, %v2218
        %v2315 = vmul.bf16 %v2061, %v2219
        %v2316 = vmul.bf16 %v2062, %v2220
        %v2317 = vmul.bf16 %v2061, %v2221
        %v2318 = vmul.bf16 %v2062, %v2222
        %v2319 = vld [vmem:[%s2] sm:$0xff]
        %v2320 = vld [vmem:[%s2 + $0x8] sm:$0xff]
        %v2321 = vld [vmem:[%s2 + $0x10] sm:$0xff]
        %v2322 = vld [vmem:[%s2 + $0x18] sm:$0xff]
        %2323 = vmatprep.subr.bf16.mxu0 %v2270
        %2324 = vmatpush1.bf16.xpose.msra.mxu0 %v2269
        %2325 = vmatprep.subr.bf16.mxu0 %v2268
        %2326 = vmatpush1.bf16.xpose.msra.mxu0 %v2267
        %2327 = vmatprep.subr.bf16.mxu0 %v2266
        %2328 = vmatpush1.bf16.xpose.msra.mxu0 %v2265
        %2329 = vmatprep.subr.bf16.mxu0 %v2264
        %2330 = vmatpush1.bf16.xpose.msra.mxu0 %v2263
        %2331 = vmatprep.subr.bf16.mxu0 %v2262
        %2332 = vmatpush1.bf16.xpose.msra.mxu0 %v2261
        %2333 = vmatprep.subr.bf16.mxu0 %v2260
        %2334 = vmatpush1.bf16.xpose.msra.mxu0 %v2259
        %2335 = vmatprep.subr.bf16.mxu0 %v2258
        %2336 = vmatpush1.bf16.xpose.msra.mxu0 %v2257
        %2337 = vmatprep.subr.bf16.mxu0 %v2256
        %2338 = vmatpush1.bf16.xpose.msra.mxu0 %v2255
        %2339 = vmatprep.subr.bf16.mxu0 %v2286
        %2340 = vmatpush2.bf16.xpose.msra.mxu0 %v2285
        %2341 = vmatprep.subr.bf16.mxu0 %v2284
        %2342 = vmatpush2.bf16.xpose.msra.mxu0 %v2283
        %2343 = vmatprep.subr.bf16.mxu0 %v2282
        %2344 = vmatpush2.bf16.xpose.msra.mxu0 %v2281
        %2345 = vmatprep.subr.bf16.mxu0 %v2280
        %2346 = vmatpush2.bf16.xpose.msra.mxu0 %v2279
        %2347 = vmatprep.subr.bf16.mxu0 %v2278
        %2348 = vmatpush2.bf16.xpose.msra.mxu0 %v2277
        %2349 = vmatprep.subr.bf16.mxu0 %v2276
        %2350 = vmatpush2.bf16.xpose.msra.mxu0 %v2275
        %2351 = vmatprep.subr.bf16.mxu0 %v2274
        %2352 = vmatpush2.bf16.xpose.msra.mxu0 %v2273
        %2353 = vmatprep.subr.bf16.mxu0 %v2272
        %2354 = vmatpush2.bf16.xpose.msra.mxu0 %v2271
        %2355 = vmatprep.mubr.bf16.mxu0 %v2058
        %2356 = vmatmul.mubr.bf16.gmra.mxu0 %v2057
        %v2357 = vpop.f32.mrf.mxu0
        %v2358 = vadd.f32 %v2319, %v2357
        %v2359 = vpop.f32.mrf.mxu0
        %v2360 = vadd.f32 %v2320, %v2359
        %v2361 = vpop.f32.mrf.mxu0
        %v2362 = vadd.f32 %v2321, %v2361
        %v2363 = vpop.f32.mrf.mxu0
        %v2364 = vadd.f32 %v2322, %v2363
        %2365 = vdwg.mxu0
        %v2366 = vmax.f32 %v2358, %v2360
        %2367 = vmax.xlane.f32.xlu0 %v2366
        %v2368 = vpop.xlane.xlu0 %2367
        %v2369 = vmax.f32 %v2362, %v2364
        %2370 = vmax.xlane.f32.xlu0 %v2369
        %v2371 = vpop.xlane.xlu0 %2370
        %v2372 = vsub.f32 %v2358, %v2368
        %v2373 = vsub.f32 %v2360, %v2368
        %v2374 = vsub.f32 %v2362, %v2371
        %v2375 = vsub.f32 %v2364, %v2371
        %v2376 = vmul.f32 %v2372, 1.442695
        %v2377 = vpow.pop %v2376
        %v2378 = vmul.f32 %v2373, 1.442695
        %v2379 = vpow.pop %v2378
        %v2380 = vmul.f32 %v2374, 1.442695
        %v2381 = vpow.pop %v2380
        %v2382 = vmul.f32 %v2375, 1.442695
        %v2383 = vpow.pop %v2382
        %v2384 = vpack.c.bf16 %v2381, %v2377
        %v2385 = vpack.c.bf16 %v2383, %v2379
        %2386 = vmatprep.subr.bf16.mxu0 %v2302
        %2387 = vmatpush1.bf16.msra.mxu0 %v2301
        %2388 = vmatprep.subr.bf16.mxu0 %v2300
        %2389 = vmatpush1.bf16.msra.mxu0 %v2299
        %2390 = vmatprep.subr.bf16.mxu0 %v2298
        %2391 = vmatpush1.bf16.msra.mxu0 %v2297
        %2392 = vmatprep.subr.bf16.mxu0 %v2296
        %2393 = vmatpush1.bf16.msra.mxu0 %v2295
        %2394 = vmatprep.subr.bf16.mxu0 %v2294
        %2395 = vmatpush1.bf16.msra.mxu0 %v2293
        %2396 = vmatprep.subr.bf16.mxu0 %v2292
        %2397 = vmatpush1.bf16.msra.mxu0 %v2291
        %2398 = vmatprep.subr.bf16.mxu0 %v2290
        %2399 = vmatpush1.bf16.msra.mxu0 %v2289
        %2400 = vmatprep.subr.bf16.mxu0 %v2288
        %2401 = vmatpush1.bf16.msra.mxu0 %v2287
        %2402 = vmatprep.subr.bf16.mxu0 %v2318
        %2403 = vmatpush2.bf16.msra.mxu0 %v2317
        %2404 = vmatprep.subr.bf16.mxu0 %v2316
        %2405 = vmatpush2.bf16.msra.mxu0 %v2315
        %2406 = vmatprep.subr.bf16.mxu0 %v2314
        %2407 = vmatpush2.bf16.msra.mxu0 %v2313
        %2408 = vmatprep.subr.bf16.mxu0 %v2312
        %2409 = vmatpush2.bf16.msra.mxu0 %v2311
        %2410 = vmatprep.subr.bf16.mxu0 %v2310
        %2411 = vmatpush2.bf16.msra.mxu0 %v2309
        %2412 = vmatprep.subr.bf16.mxu0 %v2308
        %2413 = vmatpush2.bf16.msra.mxu0 %v2307
        %2414 = vmatprep.subr.bf16.mxu0 %v2306
        %2415 = vmatpush2.bf16.msra.mxu0 %v2305
        %2416 = vmatprep.subr.bf16.mxu0 %v2304
        %2417 = vmatpush2.bf16.msra.mxu0 %v2303
        %2418 = vmatprep.mubr.bf16.mxu0 %v2385
        %2419 = vmatmul.mubr.bf16.gmra.mxu0 %v2384
        %v2420 = vpop.f32.mrf.mxu0
        %v2421 = vadd.f32 0.0, %v2420
        %v2422 = vpop.f32.mrf.mxu0
        %v2423 = vadd.f32 0.0, %v2422
        %v2424 = vpop.f32.mrf.mxu0
        %v2425 = vadd.f32 0.0, %v2424
        %v2426 = vpop.f32.mrf.mxu0
        %v2427 = vadd.f32 0.0, %v2426
        %2428 = vdwg.mxu0
        %2429 = vmatprep.subr.bf16.mxu0 %v2206
        %2430 = vmatpush1.bf16.msra.mxu0 %v2205
        %2431 = vmatprep.subr.bf16.mxu0 %v2204
        %2432 = vmatpush1.bf16.msra.mxu0 %v2203
        %2433 = vmatprep.subr.bf16.mxu0 %v2202
        %2434 = vmatpush1.bf16.msra.mxu0 %v2201
        %2435 = vmatprep.subr.bf16.mxu0 %v2200
        %2436 = vmatpush1.bf16.msra.mxu0 %v2199
        %2437 = vmatprep.subr.bf16.mxu0 %v2198
        %2438 = vmatpush1.bf16.msra.mxu0 %v2197
        %2439 = vmatprep.subr.bf16.mxu0 %v2196
        %2440 = vmatpush1.bf16.msra.mxu0 %v2195
        %2441 = vmatprep.subr.bf16.mxu0 %v2194
        %2442 = vmatpush1.bf16.msra.mxu0 %v2193
        %2443 = vmatprep.subr.bf16.mxu0 %v2192
        %2444 = vmatpush1.bf16.msra.mxu0 %v2191
        %2445 = vmatprep.subr.bf16.mxu0 %v2222
        %2446 = vmatpush2.bf16.msra.mxu0 %v2221
        %2447 = vmatprep.subr.bf16.mxu0 %v2220
        %2448 = vmatpush2.bf16.msra.mxu0 %v2219
        %2449 = vmatprep.subr.bf16.mxu0 %v2218
        %2450 = vmatpush2.bf16.msra.mxu0 %v2217
        %2451 = vmatprep.subr.bf16.mxu0 %v2216
        %2452 = vmatpush2.bf16.msra.mxu0 %v2215
        %2453 = vmatprep.subr.bf16.mxu0 %v2214
        %2454 = vmatpush2.bf16.msra.mxu0 %v2213
        %2455 = vmatprep.subr.bf16.mxu0 %v2212
        %2456 = vmatpush2.bf16.msra.mxu0 %v2211
        %2457 = vmatprep.subr.bf16.mxu0 %v2210
        %2458 = vmatpush2.bf16.msra.mxu0 %v2209
        %2459 = vmatprep.subr.bf16.mxu0 %v2208
        %2460 = vmatpush2.bf16.msra.mxu0 %v2207
        %2461 = vmatprep.mubr.bf16.mxu0 %v2385
        %2462 = vmatmul.mubr.bf16.gmra.mxu0 %v2384
        %v2463 = vpop.f32.mrf.mxu0
        %v2464 = vadd.f32 0.0, %v2463
        %v2465 = vpop.f32.mrf.mxu0
        %v2466 = vadd.f32 0.0, %v2465
        %v2467 = vpop.f32.mrf.mxu0
        %v2468 = vadd.f32 0.0, %v2467
        %v2469 = vpop.f32.mrf.mxu0
        %v2470 = vadd.f32 0.0, %v2469
        %2471 = vdwg.mxu0
        %v2472 = vrcp.pop %v2464
        %v2473 = vrcp.pop %v2466
        %v2474 = vrcp.pop %v2468
        %v2475 = vrcp.pop %v2470
        %v2476 = vmul.f32 %v2421, %v2472
        %v2477 = vmul.f32 %v2423, %v2473
        %v2478 = vmul.f32 %v2425, %v2474
        %v2479 = vmul.f32 %v2427, %v2475
        %v2480 = vpack.c.bf16 %v2478, %v2476
        %v2481 = vpack.c.bf16 %v2479, %v2477
        %v2482 = vld [vmem:[%s981] sm:$0xff]
        %v2483 = vld [vmem:[%s981 + $0x8] sm:$0xff]
        %v2484 = vld [vmem:[%s981 + $0x10] sm:$0xff]
        %v2485 = vld [vmem:[%s981 + $0x18] sm:$0xff]
        %v2486 = vld [vmem:[%s981 + $0x20] sm:$0xff]
        %v2487 = vld [vmem:[%s981 + $0x28] sm:$0xff]
        %v2488 = vld [vmem:[%s981 + $0x30] sm:$0xff]
        %v2489 = vld [vmem:[%s981 + $0x38] sm:$0xff]
        %v2490 = vld [vmem:[%s981 + $0x40] sm:$0xff]
        %v2491 = vld [vmem:[%s981 + $0x48] sm:$0xff]
        %v2492 = vld [vmem:[%s981 + $0x50] sm:$0xff]
        %v2493 = vld [vmem:[%s981 + $0x58] sm:$0xff]
        %v2494 = vld [vmem:[%s981 + $0x60] sm:$0xff]
        %v2495 = vld [vmem:[%s981 + $0x68] sm:$0xff]
        %v2496 = vld [vmem:[%s981 + $0x70] sm:$0xff]
        %v2497 = vld [vmem:[%s981 + $0x78] sm:$0xff]
        %v2498 = vld [vmem:[%s981 + $0x80] sm:$0xff]
        %v2499 = vld [vmem:[%s981 + $0x88] sm:$0xff]
        %v2500 = vld [vmem:[%s981 + $0x90] sm:$0xff]
        %v2501 = vld [vmem:[%s981 + $0x98] sm:$0xff]
        %v2502 = vld [vmem:[%s981 + $0xa0] sm:$0xff]
        %v2503 = vld [vmem:[%s981 + $0xa8] sm:$0xff]
        %v2504 = vld [vmem:[%s981 + $0xb0] sm:$0xff]
        %v2505 = vld [vmem:[%s981 + $0xb8] sm:$0xff]
        %v2506 = vld [vmem:[%s981 + $0xc0] sm:$0xff]
        %v2507 = vld [vmem:[%s981 + $0xc8] sm:$0xff]
        %v2508 = vld [vmem:[%s981 + $0xd0] sm:$0xff]
        %v2509 = vld [vmem:[%s981 + $0xd8] sm:$0xff]
        %v2510 = vld [vmem:[%s981 + $0xe0] sm:$0xff]
        %v2511 = vld [vmem:[%s981 + $0xe8] sm:$0xff]
        %v2512 = vld [vmem:[%s981 + $0xf0] sm:$0xff]
        %v2513 = vld [vmem:[%s981 + $0xf8] sm:$0xff]
        %v2514 = vld [vmem:[%s990] sm:$0x3]
        %v2516 = vlaneseq
        %v2517 = vshrl.u32 %v2516, 7
        %v2518 = vsub.s32 0, %v2517
        %v2519 = vrot.slane %v2514, %v2518
        %v2520 = vlaneseq
        %v2521 = vshrl.u32 %v2520, 7
        %v2522 = vsub.s32 1, %v2521
        %v2523 = vrot.slane %v2514, %v2522
        %v2558 = vunpack.c.l.b16 %v2482
        %v2559 = vunpack.c.h.b16 %v2482
        %v2560 = vunpack.c.l.b16 %v2483
        %v2561 = vunpack.c.h.b16 %v2483
        %v2562 = vunpack.c.l.b16 %v2484
        %v2563 = vunpack.c.h.b16 %v2484
        %v2564 = vunpack.c.l.b16 %v2485
        %v2565 = vunpack.c.h.b16 %v2485
        %v2566 = vunpack.c.l.b16 %v2486
        %v2567 = vunpack.c.h.b16 %v2486
        %v2568 = vunpack.c.l.b16 %v2487
        %v2569 = vunpack.c.h.b16 %v2487
        %v2570 = vunpack.c.l.b16 %v2488
        %v2571 = vunpack.c.h.b16 %v2488
        %v2572 = vunpack.c.l.b16 %v2489
        %v2573 = vunpack.c.h.b16 %v2489
        %v2574 = vunpack.c.l.b16 %v2490
        %v2575 = vunpack.c.h.b16 %v2490
        %v2576 = vunpack.c.l.b16 %v2491
        %v2577 = vunpack.c.h.b16 %v2491
        %v2578 = vunpack.c.l.b16 %v2492
        %v2579 = vunpack.c.h.b16 %v2492
        %v2580 = vunpack.c.l.b16 %v2493
        %v2581 = vunpack.c.h.b16 %v2493
        %v2582 = vunpack.c.l.b16 %v2494
        %v2583 = vunpack.c.h.b16 %v2494
        %v2584 = vunpack.c.l.b16 %v2495
        %v2585 = vunpack.c.h.b16 %v2495
        %v2586 = vunpack.c.l.b16 %v2496
        %v2587 = vunpack.c.h.b16 %v2496
        %v2588 = vunpack.c.l.b16 %v2497
        %v2589 = vunpack.c.h.b16 %v2497
        %v2590 = vunpack.c.l.b16 %v2498
        %v2591 = vunpack.c.h.b16 %v2498
        %v2592 = vunpack.c.l.b16 %v2499
        %v2593 = vunpack.c.h.b16 %v2499
        %v2594 = vunpack.c.l.b16 %v2500
        %v2595 = vunpack.c.h.b16 %v2500
        %v2596 = vunpack.c.l.b16 %v2501
        %v2597 = vunpack.c.h.b16 %v2501
        %v2598 = vunpack.c.l.b16 %v2502
        %v2599 = vunpack.c.h.b16 %v2502
        %v2600 = vunpack.c.l.b16 %v2503
        %v2601 = vunpack.c.h.b16 %v2503
        %v2602 = vunpack.c.l.b16 %v2504
        %v2603 = vunpack.c.h.b16 %v2504
        %v2604 = vunpack.c.l.b16 %v2505
        %v2605 = vunpack.c.h.b16 %v2505
        %v2606 = vunpack.c.l.b16 %v2506
        %v2607 = vunpack.c.h.b16 %v2506
        %v2608 = vunpack.c.l.b16 %v2507
        %v2609 = vunpack.c.h.b16 %v2507
        %v2610 = vunpack.c.l.b16 %v2508
        %v2611 = vunpack.c.h.b16 %v2508
        %v2612 = vunpack.c.l.b16 %v2509
        %v2613 = vunpack.c.h.b16 %v2509
        %v2614 = vunpack.c.l.b16 %v2510
        %v2615 = vunpack.c.h.b16 %v2510
        %v2616 = vunpack.c.l.b16 %v2511
        %v2617 = vunpack.c.h.b16 %v2511
        %v2618 = vunpack.c.l.b16 %v2512
        %v2619 = vunpack.c.h.b16 %v2512
        %v2620 = vunpack.c.l.b16 %v2513
        %v2621 = vunpack.c.h.b16 %v2513
        %v2622 = vpack.c.b16 %v2560, %v2558
        %v2623 = vpack.c.b16 %v2561, %v2559
        %v2624 = vpack.c.b16 %v2564, %v2562
        %v2625 = vpack.c.b16 %v2565, %v2563
        %v2626 = vpack.c.b16 %v2568, %v2566
        %v2627 = vpack.c.b16 %v2569, %v2567
        %v2628 = vpack.c.b16 %v2572, %v2570
        %v2629 = vpack.c.b16 %v2573, %v2571
        %v2630 = vpack.c.b16 %v2576, %v2574
        %v2631 = vpack.c.b16 %v2577, %v2575
        %v2632 = vpack.c.b16 %v2580, %v2578
        %v2633 = vpack.c.b16 %v2581, %v2579
        %v2634 = vpack.c.b16 %v2584, %v2582
        %v2635 = vpack.c.b16 %v2585, %v2583
        %v2636 = vpack.c.b16 %v2588, %v2586
        %v2637 = vpack.c.b16 %v2589, %v2587
        %v2638 = vpack.c.b16 %v2592, %v2590
        %v2639 = vpack.c.b16 %v2593, %v2591
        %v2640 = vpack.c.b16 %v2596, %v2594
        %v2641 = vpack.c.b16 %v2597, %v2595
        %v2642 = vpack.c.b16 %v2600, %v2598
        %v2643 = vpack.c.b16 %v2601, %v2599
        %v2644 = vpack.c.b16 %v2604, %v2602
        %v2645 = vpack.c.b16 %v2605, %v2603
        %v2646 = vpack.c.b16 %v2608, %v2606
        %v2647 = vpack.c.b16 %v2609, %v2607
        %v2648 = vpack.c.b16 %v2612, %v2610
        %v2649 = vpack.c.b16 %v2613, %v2611
        %v2650 = vpack.c.b16 %v2616, %v2614
        %v2651 = vpack.c.b16 %v2617, %v2615
        %v2652 = vpack.c.b16 %v2620, %v2618
        %v2653 = vpack.c.b16 %v2621, %v2619
        %2686 = vmatprep.subr.bf16.mxu0 %v2637
        %2687 = vmatpush1.bf16.msra.mxu0 %v2636
        %2688 = vmatprep.subr.bf16.mxu0 %v2635
        %2689 = vmatpush1.bf16.msra.mxu0 %v2634
        %2690 = vmatprep.subr.bf16.mxu0 %v2633
        %2691 = vmatpush1.bf16.msra.mxu0 %v2632
        %2692 = vmatprep.subr.bf16.mxu0 %v2631
        %2693 = vmatpush1.bf16.msra.mxu0 %v2630
        %2694 = vmatprep.subr.bf16.mxu0 %v2629
        %2695 = vmatpush1.bf16.msra.mxu0 %v2628
        %2696 = vmatprep.subr.bf16.mxu0 %v2627
        %2697 = vmatpush1.bf16.msra.mxu0 %v2626
        %2698 = vmatprep.subr.bf16.mxu0 %v2625
        %2699 = vmatpush1.bf16.msra.mxu0 %v2624
        %2700 = vmatprep.subr.bf16.mxu0 %v2623
        %2701 = vmatpush1.bf16.msra.mxu0 %v2622
        %2702 = vmatprep.subr.bf16.mxu0 %v2653
        %2703 = vmatpush2.bf16.msra.mxu0 %v2652
        %2704 = vmatprep.subr.bf16.mxu0 %v2651
        %2705 = vmatpush2.bf16.msra.mxu0 %v2650
        %2706 = vmatprep.subr.bf16.mxu0 %v2649
        %2707 = vmatpush2.bf16.msra.mxu0 %v2648
        %2708 = vmatprep.subr.bf16.mxu0 %v2647
        %2709 = vmatpush2.bf16.msra.mxu0 %v2646
        %2710 = vmatprep.subr.bf16.mxu0 %v2645
        %2711 = vmatpush2.bf16.msra.mxu0 %v2644
        %2712 = vmatprep.subr.bf16.mxu0 %v2643
        %2713 = vmatpush2.bf16.msra.mxu0 %v2642
        %2714 = vmatprep.subr.bf16.mxu0 %v2641
        %2715 = vmatpush2.bf16.msra.mxu0 %v2640
        %2716 = vmatprep.subr.bf16.mxu0 %v2639
        %2717 = vmatpush2.bf16.msra.mxu0 %v2638
        %2718 = vmatprep.mubr.bf16.mxu0 %v2481
        %2719 = vmatmul.mubr.bf16.gmra.mxu0 %v2480
        %v2720 = vpop.f32.mrf.mxu0
        %v2721 = vadd.f32 %v2519, %v2720
        %v2722 = vpop.f32.mrf.mxu0
        %v2723 = vadd.f32 %v2523, %v2722
        %v2724 = vpop.f32.mrf.mxu0
        %v2725 = vadd.f32 %v2519, %v2724
        %v2726 = vpop.f32.mrf.mxu0
        %v2727 = vadd.f32 %v2523, %v2726
        %2728 = vdwg.mxu0
        %v2729 = vadd.f32 %v1310, %v2721
        %v2730 = vadd.f32 %v1311, %v2723
        %v2731 = vadd.f32 %v1312, %v2725
        %v2732 = vadd.f32 %v1313, %v2727
        %v2733 = vld [vmem:[%s1035] sm:$0x3]
        %v2734 = vld [vmem:[%s1044] sm:$0x3]
        %v2735 = vadd.f32 %v2729, %v2730
        %2736 = vadd.xlane.f32.xlu0 %v2735
        %v2737 = vpop.xlane.xlu0 %2736
        %v2738 = vadd.f32 %v2731, %v2732
        %2739 = vadd.xlane.f32.xlu0 %v2738
        %v2740 = vpop.xlane.xlu0 %2739
        %v2741 = vrcp.pop 256.0
        %v2742 = vmul.f32 %v2737, %v2741
        %v2743 = vmul.f32 %v2740, %v2741
        %v2744 = vsub.f32 %v2729, %v2742
        %v2745 = vsub.f32 %v2730, %v2742
        %v2746 = vsub.f32 %v2731, %v2743
        %v2747 = vsub.f32 %v2732, %v2743
        %v2748 = vmul.f32 %v2744, %v2744
        %v2749 = vmul.f32 %v2745, %v2745
        %v2750 = vmul.f32 %v2746, %v2746
        %v2751 = vmul.f32 %v2747, %v2747
        %v2752 = vadd.f32 %v2748, %v2749
        %2753 = vadd.xlane.f32.xlu0 %v2752
        %v2754 = vpop.xlane.xlu0 %2753
        %v2755 = vadd.f32 %v2750, %v2751
        %2756 = vadd.xlane.f32.xlu0 %v2755
        %v2757 = vpop.xlane.xlu0 %2756
        %v2758 = vmul.f32 %v2754, %v2741
        %v2759 = vmul.f32 %v2757, %v2741
        %v2760 = vadd.f32 %v2758, 1e-05
        %v2761 = vadd.f32 %v2759, 1e-05
        %v2762 = vrsqrt.pop %v2760
        %v2763 = vrsqrt.pop %v2761
        %v2764 = vmul.f32 %v2744, %v2762
        %v2765 = vmul.f32 %v2745, %v2762
        %v2766 = vmul.f32 %v2746, %v2763
        %v2767 = vmul.f32 %v2747, %v2763
        %v2769 = vlaneseq
        %v2770 = vshrl.u32 %v2769, 7
        %v2771 = vsub.s32 0, %v2770
        %v2772 = vrot.slane %v2733, %v2771
        %v2773 = vlaneseq
        %v2774 = vshrl.u32 %v2773, 7
        %v2775 = vsub.s32 1, %v2774
        %v2776 = vrot.slane %v2733, %v2775
        %v2779 = vmul.f32 %v2764, %v2772
        %v2780 = vmul.f32 %v2765, %v2776
        %v2781 = vmul.f32 %v2766, %v2772
        %v2782 = vmul.f32 %v2767, %v2776
        %v2784 = vlaneseq
        %v2785 = vshrl.u32 %v2784, 7
        %v2786 = vsub.s32 0, %v2785
        %v2787 = vrot.slane %v2734, %v2786
        %v2788 = vlaneseq
        %v2789 = vshrl.u32 %v2788, 7
        %v2790 = vsub.s32 1, %v2789
        %v2791 = vrot.slane %v2734, %v2790
        %v2794 = vadd.f32 %v2779, %v2787
        %v2795 = vadd.f32 %v2780, %v2791
        %v2796 = vadd.f32 %v2781, %v2787
        %v2797 = vadd.f32 %v2782, %v2791
        %v2798 = vpack.c.bf16 %v2796, %v2794
        %v2799 = vpack.c.bf16 %v2797, %v2795
        %v2800 = vld [vmem:[%s999] sm:$0xff]
        %v2801 = vld [vmem:[%s999 + $0x8] sm:$0xff]
        %v2802 = vld [vmem:[%s999 + $0x10] sm:$0xff]
        %v2803 = vld [vmem:[%s999 + $0x18] sm:$0xff]
        %v2804 = vld [vmem:[%s999 + $0x20] sm:$0xff]
        %v2805 = vld [vmem:[%s999 + $0x28] sm:$0xff]
        %v2806 = vld [vmem:[%s999 + $0x30] sm:$0xff]
        %v2807 = vld [vmem:[%s999 + $0x38] sm:$0xff]
        %v2808 = vld [vmem:[%s999 + $0x40] sm:$0xff]
        %v2809 = vld [vmem:[%s999 + $0x48] sm:$0xff]
        %v2810 = vld [vmem:[%s999 + $0x50] sm:$0xff]
        %v2811 = vld [vmem:[%s999 + $0x58] sm:$0xff]
        %v2812 = vld [vmem:[%s999 + $0x60] sm:$0xff]
        %v2813 = vld [vmem:[%s999 + $0x68] sm:$0xff]
        %v2814 = vld [vmem:[%s999 + $0x70] sm:$0xff]
        %v2815 = vld [vmem:[%s999 + $0x78] sm:$0xff]
        %v2816 = vld [vmem:[%s999 + $0x80] sm:$0xff]
        %v2817 = vld [vmem:[%s999 + $0x88] sm:$0xff]
        %v2818 = vld [vmem:[%s999 + $0x90] sm:$0xff]
        %v2819 = vld [vmem:[%s999 + $0x98] sm:$0xff]
        %v2820 = vld [vmem:[%s999 + $0xa0] sm:$0xff]
        %v2821 = vld [vmem:[%s999 + $0xa8] sm:$0xff]
        %v2822 = vld [vmem:[%s999 + $0xb0] sm:$0xff]
        %v2823 = vld [vmem:[%s999 + $0xb8] sm:$0xff]
        %v2824 = vld [vmem:[%s999 + $0xc0] sm:$0xff]
        %v2825 = vld [vmem:[%s999 + $0xc8] sm:$0xff]
        %v2826 = vld [vmem:[%s999 + $0xd0] sm:$0xff]
        %v2827 = vld [vmem:[%s999 + $0xd8] sm:$0xff]
        %v2828 = vld [vmem:[%s999 + $0xe0] sm:$0xff]
        %v2829 = vld [vmem:[%s999 + $0xe8] sm:$0xff]
        %v2830 = vld [vmem:[%s999 + $0xf0] sm:$0xff]
        %v2831 = vld [vmem:[%s999 + $0xf8] sm:$0xff]
        %v2832 = vld [vmem:[%s999 + $0x100] sm:$0xff]
        %v2833 = vld [vmem:[%s999 + $0x108] sm:$0xff]
        %v2834 = vld [vmem:[%s999 + $0x110] sm:$0xff]
        %v2835 = vld [vmem:[%s999 + $0x118] sm:$0xff]
        %v2836 = vld [vmem:[%s999 + $0x120] sm:$0xff]
        %v2837 = vld [vmem:[%s999 + $0x128] sm:$0xff]
        %v2838 = vld [vmem:[%s999 + $0x130] sm:$0xff]
        %v2839 = vld [vmem:[%s999 + $0x138] sm:$0xff]
        %v2840 = vld [vmem:[%s999 + $0x140] sm:$0xff]
        %v2841 = vld [vmem:[%s999 + $0x148] sm:$0xff]
        %v2842 = vld [vmem:[%s999 + $0x150] sm:$0xff]
        %v2843 = vld [vmem:[%s999 + $0x158] sm:$0xff]
        %v2844 = vld [vmem:[%s999 + $0x160] sm:$0xff]
        %v2845 = vld [vmem:[%s999 + $0x168] sm:$0xff]
        %v2846 = vld [vmem:[%s999 + $0x170] sm:$0xff]
        %v2847 = vld [vmem:[%s999 + $0x178] sm:$0xff]
        %v2848 = vld [vmem:[%s999 + $0x180] sm:$0xff]
        %v2849 = vld [vmem:[%s999 + $0x188] sm:$0xff]
        %v2850 = vld [vmem:[%s999 + $0x190] sm:$0xff]
        %v2851 = vld [vmem:[%s999 + $0x198] sm:$0xff]
        %v2852 = vld [vmem:[%s999 + $0x1a0] sm:$0xff]
        %v2853 = vld [vmem:[%s999 + $0x1a8] sm:$0xff]
        %v2854 = vld [vmem:[%s999 + $0x1b0] sm:$0xff]
        %v2855 = vld [vmem:[%s999 + $0x1b8] sm:$0xff]
        %v2856 = vld [vmem:[%s999 + $0x1c0] sm:$0xff]
        %v2857 = vld [vmem:[%s999 + $0x1c8] sm:$0xff]
        %v2858 = vld [vmem:[%s999 + $0x1d0] sm:$0xff]
        %v2859 = vld [vmem:[%s999 + $0x1d8] sm:$0xff]
        %v2860 = vld [vmem:[%s999 + $0x1e0] sm:$0xff]
        %v2861 = vld [vmem:[%s999 + $0x1e8] sm:$0xff]
        %v2862 = vld [vmem:[%s999 + $0x1f0] sm:$0xff]
        %v2863 = vld [vmem:[%s999 + $0x1f8] sm:$0xff]
        %v2864 = vld [vmem:[%s999 + $0x200] sm:$0xff]
        %v2865 = vld [vmem:[%s999 + $0x208] sm:$0xff]
        %v2866 = vld [vmem:[%s999 + $0x210] sm:$0xff]
        %v2867 = vld [vmem:[%s999 + $0x218] sm:$0xff]
        %v2868 = vld [vmem:[%s999 + $0x220] sm:$0xff]
        %v2869 = vld [vmem:[%s999 + $0x228] sm:$0xff]
        %v2870 = vld [vmem:[%s999 + $0x230] sm:$0xff]
        %v2871 = vld [vmem:[%s999 + $0x238] sm:$0xff]
        %v2872 = vld [vmem:[%s999 + $0x240] sm:$0xff]
        %v2873 = vld [vmem:[%s999 + $0x248] sm:$0xff]
        %v2874 = vld [vmem:[%s999 + $0x250] sm:$0xff]
        %v2875 = vld [vmem:[%s999 + $0x258] sm:$0xff]
        %v2876 = vld [vmem:[%s999 + $0x260] sm:$0xff]
        %v2877 = vld [vmem:[%s999 + $0x268] sm:$0xff]
        %v2878 = vld [vmem:[%s999 + $0x270] sm:$0xff]
        %v2879 = vld [vmem:[%s999 + $0x278] sm:$0xff]
        %v2880 = vld [vmem:[%s999 + $0x280] sm:$0xff]
        %v2881 = vld [vmem:[%s999 + $0x288] sm:$0xff]
        %v2882 = vld [vmem:[%s999 + $0x290] sm:$0xff]
        %v2883 = vld [vmem:[%s999 + $0x298] sm:$0xff]
        %v2884 = vld [vmem:[%s999 + $0x2a0] sm:$0xff]
        %v2885 = vld [vmem:[%s999 + $0x2a8] sm:$0xff]
        %v2886 = vld [vmem:[%s999 + $0x2b0] sm:$0xff]
        %v2887 = vld [vmem:[%s999 + $0x2b8] sm:$0xff]
        %v2888 = vld [vmem:[%s999 + $0x2c0] sm:$0xff]
        %v2889 = vld [vmem:[%s999 + $0x2c8] sm:$0xff]
        %v2890 = vld [vmem:[%s999 + $0x2d0] sm:$0xff]
        %v2891 = vld [vmem:[%s999 + $0x2d8] sm:$0xff]
        %v2892 = vld [vmem:[%s999 + $0x2e0] sm:$0xff]
        %v2893 = vld [vmem:[%s999 + $0x2e8] sm:$0xff]
        %v2894 = vld [vmem:[%s999 + $0x2f0] sm:$0xff]
        %v2895 = vld [vmem:[%s999 + $0x2f8] sm:$0xff]
        %v2896 = vld [vmem:[%s999 + $0x300] sm:$0xff]
        %v2897 = vld [vmem:[%s999 + $0x308] sm:$0xff]
        %v2898 = vld [vmem:[%s999 + $0x310] sm:$0xff]
        %v2899 = vld [vmem:[%s999 + $0x318] sm:$0xff]
        %v2900 = vld [vmem:[%s999 + $0x320] sm:$0xff]
        %v2901 = vld [vmem:[%s999 + $0x328] sm:$0xff]
        %v2902 = vld [vmem:[%s999 + $0x330] sm:$0xff]
        %v2903 = vld [vmem:[%s999 + $0x338] sm:$0xff]
        %v2904 = vld [vmem:[%s999 + $0x340] sm:$0xff]
        %v2905 = vld [vmem:[%s999 + $0x348] sm:$0xff]
        %v2906 = vld [vmem:[%s999 + $0x350] sm:$0xff]
        %v2907 = vld [vmem:[%s999 + $0x358] sm:$0xff]
        %v2908 = vld [vmem:[%s999 + $0x360] sm:$0xff]
        %v2909 = vld [vmem:[%s999 + $0x368] sm:$0xff]
        %v2910 = vld [vmem:[%s999 + $0x370] sm:$0xff]
        %v2911 = vld [vmem:[%s999 + $0x378] sm:$0xff]
        %v2912 = vld [vmem:[%s999 + $0x380] sm:$0xff]
        %v2913 = vld [vmem:[%s999 + $0x388] sm:$0xff]
        %v2914 = vld [vmem:[%s999 + $0x390] sm:$0xff]
        %v2915 = vld [vmem:[%s999 + $0x398] sm:$0xff]
        %v2916 = vld [vmem:[%s999 + $0x3a0] sm:$0xff]
        %v2917 = vld [vmem:[%s999 + $0x3a8] sm:$0xff]
        %v2918 = vld [vmem:[%s999 + $0x3b0] sm:$0xff]
        %v2919 = vld [vmem:[%s999 + $0x3b8] sm:$0xff]
        %v2920 = vld [vmem:[%s999 + $0x3c0] sm:$0xff]
        %v2921 = vld [vmem:[%s999 + $0x3c8] sm:$0xff]
        %v2922 = vld [vmem:[%s999 + $0x3d0] sm:$0xff]
        %v2923 = vld [vmem:[%s999 + $0x3d8] sm:$0xff]
        %v2924 = vld [vmem:[%s999 + $0x3e0] sm:$0xff]
        %v2925 = vld [vmem:[%s999 + $0x3e8] sm:$0xff]
        %v2926 = vld [vmem:[%s999 + $0x3f0] sm:$0xff]
        %v2927 = vld [vmem:[%s999 + $0x3f8] sm:$0xff]
        %v2928 = vld [vmem:[%s1008] sm:$0xff]
        %v2930 = vlaneseq
        %v2931 = vshrl.u32 %v2930, 7
        %v2932 = vsub.s32 0, %v2931
        %v2933 = vrot.slane %v2928, %v2932
        %v2934 = vlaneseq
        %v2935 = vshrl.u32 %v2934, 7
        %v2936 = vsub.s32 1, %v2935
        %v2937 = vrot.slane %v2928, %v2936
        %v2938 = vlaneseq
        %v2939 = vshrl.u32 %v2938, 7
        %v2940 = vsub.s32 2, %v2939
        %v2941 = vrot.slane %v2928, %v2940
        %v2942 = vlaneseq
        %v2943 = vshrl.u32 %v2942, 7
        %v2944 = vsub.s32 3, %v2943
        %v2945 = vrot.slane %v2928, %v2944
        %v2946 = vlaneseq
        %v2947 = vshrl.u32 %v2946, 7
        %v2948 = vsub.s32 4, %v2947
        %v2949 = vrot.slane %v2928, %v2948
        %v2950 = vlaneseq
        %v2951 = vshrl.u32 %v2950, 7
        %v2952 = vsub.s32 5, %v2951
        %v2953 = vrot.slane %v2928, %v2952
        %v2954 = vlaneseq
        %v2955 = vshrl.u32 %v2954, 7
        %v2956 = vsub.s32 6, %v2955
        %v2957 = vrot.slane %v2928, %v2956
        %v2958 = vlaneseq
        %v2959 = vshrl.u32 %v2958, 7
        %v2960 = vsub.s32 7, %v2959
        %v2961 = vrot.slane %v2928, %v2960
        %v3098 = vunpack.c.l.b16 %v2800
        %v3099 = vunpack.c.h.b16 %v2800
        %v3100 = vunpack.c.l.b16 %v2801
        %v3101 = vunpack.c.h.b16 %v2801
        %v3102 = vunpack.c.l.b16 %v2802
        %v3103 = vunpack.c.h.b16 %v2802
        %v3104 = vunpack.c.l.b16 %v2803
        %v3105 = vunpack.c.h.b16 %v2803
        %v3106 = vunpack.c.l.b16 %v2804
        %v3107 = vunpack.c.h.b16 %v2804
        %v3108 = vunpack.c.l.b16 %v2805
        %v3109 = vunpack.c.h.b16 %v2805
        %v3110 = vunpack.c.l.b16 %v2806
        %v3111 = vunpack.c.h.b16 %v2806
        %v3112 = vunpack.c.l.b16 %v2807
        %v3113 = vunpack.c.h.b16 %v2807
        %v3114 = vunpack.c.l.b16 %v2808
        %v3115 = vunpack.c.h.b16 %v2808
        %v3116 = vunpack.c.l.b16 %v2809
        %v3117 = vunpack.c.h.b16 %v2809
        %v3118 = vunpack.c.l.b16 %v2810
        %v3119 = vunpack.c.h.b16 %v2810
        %v3120 = vunpack.c.l.b16 %v2811
        %v3121 = vunpack.c.h.b16 %v2811
        %v3122 = vunpack.c.l.b16 %v2812
        %v3123 = vunpack.c.h.b16 %v2812
        %v3124 = vunpack.c.l.b16 %v2813
        %v3125 = vunpack.c.h.b16 %v2813
        %v3126 = vunpack.c.l.b16 %v2814
        %v3127 = vunpack.c.h.b16 %v2814
        %v3128 = vunpack.c.l.b16 %v2815
        %v3129 = vunpack.c.h.b16 %v2815
        %v3130 = vunpack.c.l.b16 %v2816
        %v3131 = vunpack.c.h.b16 %v2816
        %v3132 = vunpack.c.l.b16 %v2817
        %v3133 = vunpack.c.h.b16 %v2817
        %v3134 = vunpack.c.l.b16 %v2818
        %v3135 = vunpack.c.h.b16 %v2818
        %v3136 = vunpack.c.l.b16 %v2819
        %v3137 = vunpack.c.h.b16 %v2819
        %v3138 = vunpack.c.l.b16 %v2820
        %v3139 = vunpack.c.h.b16 %v2820
        %v3140 = vunpack.c.l.b16 %v2821
        %v3141 = vunpack.c.h.b16 %v2821
        %v3142 = vunpack.c.l.b16 %v2822
        %v3143 = vunpack.c.h.b16 %v2822
        %v3144 = vunpack.c.l.b16 %v2823
        %v3145 = vunpack.c.h.b16 %v2823
        %v3146 = vunpack.c.l.b16 %v2824
        %v3147 = vunpack.c.h.b16 %v2824
        %v3148 = vunpack.c.l.b16 %v2825
        %v3149 = vunpack.c.h.b16 %v2825
        %v3150 = vunpack.c.l.b16 %v2826
        %v3151 = vunpack.c.h.b16 %v2826
        %v3152 = vunpack.c.l.b16 %v2827
        %v3153 = vunpack.c.h.b16 %v2827
        %v3154 = vunpack.c.l.b16 %v2828
        %v3155 = vunpack.c.h.b16 %v2828
        %v3156 = vunpack.c.l.b16 %v2829
        %v3157 = vunpack.c.h.b16 %v2829
        %v3158 = vunpack.c.l.b16 %v2830
        %v3159 = vunpack.c.h.b16 %v2830
        %v3160 = vunpack.c.l.b16 %v2831
        %v3161 = vunpack.c.h.b16 %v2831
        %v3162 = vunpack.c.l.b16 %v2832
        %v3163 = vunpack.c.h.b16 %v2832
        %v3164 = vunpack.c.l.b16 %v2833
        %v3165 = vunpack.c.h.b16 %v2833
        %v3166 = vunpack.c.l.b16 %v2834
        %v3167 = vunpack.c.h.b16 %v2834
        %v3168 = vunpack.c.l.b16 %v2835
        %v3169 = vunpack.c.h.b16 %v2835
        %v3170 = vunpack.c.l.b16 %v2836
        %v3171 = vunpack.c.h.b16 %v2836
        %v3172 = vunpack.c.l.b16 %v2837
        %v3173 = vunpack.c.h.b16 %v2837
        %v3174 = vunpack.c.l.b16 %v2838
        %v3175 = vunpack.c.h.b16 %v2838
        %v3176 = vunpack.c.l.b16 %v2839
        %v3177 = vunpack.c.h.b16 %v2839
        %v3178 = vunpack.c.l.b16 %v2840
        %v3179 = vunpack.c.h.b16 %v2840
        %v3180 = vunpack.c.l.b16 %v2841
        %v3181 = vunpack.c.h.b16 %v2841
        %v3182 = vunpack.c.l.b16 %v2842
        %v3183 = vunpack.c.h.b16 %v2842
        %v3184 = vunpack.c.l.b16 %v2843
        %v3185 = vunpack.c.h.b16 %v2843
        %v3186 = vunpack.c.l.b16 %v2844
        %v3187 = vunpack.c.h.b16 %v2844
        %v3188 = vunpack.c.l.b16 %v2845
        %v3189 = vunpack.c.h.b16 %v2845
        %v3190 = vunpack.c.l.b16 %v2846
        %v3191 = vunpack.c.h.b16 %v2846
        %v3192 = vunpack.c.l.b16 %v2847
        %v3193 = vunpack.c.h.b16 %v2847
        %v3194 = vunpack.c.l.b16 %v2848
        %v3195 = vunpack.c.h.b16 %v2848
        %v3196 = vunpack.c.l.b16 %v2849
        %v3197 = vunpack.c.h.b16 %v2849
        %v3198 = vunpack.c.l.b16 %v2850
        %v3199 = vunpack.c.h.b16 %v2850
        %v3200 = vunpack.c.l.b16 %v2851
        %v3201 = vunpack.c.h.b16 %v2851
        %v3202 = vunpack.c.l.b16 %v2852
        %v3203 = vunpack.c.h.b16 %v2852
        %v3204 = vunpack.c.l.b16 %v2853
        %v3205 = vunpack.c.h.b16 %v2853
        %v3206 = vunpack.c.l.b16 %v2854
        %v3207 = vunpack.c.h.b16 %v2854
        %v3208 = vunpack.c.l.b16 %v2855
        %v3209 = vunpack.c.h.b16 %v2855
        %v3210 = vunpack.c.l.b16 %v2856
        %v3211 = vunpack.c.h.b16 %v2856
        %v3212 = vunpack.c.l.b16 %v2857
        %v3213 = vunpack.c.h.b16 %v2857
        %v3214 = vunpack.c.l.b16 %v2858
        %v3215 = vunpack.c.h.b16 %v2858
        %v3216 = vunpack.c.l.b16 %v2859
        %v3217 = vunpack.c.h.b16 %v2859
        %v3218 = vunpack.c.l.b16 %v2860
        %v3219 = vunpack.c.h.b16 %v2860
        %v3220 = vunpack.c.l.b16 %v2861
        %v3221 = vunpack.c.h.b16 %v2861
        %v3222 = vunpack.c.l.b16 %v2862
        %v3223 = vunpack.c.h.b16 %v2862
        %v3224 = vunpack.c.l.b16 %v2863
        %v3225 = vunpack.c.h.b16 %v2863
        %v3226 = vunpack.c.l.b16 %v2864
        %v3227 = vunpack.c.h.b16 %v2864
        %v3228 = vunpack.c.l.b16 %v2865
        %v3229 = vunpack.c.h.b16 %v2865
        %v3230 = vunpack.c.l.b16 %v2866
        %v3231 = vunpack.c.h.b16 %v2866
        %v3232 = vunpack.c.l.b16 %v2867
        %v3233 = vunpack.c.h.b16 %v2867
        %v3234 = vunpack.c.l.b16 %v2868
        %v3235 = vunpack.c.h.b16 %v2868
        %v3236 = vunpack.c.l.b16 %v2869
        %v3237 = vunpack.c.h.b16 %v2869
        %v3238 = vunpack.c.l.b16 %v2870
        %v3239 = vunpack.c.h.b16 %v2870
        %v3240 = vunpack.c.l.b16 %v2871
        %v3241 = vunpack.c.h.b16 %v2871
        %v3242 = vunpack.c.l.b16 %v2872
        %v3243 = vunpack.c.h.b16 %v2872
        %v3244 = vunpack.c.l.b16 %v2873
        %v3245 = vunpack.c.h.b16 %v2873
        %v3246 = vunpack.c.l.b16 %v2874
        %v3247 = vunpack.c.h.b16 %v2874
        %v3248 = vunpack.c.l.b16 %v2875
        %v3249 = vunpack.c.h.b16 %v2875
        %v3250 = vunpack.c.l.b16 %v2876
        %v3251 = vunpack.c.h.b16 %v2876
        %v3252 = vunpack.c.l.b16 %v2877
        %v3253 = vunpack.c.h.b16 %v2877
        %v3254 = vunpack.c.l.b16 %v2878
        %v3255 = vunpack.c.h.b16 %v2878
        %v3256 = vunpack.c.l.b16 %v2879
        %v3257 = vunpack.c.h.b16 %v2879
        %v3258 = vunpack.c.l.b16 %v2880
        %v3259 = vunpack.c.h.b16 %v2880
        %v3260 = vunpack.c.l.b16 %v2881
        %v3261 = vunpack.c.h.b16 %v2881
        %v3262 = vunpack.c.l.b16 %v2882
        %v3263 = vunpack.c.h.b16 %v2882
        %v3264 = vunpack.c.l.b16 %v2883
        %v3265 = vunpack.c.h.b16 %v2883
        %v3266 = vunpack.c.l.b16 %v2884
        %v3267 = vunpack.c.h.b16 %v2884
        %v3268 = vunpack.c.l.b16 %v2885
        %v3269 = vunpack.c.h.b16 %v2885
        %v3270 = vunpack.c.l.b16 %v2886
        %v3271 = vunpack.c.h.b16 %v2886
        %v3272 = vunpack.c.l.b16 %v2887
        %v3273 = vunpack.c.h.b16 %v2887
        %v3274 = vunpack.c.l.b16 %v2888
        %v3275 = vunpack.c.h.b16 %v2888
        %v3276 = vunpack.c.l.b16 %v2889
        %v3277 = vunpack.c.h.b16 %v2889
        %v3278 = vunpack.c.l.b16 %v2890
        %v3279 = vunpack.c.h.b16 %v2890
        %v3280 = vunpack.c.l.b16 %v2891
        %v3281 = vunpack.c.h.b16 %v2891
        %v3282 = vunpack.c.l.b16 %v2892
        %v3283 = vunpack.c.h.b16 %v2892
        %v3284 = vunpack.c.l.b16 %v2893
        %v3285 = vunpack.c.h.b16 %v2893
        %v3286 = vunpack.c.l.b16 %v2894
        %v3287 = vunpack.c.h.b16 %v2894
        %v3288 = vunpack.c.l.b16 %v2895
        %v3289 = vunpack.c.h.b16 %v2895
        %v3290 = vunpack.c.l.b16 %v2896
        %v3291 = vunpack.c.h.b16 %v2896
        %v3292 = vunpack.c.l.b16 %v2897
        %v3293 = vunpack.c.h.b16 %v2897
        %v3294 = vunpack.c.l.b16 %v2898
        %v3295 = vunpack.c.h.b16 %v2898
        %v3296 = vunpack.c.l.b16 %v2899
        %v3297 = vunpack.c.h.b16 %v2899
        %v3298 = vunpack.c.l.b16 %v2900
        %v3299 = vunpack.c.h.b16 %v2900
        %v3300 = vunpack.c.l.b16 %v2901
        %v3301 = vunpack.c.h.b16 %v2901
        %v3302 = vunpack.c.l.b16 %v2902
        %v3303 = vunpack.c.h.b16 %v2902
        %v3304 = vunpack.c.l.b16 %v2903
        %v3305 = vunpack.c.h.b16 %v2903
        %v3306 = vunpack.c.l.b16 %v2904
        %v3307 = vunpack.c.h.b16 %v2904
        %v3308 = vunpack.c.l.b16 %v2905
        %v3309 = vunpack.c.h.b16 %v2905
        %v3310 = vunpack.c.l.b16 %v2906
        %v3311 = vunpack.c.h.b16 %v2906
        %v3312 = vunpack.c.l.b16 %v2907
        %v3313 = vunpack.c.h.b16 %v2907
        %v3314 = vunpack.c.l.b16 %v2908
        %v3315 = vunpack.c.h.b16 %v2908
        %v3316 = vunpack.c.l.b16 %v2909
        %v3317 = vunpack.c.h.b16 %v2909
        %v3318 = vunpack.c.l.b16 %v2910
        %v3319 = vunpack.c.h.b16 %v2910
        %v3320 = vunpack.c.l.b16 %v2911
        %v3321 = vunpack.c.h.b16 %v2911
        %v3322 = vunpack.c.l.b16 %v2912
        %v3323 = vunpack.c.h.b16 %v2912
        %v3324 = vunpack.c.l.b16 %v2913
        %v3325 = vunpack.c.h.b16 %v2913
        %v3326 = vunpack.c.l.b16 %v2914
        %v3327 = vunpack.c.h.b16 %v2914
        %v3328 = vunpack.c.l.b16 %v2915
        %v3329 = vunpack.c.h.b16 %v2915
        %v3330 = vunpack.c.l.b16 %v2916
        %v3331 = vunpack.c.h.b16 %v2916
        %v3332 = vunpack.c.l.b16 %v2917
        %v3333 = vunpack.c.h.b16 %v2917
        %v3334 = vunpack.c.l.b16 %v2918
        %v3335 = vunpack.c.h.b16 %v2918
        %v3336 = vunpack.c.l.b16 %v2919
        %v3337 = vunpack.c.h.b16 %v2919
        %v3338 = vunpack.c.l.b16 %v2920
        %v3339 = vunpack.c.h.b16 %v2920
        %v3340 = vunpack.c.l.b16 %v2921
        %v3341 = vunpack.c.h.b16 %v2921
        %v3342 = vunpack.c.l.b16 %v2922
        %v3343 = vunpack.c.h.b16 %v2922
        %v3344 = vunpack.c.l.b16 %v2923
        %v3345 = vunpack.c.h.b16 %v2923
        %v3346 = vunpack.c.l.b16 %v2924
        %v3347 = vunpack.c.h.b16 %v2924
        %v3348 = vunpack.c.l.b16 %v2925
        %v3349 = vunpack.c.h.b16 %v2925
        %v3350 = vunpack.c.l.b16 %v2926
        %v3351 = vunpack.c.h.b16 %v2926
        %v3352 = vunpack.c.l.b16 %v2927
        %v3353 = vunpack.c.h.b16 %v2927
        %v3354 = vpack.c.b16 %v3106, %v3098
        %v3355 = vpack.c.b16 %v3107, %v3099
        %v3356 = vpack.c.b16 %v3108, %v3100
        %v3357 = vpack.c.b16 %v3109, %v3101
        %v3358 = vpack.c.b16 %v3110, %v3102
        %v3359 = vpack.c.b16 %v3111, %v3103
        %v3360 = vpack.c.b16 %v3112, %v3104
        %v3361 = vpack.c.b16 %v3113, %v3105
        %v3362 = vpack.c.b16 %v3122, %v3114
        %v3363 = vpack.c.b16 %v3123, %v3115
        %v3364 = vpack.c.b16 %v3124, %v3116
        %v3365 = vpack.c.b16 %v3125, %v3117
        %v3366 = vpack.c.b16 %v3126, %v3118
        %v3367 = vpack.c.b16 %v3127, %v3119
        %v3368 = vpack.c.b16 %v3128, %v3120
        %v3369 = vpack.c.b16 %v3129, %v3121
        %v3370 = vpack.c.b16 %v3138, %v3130
        %v3371 = vpack.c.b16 %v3139, %v3131
        %v3372 = vpack.c.b16 %v3140, %v3132
        %v3373 = vpack.c.b16 %v3141, %v3133
        %v3374 = vpack.c.b16 %v3142, %v3134
        %v3375 = vpack.c.b16 %v3143, %v3135
        %v3376 = vpack.c.b16 %v3144, %v3136
        %v3377 = vpack.c.b16 %v3145, %v3137
        %v3378 = vpack.c.b16 %v3154, %v3146
        %v3379 = vpack.c.b16 %v3155, %v3147
        %v3380 = vpack.c.b16 %v3156, %v3148
        %v3381 = vpack.c.b16 %v3157, %v3149
        %v3382 = vpack.c.b16 %v3158, %v3150
        %v3383 = vpack.c.b16 %v3159, %v3151
        %v3384 = vpack.c.b16 %v3160, %v3152
        %v3385 = vpack.c.b16 %v3161, %v3153
        %v3386 = vpack.c.b16 %v3170, %v3162
        %v3387 = vpack.c.b16 %v3171, %v3163
        %v3388 = vpack.c.b16 %v3172, %v3164
        %v3389 = vpack.c.b16 %v3173, %v3165
        %v3390 = vpack.c.b16 %v3174, %v3166
        %v3391 = vpack.c.b16 %v3175, %v3167
        %v3392 = vpack.c.b16 %v3176, %v3168
        %v3393 = vpack.c.b16 %v3177, %v3169
        %v3394 = vpack.c.b16 %v3186, %v3178
        %v3395 = vpack.c.b16 %v3187, %v3179
        %v3396 = vpack.c.b16 %v3188, %v3180
        %v3397 = vpack.c.b16 %v3189, %v3181
        %v3398 = vpack.c.b16 %v3190, %v3182
        %v3399 = vpack.c.b16 %v3191, %v3183
        %v3400 = vpack.c.b16 %v3192, %v3184
        %v3401 = vpack.c.b16 %v3193, %v3185
        %v3402 = vpack.c.b16 %v3202, %v3194
        %v3403 = vpack.c.b16 %v3203, %v3195
        %v3404 = vpack.c.b16 %v3204, %v3196
        %v3405 = vpack.c.b16 %v3205, %v3197
        %v3406 = vpack.c.b16 %v3206, %v3198
        %v3407 = vpack.c.b16 %v3207, %v3199
        %v3408 = vpack.c.b16 %v3208, %v3200
        %v3409 = vpack.c.b16 %v3209, %v3201
        %v3410 = vpack.c.b16 %v3218, %v3210
        %v3411 = vpack.c.b16 %v3219, %v3211
        %v3412 = vpack.c.b16 %v3220, %v3212
        %v3413 = vpack.c.b16 %v3221, %v3213
        %v3414 = vpack.c.b16 %v3222, %v3214
        %v3415 = vpack.c.b16 %v3223, %v3215
        %v3416 = vpack.c.b16 %v3224, %v3216
        %v3417 = vpack.c.b16 %v3225, %v3217
        %v3418 = vpack.c.b16 %v3234, %v3226
        %v3419 = vpack.c.b16 %v3235, %v3227
        %v3420 = vpack.c.b16 %v3236, %v3228
        %v3421 = vpack.c.b16 %v3237, %v3229
        %v3422 = vpack.c.b16 %v3238, %v3230
        %v3423 = vpack.c.b16 %v3239, %v3231
        %v3424 = vpack.c.b16 %v3240, %v3232
        %v3425 = vpack.c.b16 %v3241, %v3233
        %v3426 = vpack.c.b16 %v3250, %v3242
        %v3427 = vpack.c.b16 %v3251, %v3243
        %v3428 = vpack.c.b16 %v3252, %v3244
        %v3429 = vpack.c.b16 %v3253, %v3245
        %v3430 = vpack.c.b16 %v3254, %v3246
        %v3431 = vpack.c.b16 %v3255, %v3247
        %v3432 = vpack.c.b16 %v3256, %v3248
        %v3433 = vpack.c.b16 %v3257, %v3249
        %v3434 = vpack.c.b16 %v3266, %v3258
        %v3435 = vpack.c.b16 %v3267, %v3259
        %v3436 = vpack.c.b16 %v3268, %v3260
        %v3437 = vpack.c.b16 %v3269, %v3261
        %v3438 = vpack.c.b16 %v3270, %v3262
        %v3439 = vpack.c.b16 %v3271, %v3263
        %v3440 = vpack.c.b16 %v3272, %v3264
        %v3441 = vpack.c.b16 %v3273, %v3265
        %v3442 = vpack.c.b16 %v3282, %v3274
        %v3443 = vpack.c.b16 %v3283, %v3275
        %v3444 = vpack.c.b16 %v3284, %v3276
        %v3445 = vpack.c.b16 %v3285, %v3277
        %v3446 = vpack.c.b16 %v3286, %v3278
        %v3447 = vpack.c.b16 %v3287, %v3279
        %v3448 = vpack.c.b16 %v3288, %v3280
        %v3449 = vpack.c.b16 %v3289, %v3281
        %v3450 = vpack.c.b16 %v3298, %v3290
        %v3451 = vpack.c.b16 %v3299, %v3291
        %v3452 = vpack.c.b16 %v3300, %v3292
        %v3453 = vpack.c.b16 %v3301, %v3293
        %v3454 = vpack.c.b16 %v3302, %v3294
        %v3455 = vpack.c.b16 %v3303, %v3295
        %v3456 = vpack.c.b16 %v3304, %v3296
        %v3457 = vpack.c.b16 %v3305, %v3297
        %v3458 = vpack.c.b16 %v3314, %v3306
        %v3459 = vpack.c.b16 %v3315, %v3307
        %v3460 = vpack.c.b16 %v3316, %v3308
        %v3461 = vpack.c.b16 %v3317, %v3309
        %v3462 = vpack.c.b16 %v3318, %v3310
        %v3463 = vpack.c.b16 %v3319, %v3311
        %v3464 = vpack.c.b16 %v3320, %v3312
        %v3465 = vpack.c.b16 %v3321, %v3313
        %v3466 = vpack.c.b16 %v3330, %v3322
        %v3467 = vpack.c.b16 %v3331, %v3323
        %v3468 = vpack.c.b16 %v3332, %v3324
        %v3469 = vpack.c.b16 %v3333, %v3325
        %v3470 = vpack.c.b16 %v3334, %v3326
        %v3471 = vpack.c.b16 %v3335, %v3327
        %v3472 = vpack.c.b16 %v3336, %v3328
        %v3473 = vpack.c.b16 %v3337, %v3329
        %v3474 = vpack.c.b16 %v3346, %v3338
        %v3475 = vpack.c.b16 %v3347, %v3339
        %v3476 = vpack.c.b16 %v3348, %v3340
        %v3477 = vpack.c.b16 %v3349, %v3341
        %v3478 = vpack.c.b16 %v3350, %v3342
        %v3479 = vpack.c.b16 %v3351, %v3343
        %v3480 = vpack.c.b16 %v3352, %v3344
        %v3481 = vpack.c.b16 %v3353, %v3345
        %3610 = vmatprep.subr.bf16.mxu0 %v3411
        %3611 = vmatpush1.bf16.msra.mxu0 %v3410
        %3612 = vmatprep.subr.bf16.mxu0 %v3403
        %3613 = vmatpush1.bf16.msra.mxu0 %v3402
        %3614 = vmatprep.subr.bf16.mxu0 %v3395
        %3615 = vmatpush1.bf16.msra.mxu0 %v3394
        %3616 = vmatprep.subr.bf16.mxu0 %v3387
        %3617 = vmatpush1.bf16.msra.mxu0 %v3386
        %3618 = vmatprep.subr.bf16.mxu0 %v3379
        %3619 = vmatpush1.bf16.msra.mxu0 %v3378
        %3620 = vmatprep.subr.bf16.mxu0 %v3371
        %3621 = vmatpush1.bf16.msra.mxu0 %v3370
        %3622 = vmatprep.subr.bf16.mxu0 %v3363
        %3623 = vmatpush1.bf16.msra.mxu0 %v3362
        %3624 = vmatprep.subr.bf16.mxu0 %v3355
        %3625 = vmatpush1.bf16.msra.mxu0 %v3354
        %3626 = vmatprep.subr.bf16.mxu0 %v3475
        %3627 = vmatpush2.bf16.msra.mxu0 %v3474
        %3628 = vmatprep.subr.bf16.mxu0 %v3467
        %3629 = vmatpush2.bf16.msra.mxu0 %v3466
        %3630 = vmatprep.subr.bf16.mxu0 %v3459
        %3631 = vmatpush2.bf16.msra.mxu0 %v3458
        %3632 = vmatprep.subr.bf16.mxu0 %v3451
        %3633 = vmatpush2.bf16.msra.mxu0 %v3450
        %3634 = vmatprep.subr.bf16.mxu0 %v3443
        %3635 = vmatpush2.bf16.msra.mxu0 %v3442
        %3636 = vmatprep.subr.bf16.mxu0 %v3435
        %3637 = vmatpush2.bf16.msra.mxu0 %v3434
        %3638 = vmatprep.subr.bf16.mxu0 %v3427
        %3639 = vmatpush2.bf16.msra.mxu0 %v3426
        %3640 = vmatprep.subr.bf16.mxu0 %v3419
        %3641 = vmatpush2.bf16.msra.mxu0 %v3418
        %3642 = vmatprep.mubr.bf16.mxu0 %v2799
        %3643 = vmatmul.mubr.bf16.gmra.mxu0 %v2798
        %v3644 = vpop.f32.mrf.mxu0
        %v3645 = vadd.f32 %v2933, %v3644
        %v3646 = vpop.f32.mrf.mxu0
        %v3647 = vadd.f32 %v2937, %v3646
        %v3648 = vpop.f32.mrf.mxu0
        %v3649 = vadd.f32 %v2933, %v3648
        %v3650 = vpop.f32.mrf.mxu0
        %v3651 = vadd.f32 %v2937, %v3650
        %3652 = vdwg.mxu0
        %3653 = vmatprep.subr.bf16.mxu0 %v3413
        %3654 = vmatpush1.bf16.msra.mxu0 %v3412
        %3655 = vmatprep.subr.bf16.mxu0 %v3405
        %3656 = vmatpush1.bf16.msra.mxu0 %v3404
        %3657 = vmatprep.subr.bf16.mxu0 %v3397
        %3658 = vmatpush1.bf16.msra.mxu0 %v3396
        %3659 = vmatprep.subr.bf16.mxu0 %v3389
        %3660 = vmatpush1.bf16.msra.mxu0 %v3388
        %3661 = vmatprep.subr.bf16.mxu0 %v3381
        %3662 = vmatpush1.bf16.msra.mxu0 %v3380
        %3663 = vmatprep.subr.bf16.mxu0 %v3373
        %3664 = vmatpush1.bf16.msra.mxu0 %v3372
        %3665 = vmatprep.subr.bf16.mxu0 %v3365
        %3666 = vmatpush1.bf16.msra.mxu0 %v3364
        %3667 = vmatprep.subr.bf16.mxu0 %v3357
        %3668 = vmatpush1.bf16.msra.mxu0 %v3356
        %3669 = vmatprep.subr.bf16.mxu0 %v3477
        %3670 = vmatpush2.bf16.msra.mxu0 %v3476
        %3671 = vmatprep.subr.bf16.mxu0 %v3469
        %3672 = vmatpush2.bf16.msra.mxu0 %v3468
        %3673 = vmatprep.subr.bf16.mxu0 %v3461
        %3674 = vmatpush2.bf16.msra.mxu0 %v3460
        %3675 = vmatprep.subr.bf16.mxu0 %v3453
        %3676 = vmatpush2.bf16.msra.mxu0 %v3452
        %3677 = vmatprep.subr.bf16.mxu0 %v3445
        %3678 = vmatpush2.bf16.msra.mxu0 %v3444
        %3679 = vmatprep.subr.bf16.mxu0 %v3437
        %3680 = vmatpush2.bf16.msra.mxu0 %v3436
        %3681 = vmatprep.subr.bf16.mxu0 %v3429
        %3682 = vmatpush2.bf16.msra.mxu0 %v3428
        %3683 = vmatprep.subr.bf16.mxu0 %v3421
        %3684 = vmatpush2.bf16.msra.mxu0 %v3420
        %3685 = vmatprep.mubr.bf16.mxu0 %v2799
        %3686 = vmatmul.mubr.bf16.gmra.mxu0 %v2798
        %v3687 = vpop.f32.mrf.mxu0
        %v3688 = vadd.f32 %v2941, %v3687
        %v3689 = vpop.f32.mrf.mxu0
        %v3690 = vadd.f32 %v2945, %v3689
        %v3691 = vpop.f32.mrf.mxu0
        %v3692 = vadd.f32 %v2941, %v3691
        %v3693 = vpop.f32.mrf.mxu0
        %v3694 = vadd.f32 %v2945, %v3693
        %3695 = vdwg.mxu0
        %3696 = vmatprep.subr.bf16.mxu0 %v3415
        %3697 = vmatpush1.bf16.msra.mxu0 %v3414
        %3698 = vmatprep.subr.bf16.mxu0 %v3407
        %3699 = vmatpush1.bf16.msra.mxu0 %v3406
        %3700 = vmatprep.subr.bf16.mxu0 %v3399
        %3701 = vmatpush1.bf16.msra.mxu0 %v3398
        %3702 = vmatprep.subr.bf16.mxu0 %v3391
        %3703 = vmatpush1.bf16.msra.mxu0 %v3390
        %3704 = vmatprep.subr.bf16.mxu0 %v3383
        %3705 = vmatpush1.bf16.msra.mxu0 %v3382
        %3706 = vmatprep.subr.bf16.mxu0 %v3375
        %3707 = vmatpush1.bf16.msra.mxu0 %v3374
        %3708 = vmatprep.subr.bf16.mxu0 %v3367
        %3709 = vmatpush1.bf16.msra.mxu0 %v3366
        %3710 = vmatprep.subr.bf16.mxu0 %v3359
        %3711 = vmatpush1.bf16.msra.mxu0 %v3358
        %3712 = vmatprep.subr.bf16.mxu0 %v3479
        %3713 = vmatpush2.bf16.msra.mxu0 %v3478
        %3714 = vmatprep.subr.bf16.mxu0 %v3471
        %3715 = vmatpush2.bf16.msra.mxu0 %v3470
        %3716 = vmatprep.subr.bf16.mxu0 %v3463
        %3717 = vmatpush2.bf16.msra.mxu0 %v3462
        %3718 = vmatprep.subr.bf16.mxu0 %v3455
        %3719 = vmatpush2.bf16.msra.mxu0 %v3454
        %3720 = vmatprep.subr.bf16.mxu0 %v3447
        %3721 = vmatpush2.bf16.msra.mxu0 %v3446
        %3722 = vmatprep.subr.bf16.mxu0 %v3439
        %3723 = vmatpush2.bf16.msra.mxu0 %v3438
        %3724 = vmatprep.subr.bf16.mxu0 %v3431
        %3725 = vmatpush2.bf16.msra.mxu0 %v3430
        %3726 = vmatprep.subr.bf16.mxu0 %v3423
        %3727 = vmatpush2.bf16.msra.mxu0 %v3422
        %3728 = vmatprep.mubr.bf16.mxu0 %v2799
        %3729 = vmatmul.mubr.bf16.gmra.mxu0 %v2798
        %v3730 = vpop.f32.mrf.mxu0
        %v3731 = vadd.f32 %v2949, %v3730
        %v3732 = vpop.f32.mrf.mxu0
        %v3733 = vadd.f32 %v2953, %v3732
        %v3734 = vpop.f32.mrf.mxu0
        %v3735 = vadd.f32 %v2949, %v3734
        %v3736 = vpop.f32.mrf.mxu0
        %v3737 = vadd.f32 %v2953, %v3736
        %3738 = vdwg.mxu0
        %3739 = vmatprep.subr.bf16.mxu0 %v3417
        %3740 = vmatpush1.bf16.msra.mxu0 %v3416
        %3741 = vmatprep.subr.bf16.mxu0 %v3409
        %3742 = vmatpush1.bf16.msra.mxu0 %v3408
        %3743 = vmatprep.subr.bf16.mxu0 %v3401
        %3744 = vmatpush1.bf16.msra.mxu0 %v3400
        %3745 = vmatprep.subr.bf16.mxu0 %v3393
        %3746 = vmatpush1.bf16.msra.mxu0 %v3392
        %3747 = vmatprep.subr.bf16.mxu0 %v3385
        %3748 = vmatpush1.bf16.msra.mxu0 %v3384
        %3749 = vmatprep.subr.bf16.mxu0 %v3377
        %3750 = vmatpush1.bf16.msra.mxu0 %v3376
        %3751 = vmatprep.subr.bf16.mxu0 %v3369
        %3752 = vmatpush1.bf16.msra.mxu0 %v3368
        %3753 = vmatprep.subr.bf16.mxu0 %v3361
        %3754 = vmatpush1.bf16.msra.mxu0 %v3360
        %3755 = vmatprep.subr.bf16.mxu0 %v3481
        %3756 = vmatpush2.bf16.msra.mxu0 %v3480
        %3757 = vmatprep.subr.bf16.mxu0 %v3473
        %3758 = vmatpush2.bf16.msra.mxu0 %v3472
        %3759 = vmatprep.subr.bf16.mxu0 %v3465
        %3760 = vmatpush2.bf16.msra.mxu0 %v3464
        %3761 = vmatprep.subr.bf16.mxu0 %v3457
        %3762 = vmatpush2.bf16.msra.mxu0 %v3456
        %3763 = vmatprep.subr.bf16.mxu0 %v3449
        %3764 = vmatpush2.bf16.msra.mxu0 %v3448
        %3765 = vmatprep.subr.bf16.mxu0 %v3441
        %3766 = vmatpush2.bf16.msra.mxu0 %v3440
        %3767 = vmatprep.subr.bf16.mxu0 %v3433
        %3768 = vmatpush2.bf16.msra.mxu0 %v3432
        %3769 = vmatprep.subr.bf16.mxu0 %v3425
        %3770 = vmatpush2.bf16.msra.mxu0 %v3424
        %3771 = vmatprep.mubr.bf16.mxu0 %v2799
        %3772 = vmatmul.mubr.bf16.gmra.mxu0 %v2798
        %v3773 = vpop.f32.mrf.mxu0
        %v3774 = vadd.f32 %v2957, %v3773
        %v3775 = vpop.f32.mrf.mxu0
        %v3776 = vadd.f32 %v2961, %v3775
        %v3777 = vpop.f32.mrf.mxu0
        %v3778 = vadd.f32 %v2957, %v3777
        %v3779 = vpop.f32.mrf.mxu0
        %v3780 = vadd.f32 %v2961, %v3779
        %3781 = vdwg.mxu0
        %v3782 = vmax.f32 %v3645, 0.0
        %v3783 = vmax.f32 %v3647, 0.0
        %v3784 = vmax.f32 %v3688, 0.0
        %v3785 = vmax.f32 %v3690, 0.0
        %v3786 = vmax.f32 %v3731, 0.0
        %v3787 = vmax.f32 %v3733, 0.0
        %v3788 = vmax.f32 %v3774, 0.0
        %v3789 = vmax.f32 %v3776, 0.0
        %v3790 = vmax.f32 %v3649, 0.0
        %v3791 = vmax.f32 %v3651, 0.0
        %v3792 = vmax.f32 %v3692, 0.0
        %v3793 = vmax.f32 %v3694, 0.0
        %v3794 = vmax.f32 %v3735, 0.0
        %v3795 = vmax.f32 %v3737, 0.0
        %v3796 = vmax.f32 %v3778, 0.0
        %v3797 = vmax.f32 %v3780, 0.0
        %v3798 = vpack.c.bf16 %v3790, %v3782
        %v3799 = vpack.c.bf16 %v3791, %v3783
        %v3800 = vpack.c.bf16 %v3792, %v3784
        %v3801 = vpack.c.bf16 %v3793, %v3785
        %v3802 = vpack.c.bf16 %v3794, %v3786
        %v3803 = vpack.c.bf16 %v3795, %v3787
        %v3804 = vpack.c.bf16 %v3796, %v3788
        %v3805 = vpack.c.bf16 %v3797, %v3789
        %v3806 = vld [vmem:[%s1017] sm:$0xff]
        %v3807 = vld [vmem:[%s1017 + $0x8] sm:$0xff]
        %v3808 = vld [vmem:[%s1017 + $0x10] sm:$0xff]
        %v3809 = vld [vmem:[%s1017 + $0x18] sm:$0xff]
        %v3810 = vld [vmem:[%s1017 + $0x20] sm:$0xff]
        %v3811 = vld [vmem:[%s1017 + $0x28] sm:$0xff]
        %v3812 = vld [vmem:[%s1017 + $0x30] sm:$0xff]
        %v3813 = vld [vmem:[%s1017 + $0x38] sm:$0xff]
        %v3814 = vld [vmem:[%s1017 + $0x40] sm:$0xff]
        %v3815 = vld [vmem:[%s1017 + $0x48] sm:$0xff]
        %v3816 = vld [vmem:[%s1017 + $0x50] sm:$0xff]
        %v3817 = vld [vmem:[%s1017 + $0x58] sm:$0xff]
        %v3818 = vld [vmem:[%s1017 + $0x60] sm:$0xff]
        %v3819 = vld [vmem:[%s1017 + $0x68] sm:$0xff]
        %v3820 = vld [vmem:[%s1017 + $0x70] sm:$0xff]
        %v3821 = vld [vmem:[%s1017 + $0x78] sm:$0xff]
        %v3822 = vld [vmem:[%s1017 + $0x80] sm:$0xff]
        %v3823 = vld [vmem:[%s1017 + $0x88] sm:$0xff]
        %v3824 = vld [vmem:[%s1017 + $0x90] sm:$0xff]
        %v3825 = vld [vmem:[%s1017 + $0x98] sm:$0xff]
        %v3826 = vld [vmem:[%s1017 + $0xa0] sm:$0xff]
        %v3827 = vld [vmem:[%s1017 + $0xa8] sm:$0xff]
        %v3828 = vld [vmem:[%s1017 + $0xb0] sm:$0xff]
        %v3829 = vld [vmem:[%s1017 + $0xb8] sm:$0xff]
        %v3830 = vld [vmem:[%s1017 + $0xc0] sm:$0xff]
        %v3831 = vld [vmem:[%s1017 + $0xc8] sm:$0xff]
        %v3832 = vld [vmem:[%s1017 + $0xd0] sm:$0xff]
        %v3833 = vld [vmem:[%s1017 + $0xd8] sm:$0xff]
        %v3834 = vld [vmem:[%s1017 + $0xe0] sm:$0xff]
        %v3835 = vld [vmem:[%s1017 + $0xe8] sm:$0xff]
        %v3836 = vld [vmem:[%s1017 + $0xf0] sm:$0xff]
        %v3837 = vld [vmem:[%s1017 + $0xf8] sm:$0xff]
        %v3838 = vld [vmem:[%s1017 + $0x100] sm:$0xff]
        %v3839 = vld [vmem:[%s1017 + $0x108] sm:$0xff]
        %v3840 = vld [vmem:[%s1017 + $0x110] sm:$0xff]
        %v3841 = vld [vmem:[%s1017 + $0x118] sm:$0xff]
        %v3842 = vld [vmem:[%s1017 + $0x120] sm:$0xff]
        %v3843 = vld [vmem:[%s1017 + $0x128] sm:$0xff]
        %v3844 = vld [vmem:[%s1017 + $0x130] sm:$0xff]
        %v3845 = vld [vmem:[%s1017 + $0x138] sm:$0xff]
        %v3846 = vld [vmem:[%s1017 + $0x140] sm:$0xff]
        %v3847 = vld [vmem:[%s1017 + $0x148] sm:$0xff]
        %v3848 = vld [vmem:[%s1017 + $0x150] sm:$0xff]
        %v3849 = vld [vmem:[%s1017 + $0x158] sm:$0xff]
        %v3850 = vld [vmem:[%s1017 + $0x160] sm:$0xff]
        %v3851 = vld [vmem:[%s1017 + $0x168] sm:$0xff]
        %v3852 = vld [vmem:[%s1017 + $0x170] sm:$0xff]
        %v3853 = vld [vmem:[%s1017 + $0x178] sm:$0xff]
        %v3854 = vld [vmem:[%s1017 + $0x180] sm:$0xff]
        %v3855 = vld [vmem:[%s1017 + $0x188] sm:$0xff]
        %v3856 = vld [vmem:[%s1017 + $0x190] sm:$0xff]
        %v3857 = vld [vmem:[%s1017 + $0x198] sm:$0xff]
        %v3858 = vld [vmem:[%s1017 + $0x1a0] sm:$0xff]
        %v3859 = vld [vmem:[%s1017 + $0x1a8] sm:$0xff]
        %v3860 = vld [vmem:[%s1017 + $0x1b0] sm:$0xff]
        %v3861 = vld [vmem:[%s1017 + $0x1b8] sm:$0xff]
        %v3862 = vld [vmem:[%s1017 + $0x1c0] sm:$0xff]
        %v3863 = vld [vmem:[%s1017 + $0x1c8] sm:$0xff]
        %v3864 = vld [vmem:[%s1017 + $0x1d0] sm:$0xff]
        %v3865 = vld [vmem:[%s1017 + $0x1d8] sm:$0xff]
        %v3866 = vld [vmem:[%s1017 + $0x1e0] sm:$0xff]
        %v3867 = vld [vmem:[%s1017 + $0x1e8] sm:$0xff]
        %v3868 = vld [vmem:[%s1017 + $0x1f0] sm:$0xff]
        %v3869 = vld [vmem:[%s1017 + $0x1f8] sm:$0xff]
        %v3870 = vld [vmem:[%s1017 + $0x200] sm:$0xff]
        %v3871 = vld [vmem:[%s1017 + $0x208] sm:$0xff]
        %v3872 = vld [vmem:[%s1017 + $0x210] sm:$0xff]
        %v3873 = vld [vmem:[%s1017 + $0x218] sm:$0xff]
        %v3874 = vld [vmem:[%s1017 + $0x220] sm:$0xff]
        %v3875 = vld [vmem:[%s1017 + $0x228] sm:$0xff]
        %v3876 = vld [vmem:[%s1017 + $0x230] sm:$0xff]
        %v3877 = vld [vmem:[%s1017 + $0x238] sm:$0xff]
        %v3878 = vld [vmem:[%s1017 + $0x240] sm:$0xff]
        %v3879 = vld [vmem:[%s1017 + $0x248] sm:$0xff]
        %v3880 = vld [vmem:[%s1017 + $0x250] sm:$0xff]
        %v3881 = vld [vmem:[%s1017 + $0x258] sm:$0xff]
        %v3882 = vld [vmem:[%s1017 + $0x260] sm:$0xff]
        %v3883 = vld [vmem:[%s1017 + $0x268] sm:$0xff]
        %v3884 = vld [vmem:[%s1017 + $0x270] sm:$0xff]
        %v3885 = vld [vmem:[%s1017 + $0x278] sm:$0xff]
        %v3886 = vld [vmem:[%s1017 + $0x280] sm:$0xff]
        %v3887 = vld [vmem:[%s1017 + $0x288] sm:$0xff]
        %v3888 = vld [vmem:[%s1017 + $0x290] sm:$0xff]
        %v3889 = vld [vmem:[%s1017 + $0x298] sm:$0xff]
        %v3890 = vld [vmem:[%s1017 + $0x2a0] sm:$0xff]
        %v3891 = vld [vmem:[%s1017 + $0x2a8] sm:$0xff]
        %v3892 = vld [vmem:[%s1017 + $0x2b0] sm:$0xff]
        %v3893 = vld [vmem:[%s1017 + $0x2b8] sm:$0xff]
        %v3894 = vld [vmem:[%s1017 + $0x2c0] sm:$0xff]
        %v3895 = vld [vmem:[%s1017 + $0x2c8] sm:$0xff]
        %v3896 = vld [vmem:[%s1017 + $0x2d0] sm:$0xff]
        %v3897 = vld [vmem:[%s1017 + $0x2d8] sm:$0xff]
        %v3898 = vld [vmem:[%s1017 + $0x2e0] sm:$0xff]
        %v3899 = vld [vmem:[%s1017 + $0x2e8] sm:$0xff]
        %v3900 = vld [vmem:[%s1017 + $0x2f0] sm:$0xff]
        %v3901 = vld [vmem:[%s1017 + $0x2f8] sm:$0xff]
        %v3902 = vld [vmem:[%s1017 + $0x300] sm:$0xff]
        %v3903 = vld [vmem:[%s1017 + $0x308] sm:$0xff]
        %v3904 = vld [vmem:[%s1017 + $0x310] sm:$0xff]
        %v3905 = vld [vmem:[%s1017 + $0x318] sm:$0xff]
        %v3906 = vld [vmem:[%s1017 + $0x320] sm:$0xff]
        %v3907 = vld [vmem:[%s1017 + $0x328] sm:$0xff]
        %v3908 = vld [vmem:[%s1017 + $0x330] sm:$0xff]
        %v3909 = vld [vmem:[%s1017 + $0x338] sm:$0xff]
        %v3910 = vld [vmem:[%s1017 + $0x340] sm:$0xff]
        %v3911 = vld [vmem:[%s1017 + $0x348] sm:$0xff]
        %v3912 = vld [vmem:[%s1017 + $0x350] sm:$0xff]
        %v3913 = vld [vmem:[%s1017 + $0x358] sm:$0xff]
        %v3914 = vld [vmem:[%s1017 + $0x360] sm:$0xff]
        %v3915 = vld [vmem:[%s1017 + $0x368] sm:$0xff]
        %v3916 = vld [vmem:[%s1017 + $0x370] sm:$0xff]
        %v3917 = vld [vmem:[%s1017 + $0x378] sm:$0xff]
        %v3918 = vld [vmem:[%s1017 + $0x380] sm:$0xff]
        %v3919 = vld [vmem:[%s1017 + $0x388] sm:$0xff]
        %v3920 = vld [vmem:[%s1017 + $0x390] sm:$0xff]
        %v3921 = vld [vmem:[%s1017 + $0x398] sm:$0xff]
        %v3922 = vld [vmem:[%s1017 + $0x3a0] sm:$0xff]
        %v3923 = vld [vmem:[%s1017 + $0x3a8] sm:$0xff]
        %v3924 = vld [vmem:[%s1017 + $0x3b0] sm:$0xff]
        %v3925 = vld [vmem:[%s1017 + $0x3b8] sm:$0xff]
        %v3926 = vld [vmem:[%s1017 + $0x3c0] sm:$0xff]
        %v3927 = vld [vmem:[%s1017 + $0x3c8] sm:$0xff]
        %v3928 = vld [vmem:[%s1017 + $0x3d0] sm:$0xff]
        %v3929 = vld [vmem:[%s1017 + $0x3d8] sm:$0xff]
        %v3930 = vld [vmem:[%s1017 + $0x3e0] sm:$0xff]
        %v3931 = vld [vmem:[%s1017 + $0x3e8] sm:$0xff]
        %v3932 = vld [vmem:[%s1017 + $0x3f0] sm:$0xff]
        %v3933 = vld [vmem:[%s1017 + $0x3f8] sm:$0xff]
        %v3934 = vld [vmem:[%s1026] sm:$0x3]
        %v3936 = vlaneseq
        %v3937 = vshrl.u32 %v3936, 7
        %v3938 = vsub.s32 0, %v3937
        %v3939 = vrot.slane %v3934, %v3938
        %v3940 = vlaneseq
        %v3941 = vshrl.u32 %v3940, 7
        %v3942 = vsub.s32 1, %v3941
        %v3943 = vrot.slane %v3934, %v3942
        %v4074 = vunpack.c.l.b16 %v3806
        %v4075 = vunpack.c.h.b16 %v3806
        %v4076 = vunpack.c.l.b16 %v3807
        %v4077 = vunpack.c.h.b16 %v3807
        %v4078 = vunpack.c.l.b16 %v3808
        %v4079 = vunpack.c.h.b16 %v3808
        %v4080 = vunpack.c.l.b16 %v3809
        %v4081 = vunpack.c.h.b16 %v3809
        %v4082 = vunpack.c.l.b16 %v3810
        %v4083 = vunpack.c.h.b16 %v3810
        %v4084 = vunpack.c.l.b16 %v3811
        %v4085 = vunpack.c.h.b16 %v3811
        %v4086 = vunpack.c.l.b16 %v3812
        %v4087 = vunpack.c.h.b16 %v3812
        %v4088 = vunpack.c.l.b16 %v3813
        %v4089 = vunpack.c.h.b16 %v3813
        %v4090 = vunpack.c.l.b16 %v3814
        %v4091 = vunpack.c.h.b16 %v3814
        %v4092 = vunpack.c.l.b16 %v3815
        %v4093 = vunpack.c.h.b16 %v3815
        %v4094 = vunpack.c.l.b16 %v3816
        %v4095 = vunpack.c.h.b16 %v3816
        %v4096 = vunpack.c.l.b16 %v3817
        %v4097 = vunpack.c.h.b16 %v3817
        %v4098 = vunpack.c.l.b16 %v3818
        %v4099 = vunpack.c.h.b16 %v3818
        %v4100 = vunpack.c.l.b16 %v3819
        %v4101 = vunpack.c.h.b16 %v3819
        %v4102 = vunpack.c.l.b16 %v3820
        %v4103 = vunpack.c.h.b16 %v3820
        %v4104 = vunpack.c.l.b16 %v3821
        %v4105 = vunpack.c.h.b16 %v3821
        %v4106 = vunpack.c.l.b16 %v3822
        %v4107 = vunpack.c.h.b16 %v3822
        %v4108 = vunpack.c.l.b16 %v3823
        %v4109 = vunpack.c.h.b16 %v3823
        %v4110 = vunpack.c.l.b16 %v3824
        %v4111 = vunpack.c.h.b16 %v3824
        %v4112 = vunpack.c.l.b16 %v3825
        %v4113 = vunpack.c.h.b16 %v3825
        %v4114 = vunpack.c.l.b16 %v3826
        %v4115 = vunpack.c.h.b16 %v3826
        %v4116 = vunpack.c.l.b16 %v3827
        %v4117 = vunpack.c.h.b16 %v3827
        %v4118 = vunpack.c.l.b16 %v3828
        %v4119 = vunpack.c.h.b16 %v3828
        %v4120 = vunpack.c.l.b16 %v3829
        %v4121 = vunpack.c.h.b16 %v3829
        %v4122 = vunpack.c.l.b16 %v3830
        %v4123 = vunpack.c.h.b16 %v3830
        %v4124 = vunpack.c.l.b16 %v3831
        %v4125 = vunpack.c.h.b16 %v3831
        %v4126 = vunpack.c.l.b16 %v3832
        %v4127 = vunpack.c.h.b16 %v3832
        %v4128 = vunpack.c.l.b16 %v3833
        %v4129 = vunpack.c.h.b16 %v3833
        %v4130 = vunpack.c.l.b16 %v3834
        %v4131 = vunpack.c.h.b16 %v3834
        %v4132 = vunpack.c.l.b16 %v3835
        %v4133 = vunpack.c.h.b16 %v3835
        %v4134 = vunpack.c.l.b16 %v3836
        %v4135 = vunpack.c.h.b16 %v3836
        %v4136 = vunpack.c.l.b16 %v3837
        %v4137 = vunpack.c.h.b16 %v3837
        %v4138 = vunpack.c.l.b16 %v3838
        %v4139 = vunpack.c.h.b16 %v3838
        %v4140 = vunpack.c.l.b16 %v3839
        %v4141 = vunpack.c.h.b16 %v3839
        %v4142 = vunpack.c.l.b16 %v3840
        %v4143 = vunpack.c.h.b16 %v3840
        %v4144 = vunpack.c.l.b16 %v3841
        %v4145 = vunpack.c.h.b16 %v3841
        %v4146 = vunpack.c.l.b16 %v3842
        %v4147 = vunpack.c.h.b16 %v3842
        %v4148 = vunpack.c.l.b16 %v3843
        %v4149 = vunpack.c.h.b16 %v3843
        %v4150 = vunpack.c.l.b16 %v3844
        %v4151 = vunpack.c.h.b16 %v3844
        %v4152 = vunpack.c.l.b16 %v3845
        %v4153 = vunpack.c.h.b16 %v3845
        %v4154 = vunpack.c.l.b16 %v3846
        %v4155 = vunpack.c.h.b16 %v3846
        %v4156 = vunpack.c.l.b16 %v3847
        %v4157 = vunpack.c.h.b16 %v3847
        %v4158 = vunpack.c.l.b16 %v3848
        %v4159 = vunpack.c.h.b16 %v3848
        %v4160 = vunpack.c.l.b16 %v3849
        %v4161 = vunpack.c.h.b16 %v3849
        %v4162 = vunpack.c.l.b16 %v3850
        %v4163 = vunpack.c.h.b16 %v3850
        %v4164 = vunpack.c.l.b16 %v3851
        %v4165 = vunpack.c.h.b16 %v3851
        %v4166 = vunpack.c.l.b16 %v3852
        %v4167 = vunpack.c.h.b16 %v3852
        %v4168 = vunpack.c.l.b16 %v3853
        %v4169 = vunpack.c.h.b16 %v3853
        %v4170 = vunpack.c.l.b16 %v3854
        %v4171 = vunpack.c.h.b16 %v3854
        %v4172 = vunpack.c.l.b16 %v3855
        %v4173 = vunpack.c.h.b16 %v3855
        %v4174 = vunpack.c.l.b16 %v3856
        %v4175 = vunpack.c.h.b16 %v3856
        %v4176 = vunpack.c.l.b16 %v3857
        %v4177 = vunpack.c.h.b16 %v3857
        %v4178 = vunpack.c.l.b16 %v3858
        %v4179 = vunpack.c.h.b16 %v3858
        %v4180 = vunpack.c.l.b16 %v3859
        %v4181 = vunpack.c.h.b16 %v3859
        %v4182 = vunpack.c.l.b16 %v3860
        %v4183 = vunpack.c.h.b16 %v3860
        %v4184 = vunpack.c.l.b16 %v3861
        %v4185 = vunpack.c.h.b16 %v3861
        %v4186 = vunpack.c.l.b16 %v3862
        %v4187 = vunpack.c.h.b16 %v3862
        %v4188 = vunpack.c.l.b16 %v3863
        %v4189 = vunpack.c.h.b16 %v3863
        %v4190 = vunpack.c.l.b16 %v3864
        %v4191 = vunpack.c.h.b16 %v3864
        %v4192 = vunpack.c.l.b16 %v3865
        %v4193 = vunpack.c.h.b16 %v3865
        %v4194 = vunpack.c.l.b16 %v3866
        %v4195 = vunpack.c.h.b16 %v3866
        %v4196 = vunpack.c.l.b16 %v3867
        %v4197 = vunpack.c.h.b16 %v3867
        %v4198 = vunpack.c.l.b16 %v3868
        %v4199 = vunpack.c.h.b16 %v3868
        %v4200 = vunpack.c.l.b16 %v3869
        %v4201 = vunpack.c.h.b16 %v3869
        %v4202 = vunpack.c.l.b16 %v3870
        %v4203 = vunpack.c.h.b16 %v3870
        %v4204 = vunpack.c.l.b16 %v3871
        %v4205 = vunpack.c.h.b16 %v3871
        %v4206 = vunpack.c.l.b16 %v3872
        %v4207 = vunpack.c.h.b16 %v3872
        %v4208 = vunpack.c.l.b16 %v3873
        %v4209 = vunpack.c.h.b16 %v3873
        %v4210 = vunpack.c.l.b16 %v3874
        %v4211 = vunpack.c.h.b16 %v3874
        %v4212 = vunpack.c.l.b16 %v3875
        %v4213 = vunpack.c.h.b16 %v3875
        %v4214 = vunpack.c.l.b16 %v3876
        %v4215 = vunpack.c.h.b16 %v3876
        %v4216 = vunpack.c.l.b16 %v3877
        %v4217 = vunpack.c.h.b16 %v3877
        %v4218 = vunpack.c.l.b16 %v3878
        %v4219 = vunpack.c.h.b16 %v3878
        %v4220 = vunpack.c.l.b16 %v3879
        %v4221 = vunpack.c.h.b16 %v3879
        %v4222 = vunpack.c.l.b16 %v3880
        %v4223 = vunpack.c.h.b16 %v3880
        %v4224 = vunpack.c.l.b16 %v3881
        %v4225 = vunpack.c.h.b16 %v3881
        %v4226 = vunpack.c.l.b16 %v3882
        %v4227 = vunpack.c.h.b16 %v3882
        %v4228 = vunpack.c.l.b16 %v3883
        %v4229 = vunpack.c.h.b16 %v3883
        %v4230 = vunpack.c.l.b16 %v3884
        %v4231 = vunpack.c.h.b16 %v3884
        %v4232 = vunpack.c.l.b16 %v3885
        %v4233 = vunpack.c.h.b16 %v3885
        %v4234 = vunpack.c.l.b16 %v3886
        %v4235 = vunpack.c.h.b16 %v3886
        %v4236 = vunpack.c.l.b16 %v3887
        %v4237 = vunpack.c.h.b16 %v3887
        %v4238 = vunpack.c.l.b16 %v3888
        %v4239 = vunpack.c.h.b16 %v3888
        %v4240 = vunpack.c.l.b16 %v3889
        %v4241 = vunpack.c.h.b16 %v3889
        %v4242 = vunpack.c.l.b16 %v3890
        %v4243 = vunpack.c.h.b16 %v3890
        %v4244 = vunpack.c.l.b16 %v3891
        %v4245 = vunpack.c.h.b16 %v3891
        %v4246 = vunpack.c.l.b16 %v3892
        %v4247 = vunpack.c.h.b16 %v3892
        %v4248 = vunpack.c.l.b16 %v3893
        %v4249 = vunpack.c.h.b16 %v3893
        %v4250 = vunpack.c.l.b16 %v3894
        %v4251 = vunpack.c.h.b16 %v3894
        %v4252 = vunpack.c.l.b16 %v3895
        %v4253 = vunpack.c.h.b16 %v3895
        %v4254 = vunpack.c.l.b16 %v3896
        %v4255 = vunpack.c.h.b16 %v3896
        %v4256 = vunpack.c.l.b16 %v3897
        %v4257 = vunpack.c.h.b16 %v3897
        %v4258 = vunpack.c.l.b16 %v3898
        %v4259 = vunpack.c.h.b16 %v3898
        %v4260 = vunpack.c.l.b16 %v3899
        %v4261 = vunpack.c.h.b16 %v3899
        %v4262 = vunpack.c.l.b16 %v3900
        %v4263 = vunpack.c.h.b16 %v3900
        %v4264 = vunpack.c.l.b16 %v3901
        %v4265 = vunpack.c.h.b16 %v3901
        %v4266 = vunpack.c.l.b16 %v3902
        %v4267 = vunpack.c.h.b16 %v3902
        %v4268 = vunpack.c.l.b16 %v3903
        %v4269 = vunpack.c.h.b16 %v3903
        %v4270 = vunpack.c.l.b16 %v3904
        %v4271 = vunpack.c.h.b16 %v3904
        %v4272 = vunpack.c.l.b16 %v3905
        %v4273 = vunpack.c.h.b16 %v3905
        %v4274 = vunpack.c.l.b16 %v3906
        %v4275 = vunpack.c.h.b16 %v3906
        %v4276 = vunpack.c.l.b16 %v3907
        %v4277 = vunpack.c.h.b16 %v3907
        %v4278 = vunpack.c.l.b16 %v3908
        %v4279 = vunpack.c.h.b16 %v3908
        %v4280 = vunpack.c.l.b16 %v3909
        %v4281 = vunpack.c.h.b16 %v3909
        %v4282 = vunpack.c.l.b16 %v3910
        %v4283 = vunpack.c.h.b16 %v3910
        %v4284 = vunpack.c.l.b16 %v3911
        %v4285 = vunpack.c.h.b16 %v3911
        %v4286 = vunpack.c.l.b16 %v3912
        %v4287 = vunpack.c.h.b16 %v3912
        %v4288 = vunpack.c.l.b16 %v3913
        %v4289 = vunpack.c.h.b16 %v3913
        %v4290 = vunpack.c.l.b16 %v3914
        %v4291 = vunpack.c.h.b16 %v3914
        %v4292 = vunpack.c.l.b16 %v3915
        %v4293 = vunpack.c.h.b16 %v3915
        %v4294 = vunpack.c.l.b16 %v3916
        %v4295 = vunpack.c.h.b16 %v3916
        %v4296 = vunpack.c.l.b16 %v3917
        %v4297 = vunpack.c.h.b16 %v3917
        %v4298 = vunpack.c.l.b16 %v3918
        %v4299 = vunpack.c.h.b16 %v3918
        %v4300 = vunpack.c.l.b16 %v3919
        %v4301 = vunpack.c.h.b16 %v3919
        %v4302 = vunpack.c.l.b16 %v3920
        %v4303 = vunpack.c.h.b16 %v3920
        %v4304 = vunpack.c.l.b16 %v3921
        %v4305 = vunpack.c.h.b16 %v3921
        %v4306 = vunpack.c.l.b16 %v3922
        %v4307 = vunpack.c.h.b16 %v3922
        %v4308 = vunpack.c.l.b16 %v3923
        %v4309 = vunpack.c.h.b16 %v3923
        %v4310 = vunpack.c.l.b16 %v3924
        %v4311 = vunpack.c.h.b16 %v3924
        %v4312 = vunpack.c.l.b16 %v3925
        %v4313 = vunpack.c.h.b16 %v3925
        %v4314 = vunpack.c.l.b16 %v3926
        %v4315 = vunpack.c.h.b16 %v3926
        %v4316 = vunpack.c.l.b16 %v3927
        %v4317 = vunpack.c.h.b16 %v3927
        %v4318 = vunpack.c.l.b16 %v3928
        %v4319 = vunpack.c.h.b16 %v3928
        %v4320 = vunpack.c.l.b16 %v3929
        %v4321 = vunpack.c.h.b16 %v3929
        %v4322 = vunpack.c.l.b16 %v3930
        %v4323 = vunpack.c.h.b16 %v3930
        %v4324 = vunpack.c.l.b16 %v3931
        %v4325 = vunpack.c.h.b16 %v3931
        %v4326 = vunpack.c.l.b16 %v3932
        %v4327 = vunpack.c.h.b16 %v3932
        %v4328 = vunpack.c.l.b16 %v3933
        %v4329 = vunpack.c.h.b16 %v3933
        %v4330 = vpack.c.b16 %v4076, %v4074
        %v4331 = vpack.c.b16 %v4077, %v4075
        %v4332 = vpack.c.b16 %v4080, %v4078
        %v4333 = vpack.c.b16 %v4081, %v4079
        %v4334 = vpack.c.b16 %v4084, %v4082
        %v4335 = vpack.c.b16 %v4085, %v4083
        %v4336 = vpack.c.b16 %v4088, %v4086
        %v4337 = vpack.c.b16 %v4089, %v4087
        %v4338 = vpack.c.b16 %v4092, %v4090
        %v4339 = vpack.c.b16 %v4093, %v4091
        %v4340 = vpack.c.b16 %v4096, %v4094
        %v4341 = vpack.c.b16 %v4097, %v4095
        %v4342 = vpack.c.b16 %v4100, %v4098
        %v4343 = vpack.c.b16 %v4101, %v4099
        %v4344 = vpack.c.b16 %v4104, %v4102
        %v4345 = vpack.c.b16 %v4105, %v4103
        %v4346 = vpack.c.b16 %v4108, %v4106
        %v4347 = vpack.c.b16 %v4109, %v4107
        %v4348 = vpack.c.b16 %v4112, %v4110
        %v4349 = vpack.c.b16 %v4113, %v4111
        %v4350 = vpack.c.b16 %v4116, %v4114
        %v4351 = vpack.c.b16 %v4117, %v4115
        %v4352 = vpack.c.b16 %v4120, %v4118
        %v4353 = vpack.c.b16 %v4121, %v4119
        %v4354 = vpack.c.b16 %v4124, %v4122
        %v4355 = vpack.c.b16 %v4125, %v4123
        %v4356 = vpack.c.b16 %v4128, %v4126
        %v4357 = vpack.c.b16 %v4129, %v4127
        %v4358 = vpack.c.b16 %v4132, %v4130
        %v4359 = vpack.c.b16 %v4133, %v4131
        %v4360 = vpack.c.b16 %v4136, %v4134
        %v4361 = vpack.c.b16 %v4137, %v4135
        %v4362 = vpack.c.b16 %v4140, %v4138
        %v4363 = vpack.c.b16 %v4141, %v4139
        %v4364 = vpack.c.b16 %v4144, %v4142
        %v4365 = vpack.c.b16 %v4145, %v4143
        %v4366 = vpack.c.b16 %v4148, %v4146
        %v4367 = vpack.c.b16 %v4149, %v4147
        %v4368 = vpack.c.b16 %v4152, %v4150
        %v4369 = vpack.c.b16 %v4153, %v4151
        %v4370 = vpack.c.b16 %v4156, %v4154
        %v4371 = vpack.c.b16 %v4157, %v4155
        %v4372 = vpack.c.b16 %v4160, %v4158
        %v4373 = vpack.c.b16 %v4161, %v4159
        %v4374 = vpack.c.b16 %v4164, %v4162
        %v4375 = vpack.c.b16 %v4165, %v4163
        %v4376 = vpack.c.b16 %v4168, %v4166
        %v4377 = vpack.c.b16 %v4169, %v4167
        %v4378 = vpack.c.b16 %v4172, %v4170
        %v4379 = vpack.c.b16 %v4173, %v4171
        %v4380 = vpack.c.b16 %v4176, %v4174
        %v4381 = vpack.c.b16 %v4177, %v4175
        %v4382 = vpack.c.b16 %v4180, %v4178
        %v4383 = vpack.c.b16 %v4181, %v4179
        %v4384 = vpack.c.b16 %v4184, %v4182
        %v4385 = vpack.c.b16 %v4185, %v4183
        %v4386 = vpack.c.b16 %v4188, %v4186
        %v4387 = vpack.c.b16 %v4189, %v4187
        %v4388 = vpack.c.b16 %v4192, %v4190
        %v4389 = vpack.c.b16 %v4193, %v4191
        %v4390 = vpack.c.b16 %v4196, %v4194
        %v4391 = vpack.c.b16 %v4197, %v4195
        %v4392 = vpack.c.b16 %v4200, %v4198
        %v4393 = vpack.c.b16 %v4201, %v4199
        %v4394 = vpack.c.b16 %v4204, %v4202
        %v4395 = vpack.c.b16 %v4205, %v4203
        %v4396 = vpack.c.b16 %v4208, %v4206
        %v4397 = vpack.c.b16 %v4209, %v4207
        %v4398 = vpack.c.b16 %v4212, %v4210
        %v4399 = vpack.c.b16 %v4213, %v4211
        %v4400 = vpack.c.b16 %v4216, %v4214
        %v4401 = vpack.c.b16 %v4217, %v4215
        %v4402 = vpack.c.b16 %v4220, %v4218
        %v4403 = vpack.c.b16 %v4221, %v4219
        %v4404 = vpack.c.b16 %v4224, %v4222
        %v4405 = vpack.c.b16 %v4225, %v4223
        %v4406 = vpack.c.b16 %v4228, %v4226
        %v4407 = vpack.c.b16 %v4229, %v4227
        %v4408 = vpack.c.b16 %v4232, %v4230
        %v4409 = vpack.c.b16 %v4233, %v4231
        %v4410 = vpack.c.b16 %v4236, %v4234
        %v4411 = vpack.c.b16 %v4237, %v4235
        %v4412 = vpack.c.b16 %v4240, %v4238
        %v4413 = vpack.c.b16 %v4241, %v4239
        %v4414 = vpack.c.b16 %v4244, %v4242
        %v4415 = vpack.c.b16 %v4245, %v4243
        %v4416 = vpack.c.b16 %v4248, %v4246
        %v4417 = vpack.c.b16 %v4249, %v4247
        %v4418 = vpack.c.b16 %v4252, %v4250
        %v4419 = vpack.c.b16 %v4253, %v4251
        %v4420 = vpack.c.b16 %v4256, %v4254
        %v4421 = vpack.c.b16 %v4257, %v4255
        %v4422 = vpack.c.b16 %v4260, %v4258
        %v4423 = vpack.c.b16 %v4261, %v4259
        %v4424 = vpack.c.b16 %v4264, %v4262
        %v4425 = vpack.c.b16 %v4265, %v4263
        %v4426 = vpack.c.b16 %v4268, %v4266
        %v4427 = vpack.c.b16 %v4269, %v4267
        %v4428 = vpack.c.b16 %v4272, %v4270
        %v4429 = vpack.c.b16 %v4273, %v4271
        %v4430 = vpack.c.b16 %v4276, %v4274
        %v4431 = vpack.c.b16 %v4277, %v4275
        %v4432 = vpack.c.b16 %v4280, %v4278
        %v4433 = vpack.c.b16 %v4281, %v4279
        %v4434 = vpack.c.b16 %v4284, %v4282
        %v4435 = vpack.c.b16 %v4285, %v4283
        %v4436 = vpack.c.b16 %v4288, %v4286
        %v4437 = vpack.c.b16 %v4289, %v4287
        %v4438 = vpack.c.b16 %v4292, %v4290
        %v4439 = vpack.c.b16 %v4293, %v4291
        %v4440 = vpack.c.b16 %v4296, %v4294
        %v4441 = vpack.c.b16 %v4297, %v4295
        %v4442 = vpack.c.b16 %v4300, %v4298
        %v4443 = vpack.c.b16 %v4301, %v4299
        %v4444 = vpack.c.b16 %v4304, %v4302
        %v4445 = vpack.c.b16 %v4305, %v4303
        %v4446 = vpack.c.b16 %v4308, %v4306
        %v4447 = vpack.c.b16 %v4309, %v4307
        %v4448 = vpack.c.b16 %v4312, %v4310
        %v4449 = vpack.c.b16 %v4313, %v4311
        %v4450 = vpack.c.b16 %v4316, %v4314
        %v4451 = vpack.c.b16 %v4317, %v4315
        %v4452 = vpack.c.b16 %v4320, %v4318
        %v4453 = vpack.c.b16 %v4321, %v4319
        %v4454 = vpack.c.b16 %v4324, %v4322
        %v4455 = vpack.c.b16 %v4325, %v4323
        %v4456 = vpack.c.b16 %v4328, %v4326
        %v4457 = vpack.c.b16 %v4329, %v4327
        %4586 = vmatprep.subr.bf16.mxu0 %v4345
        %4587 = vmatpush1.bf16.msra.mxu0 %v4344
        %4588 = vmatprep.subr.bf16.mxu0 %v4343
        %4589 = vmatpush1.bf16.msra.mxu0 %v4342
        %4590 = vmatprep.subr.bf16.mxu0 %v4341
        %4591 = vmatpush1.bf16.msra.mxu0 %v4340
        %4592 = vmatprep.subr.bf16.mxu0 %v4339
        %4593 = vmatpush1.bf16.msra.mxu0 %v4338
        %4594 = vmatprep.subr.bf16.mxu0 %v4337
        %4595 = vmatpush1.bf16.msra.mxu0 %v4336
        %4596 = vmatprep.subr.bf16.mxu0 %v4335
        %4597 = vmatpush1.bf16.msra.mxu0 %v4334
        %4598 = vmatprep.subr.bf16.mxu0 %v4333
        %4599 = vmatpush1.bf16.msra.mxu0 %v4332
        %4600 = vmatprep.subr.bf16.mxu0 %v4331
        %4601 = vmatpush1.bf16.msra.mxu0 %v4330
        %4602 = vmatprep.subr.bf16.mxu0 %v4361
        %4603 = vmatpush2.bf16.msra.mxu0 %v4360
        %4604 = vmatprep.subr.bf16.mxu0 %v4359
        %4605 = vmatpush2.bf16.msra.mxu0 %v4358
        %4606 = vmatprep.subr.bf16.mxu0 %v4357
        %4607 = vmatpush2.bf16.msra.mxu0 %v4356
        %4608 = vmatprep.subr.bf16.mxu0 %v4355
        %4609 = vmatpush2.bf16.msra.mxu0 %v4354
        %4610 = vmatprep.subr.bf16.mxu0 %v4353
        %4611 = vmatpush2.bf16.msra.mxu0 %v4352
        %4612 = vmatprep.subr.bf16.mxu0 %v4351
        %4613 = vmatpush2.bf16.msra.mxu0 %v4350
        %4614 = vmatprep.subr.bf16.mxu0 %v4349
        %4615 = vmatpush2.bf16.msra.mxu0 %v4348
        %4616 = vmatprep.subr.bf16.mxu0 %v4347
        %4617 = vmatpush2.bf16.msra.mxu0 %v4346
        %4618 = vmatprep.mubr.bf16.mxu0 %v3799
        %4619 = vmatmul.mubr.bf16.gmra.mxu0 %v3798
        %v4620 = vpop.f32.mrf.mxu0
        %v4621 = vadd.f32 %v3939, %v4620
        %v4622 = vpop.f32.mrf.mxu0
        %v4623 = vadd.f32 %v3943, %v4622
        %v4624 = vpop.f32.mrf.mxu0
        %v4625 = vadd.f32 %v3939, %v4624
        %v4626 = vpop.f32.mrf.mxu0
        %v4627 = vadd.f32 %v3943, %v4626
        %4628 = vdwg.mxu0
        %4629 = vmatprep.subr.bf16.mxu0 %v4377
        %4630 = vmatpush1.bf16.msra.mxu0 %v4376
        %4631 = vmatprep.subr.bf16.mxu0 %v4375
        %4632 = vmatpush1.bf16.msra.mxu0 %v4374
        %4633 = vmatprep.subr.bf16.mxu0 %v4373
        %4634 = vmatpush1.bf16.msra.mxu0 %v4372
        %4635 = vmatprep.subr.bf16.mxu0 %v4371
        %4636 = vmatpush1.bf16.msra.mxu0 %v4370
        %4637 = vmatprep.subr.bf16.mxu0 %v4369
        %4638 = vmatpush1.bf16.msra.mxu0 %v4368
        %4639 = vmatprep.subr.bf16.mxu0 %v4367
        %4640 = vmatpush1.bf16.msra.mxu0 %v4366
        %4641 = vmatprep.subr.bf16.mxu0 %v4365
        %4642 = vmatpush1.bf16.msra.mxu0 %v4364
        %4643 = vmatprep.subr.bf16.mxu0 %v4363
        %4644 = vmatpush1.bf16.msra.mxu0 %v4362
        %4645 = vmatprep.subr.bf16.mxu0 %v4393
        %4646 = vmatpush2.bf16.msra.mxu0 %v4392
        %4647 = vmatprep.subr.bf16.mxu0 %v4391
        %4648 = vmatpush2.bf16.msra.mxu0 %v4390
        %4649 = vmatprep.subr.bf16.mxu0 %v4389
        %4650 = vmatpush2.bf16.msra.mxu0 %v4388
        %4651 = vmatprep.subr.bf16.mxu0 %v4387
        %4652 = vmatpush2.bf16.msra.mxu0 %v4386
        %4653 = vmatprep.subr.bf16.mxu0 %v4385
        %4654 = vmatpush2.bf16.msra.mxu0 %v4384
        %4655 = vmatprep.subr.bf16.mxu0 %v4383
        %4656 = vmatpush2.bf16.msra.mxu0 %v4382
        %4657 = vmatprep.subr.bf16.mxu0 %v4381
        %4658 = vmatpush2.bf16.msra.mxu0 %v4380
        %4659 = vmatprep.subr.bf16.mxu0 %v4379
        %4660 = vmatpush2.bf16.msra.mxu0 %v4378
        %4661 = vmatprep.mubr.bf16.mxu0 %v3801
        %4662 = vmatmul.mubr.bf16.gmra.mxu0 %v3800
        %v4663 = vpop.f32.mrf.mxu0
        %v4664 = vadd.f32 %v4621, %v4663
        %v4665 = vpop.f32.mrf.mxu0
        %v4666 = vadd.f32 %v4623, %v4665
        %v4667 = vpop.f32.mrf.mxu0
        %v4668 = vadd.f32 %v4625, %v4667
        %v4669 = vpop.f32.mrf.mxu0
        %v4670 = vadd.f32 %v4627, %v4669
        %4671 = vdwg.mxu0
        %4672 = vmatprep.subr.bf16.mxu0 %v4409
        %4673 = vmatpush1.bf16.msra.mxu0 %v4408
        %4674 = vmatprep.subr.bf16.mxu0 %v4407
        %4675 = vmatpush1.bf16.msra.mxu0 %v4406
        %4676 = vmatprep.subr.bf16.mxu0 %v4405
        %4677 = vmatpush1.bf16.msra.mxu0 %v4404
        %4678 = vmatprep.subr.bf16.mxu0 %v4403
        %4679 = vmatpush1.bf16.msra.mxu0 %v4402
        %4680 = vmatprep.subr.bf16.mxu0 %v4401
        %4681 = vmatpush1.bf16.msra.mxu0 %v4400
        %4682 = vmatprep.subr.bf16.mxu0 %v4399
        %4683 = vmatpush1.bf16.msra.mxu0 %v4398
        %4684 = vmatprep.subr.bf16.mxu0 %v4397
        %4685 = vmatpush1.bf16.msra.mxu0 %v4396
        %4686 = vmatprep.subr.bf16.mxu0 %v4395
        %4687 = vmatpush1.bf16.msra.mxu0 %v4394
        %4688 = vmatprep.subr.bf16.mxu0 %v4425
        %4689 = vmatpush2.bf16.msra.mxu0 %v4424
        %4690 = vmatprep.subr.bf16.mxu0 %v4423
        %4691 = vmatpush2.bf16.msra.mxu0 %v4422
        %4692 = vmatprep.subr.bf16.mxu0 %v4421
        %4693 = vmatpush2.bf16.msra.mxu0 %v4420
        %4694 = vmatprep.subr.bf16.mxu0 %v4419
        %4695 = vmatpush2.bf16.msra.mxu0 %v4418
        %4696 = vmatprep.subr.bf16.mxu0 %v4417
        %4697 = vmatpush2.bf16.msra.mxu0 %v4416
        %4698 = vmatprep.subr.bf16.mxu0 %v4415
        %4699 = vmatpush2.bf16.msra.mxu0 %v4414
        %4700 = vmatprep.subr.bf16.mxu0 %v4413
        %4701 = vmatpush2.bf16.msra.mxu0 %v4412
        %4702 = vmatprep.subr.bf16.mxu0 %v4411
        %4703 = vmatpush2.bf16.msra.mxu0 %v4410
        %4704 = vmatprep.mubr.bf16.mxu0 %v3803
        %4705 = vmatmul.mubr.bf16.gmra.mxu0 %v3802
        %v4706 = vpop.f32.mrf.mxu0
        %v4707 = vadd.f32 %v4664, %v4706
        %v4708 = vpop.f32.mrf.mxu0
        %v4709 = vadd.f32 %v4666, %v4708
        %v4710 = vpop.f32.mrf.mxu0
        %v4711 = vadd.f32 %v4668, %v4710
        %v4712 = vpop.f32.mrf.mxu0
        %v4713 = vadd.f32 %v4670, %v4712
        %4714 = vdwg.mxu0
        %4715 = vmatprep.subr.bf16.mxu0 %v4441
        %4716 = vmatpush1.bf16.msra.mxu0 %v4440
        %4717 = vmatprep.subr.bf16.mxu0 %v4439
        %4718 = vmatpush1.bf16.msra.mxu0 %v4438
        %4719 = vmatprep.subr.bf16.mxu0 %v4437
        %4720 = vmatpush1.bf16.msra.mxu0 %v4436
        %4721 = vmatprep.subr.bf16.mxu0 %v4435
        %4722 = vmatpush1.bf16.msra.mxu0 %v4434
        %4723 = vmatprep.subr.bf16.mxu0 %v4433
        %4724 = vmatpush1.bf16.msra.mxu0 %v4432
        %4725 = vmatprep.subr.bf16.mxu0 %v4431
        %4726 = vmatpush1.bf16.msra.mxu0 %v4430
        %4727 = vmatprep.subr.bf16.mxu0 %v4429
        %4728 = vmatpush1.bf16.msra.mxu0 %v4428
        %4729 = vmatprep.subr.bf16.mxu0 %v4427
        %4730 = vmatpush1.bf16.msra.mxu0 %v4426
        %4731 = vmatprep.subr.bf16.mxu0 %v4457
        %4732 = vmatpush2.bf16.msra.mxu0 %v4456
        %4733 = vmatprep.subr.bf16.mxu0 %v4455
        %4734 = vmatpush2.bf16.msra.mxu0 %v4454
        %4735 = vmatprep.subr.bf16.mxu0 %v4453
        %4736 = vmatpush2.bf16.msra.mxu0 %v4452
        %4737 = vmatprep.subr.bf16.mxu0 %v4451
        %4738 = vmatpush2.bf16.msra.mxu0 %v4450
        %4739 = vmatprep.subr.bf16.mxu0 %v4449
        %4740 = vmatpush2.bf16.msra.mxu0 %v4448
        %4741 = vmatprep.subr.bf16.mxu0 %v4447
        %4742 = vmatpush2.bf16.msra.mxu0 %v4446
        %4743 = vmatprep.subr.bf16.mxu0 %v4445
        %4744 = vmatpush2.bf16.msra.mxu0 %v4444
        %4745 = vmatprep.subr.bf16.mxu0 %v4443
        %4746 = vmatpush2.bf16.msra.mxu0 %v4442
        %4747 = vmatprep.mubr.bf16.mxu0 %v3805
        %4748 = vmatmul.mubr.bf16.gmra.mxu0 %v3804
        %v4749 = vpop.f32.mrf.mxu0
        %v4750 = vadd.f32 %v4707, %v4749
        %v4751 = vpop.f32.mrf.mxu0
        %v4752 = vadd.f32 %v4709, %v4751
        %v4753 = vpop.f32.mrf.mxu0
        %v4754 = vadd.f32 %v4711, %v4753
        %v4755 = vpop.f32.mrf.mxu0
        %v4756 = vadd.f32 %v4713, %v4755
        %4757 = vdwg.mxu0
        %v4758 = vadd.f32 %v2794, %v4750
        %v4759 = vadd.f32 %v2795, %v4752
        %v4760 = vadd.f32 %v2796, %v4754
        %v4761 = vadd.f32 %v2797, %v4756
        %v4762 = vld [vmem:[%s1053] sm:$0x3]
        %v4763 = vld [vmem:[%s1062] sm:$0x3]
        %v4764 = vadd.f32 %v4758, %v4759
        %4765 = vadd.xlane.f32.xlu0 %v4764
        %v4766 = vpop.xlane.xlu0 %4765
        %v4767 = vadd.f32 %v4760, %v4761
        %4768 = vadd.xlane.f32.xlu0 %v4767
        %v4769 = vpop.xlane.xlu0 %4768
        %v4770 = vmul.f32 %v4766, %v2741
        %v4771 = vmul.f32 %v4769, %v2741
        %v4772 = vsub.f32 %v4758, %v4770
        %v4773 = vsub.f32 %v4759, %v4770
        %v4774 = vsub.f32 %v4760, %v4771
        %v4775 = vsub.f32 %v4761, %v4771
        %v4776 = vmul.f32 %v4772, %v4772
        %v4777 = vmul.f32 %v4773, %v4773
        %v4778 = vmul.f32 %v4774, %v4774
        %v4779 = vmul.f32 %v4775, %v4775
        %v4780 = vadd.f32 %v4776, %v4777
        %4781 = vadd.xlane.f32.xlu0 %v4780
        %v4782 = vpop.xlane.xlu0 %4781
        %v4783 = vadd.f32 %v4778, %v4779
        %4784 = vadd.xlane.f32.xlu0 %v4783
        %v4785 = vpop.xlane.xlu0 %4784
        %v4786 = vmul.f32 %v4782, %v2741
        %v4787 = vmul.f32 %v4785, %v2741
        %v4788 = vadd.f32 %v4786, 1e-05
        %v4789 = vadd.f32 %v4787, 1e-05
        %v4790 = vrsqrt.pop %v4788
        %v4791 = vrsqrt.pop %v4789
        %v4792 = vmul.f32 %v4772, %v4790
        %v4793 = vmul.f32 %v4773, %v4790
        %v4794 = vmul.f32 %v4774, %v4791
        %v4795 = vmul.f32 %v4775, %v4791
        %v4797 = vlaneseq
        %v4798 = vshrl.u32 %v4797, 7
        %v4799 = vsub.s32 0, %v4798
        %v4800 = vrot.slane %v4762, %v4799
        %v4801 = vlaneseq
        %v4802 = vshrl.u32 %v4801, 7
        %v4803 = vsub.s32 1, %v4802
        %v4804 = vrot.slane %v4762, %v4803
        %v4807 = vmul.f32 %v4792, %v4800
        %v4808 = vmul.f32 %v4793, %v4804
        %v4809 = vmul.f32 %v4794, %v4800
        %v4810 = vmul.f32 %v4795, %v4804
        %v4812 = vlaneseq
        %v4813 = vshrl.u32 %v4812, 7
        %v4814 = vsub.s32 0, %v4813
        %v4815 = vrot.slane %v4763, %v4814
        %v4816 = vlaneseq
        %v4817 = vshrl.u32 %v4816, 7
        %v4818 = vsub.s32 1, %v4817
        %v4819 = vrot.slane %v4763, %v4818
        %v4822 = vadd.f32 %v4807, %v4815
        %v4823 = vadd.f32 %v4808, %v4819
        %v4824 = vadd.f32 %v4809, %v4815
        %v4825 = vadd.f32 %v4810, %v4819
        %4826 = vst [vmem:[#allocation2] sm:$0xff] %v4822
        %4827 = vst [vmem:[#allocation2 + $0x8] sm:$0xff] %v4823
        %4828 = vst [vmem:[#allocation2 + $0x10] sm:$0xff] %v4824
        %4829 = vst [vmem:[#allocation2 + $0x18] sm:$0xff] %v4825
        %p4830 = scmp.eq.s32.totalorder %s39, 3
        // Predicated region
        $region193: #{soh_transformer_forward.1} parent=111 // pred_check
          %p4831 = pneg %p4830
        $region194: #{soh_transformer_forward.1} parent=111 // pred_check_branch
          %4833 = sbr.rel (%p4831) target = $region196
        $region195: #{soh_transformer_forward.1} parent=111 // pred_region
          %v4834 = vlaneseq
          %v4835 = vand.u32 %v4834, 127
          %v4836 = vlaneseq
          %v4837 = vshrl.u32 %v4836, 7
          %v4838 = vadd.s32 %v4837, 1
          %v4839 = vmul.u32 %v4838, 8
          %v4840 = vsub.s32 %v4839, 1
          %vm4841 = vcmp.eq.s32.totalorder %v4835, %v4840
          %v4842 = vsel %vm4841, 1, 0
          %v4843 = vcvt.s32.f32 %v4842
          %vm4844 = vcmask 130048
          %v4846 = vsel %vm4844, %v4843, 0
          %4848 = vmatprep.subr.mxu0 0.0
          %4849 = vmatpush1.msra.mxu0 0.0
          %4850 = vmatprep.subr.mxu0 0.0
          %4851 = vmatpush1.msra.mxu0 0.0
          %4852 = vmatprep.subr.mxu0 0.0
          %4853 = vmatpush1.msra.mxu0 0.0
          %4854 = vmatprep.subr.mxu0 0.0
          %4855 = vmatpush1.msra.mxu0 0.0
          %4856 = vmatprep.subr.mxu0 0.0
          %4857 = vmatpush1.msra.mxu0 0.0
          %4858 = vmatprep.subr.mxu0 0.0
          %4859 = vmatpush1.msra.mxu0 0.0
          %4860 = vmatprep.subr.mxu0 0.0
          %4861 = vmatpush1.msra.mxu0 0.0
          %4862 = vmatprep.subr.mxu0 0.0
          %4863 = vmatpush1.msra.mxu0 0.0
          %4864 = vmatprep.subr.mxu0 0.0
          %4865 = vmatpush1.msra.mxu0 0.0
          %4866 = vmatprep.subr.mxu0 0.0
          %4867 = vmatpush1.msra.mxu0 0.0
          %4868 = vmatprep.subr.mxu0 0.0
          %4869 = vmatpush1.msra.mxu0 0.0
          %4870 = vmatprep.subr.mxu0 0.0
          %4871 = vmatpush1.msra.mxu0 0.0
          %4872 = vmatprep.subr.mxu0 0.0
          %4873 = vmatpush1.msra.mxu0 0.0
          %4874 = vmatprep.subr.mxu0 0.0
          %4875 = vmatpush1.msra.mxu0 0.0
          %4876 = vmatprep.subr.mxu0 %v4825
          %4877 = vmatpush1.msra.mxu0 %v4824
          %4878 = vmatprep.subr.mxu0 %v4823
          %4879 = vmatpush1.msra.mxu0 %v4822
          %4880 = vmatprep.subr.mxu0 0.0
          %4881 = vmatpush2.msra.mxu0 0.0
          %4882 = vmatprep.subr.mxu0 0.0
          %4883 = vmatpush2.msra.mxu0 0.0
          %4884 = vmatprep.subr.mxu0 0.0
          %4885 = vmatpush2.msra.mxu0 0.0
          %4886 = vmatprep.subr.mxu0 0.0
          %4887 = vmatpush2.msra.mxu0 0.0
          %4888 = vmatprep.subr.mxu0 0.0
          %4889 = vmatpush2.msra.mxu0 0.0
          %4890 = vmatprep.subr.mxu0 0.0
          %4891 = vmatpush2.msra.mxu0 0.0
          %4892 = vmatprep.subr.mxu0 0.0
          %4893 = vmatpush2.msra.mxu0 0.0
          %4894 = vmatprep.subr.mxu0 0.0
          %4895 = vmatpush2.msra.mxu0 0.0
          %4896 = vmatprep.subr.mxu0 0.0
          %4897 = vmatpush2.msra.mxu0 0.0
          %4898 = vmatprep.subr.mxu0 0.0
          %4899 = vmatpush2.msra.mxu0 0.0
          %4900 = vmatprep.subr.mxu0 0.0
          %4901 = vmatpush2.msra.mxu0 0.0
          %4902 = vmatprep.subr.mxu0 0.0
          %4903 = vmatpush2.msra.mxu0 0.0
          %4904 = vmatprep.subr.mxu0 0.0
          %4905 = vmatpush2.msra.mxu0 0.0
          %4906 = vmatprep.subr.mxu0 0.0
          %4907 = vmatpush2.msra.mxu0 0.0
          %4908 = vmatprep.subr.mxu0 0.0
          %4909 = vmatpush2.msra.mxu0 0.0
          %4910 = vmatprep.subr.mxu0 0.0
          %4911 = vmatpush2.msra.mxu0 0.0
          %4912 = vmatprep.mubr.f32.mxu0 0.0
          %4913 = vmatmul.mubr.f32.gmra.mxu0 %v4846
          %v4914 = vpop.f32.mrf.mxu0
          %v4915 = vadd.f32 0.0, %v4914
          %v4916 = vpop.f32.mrf.mxu0
          %v4917 = vadd.f32 0.0, %v4916
          %4918 = vdwg.mxu0
          %v4919 = vld [vmem:[#allocation20] sm:$0x3]
          %v4920 = vld [vmem:[#allocation21] sm:$0x3]
          %vm4921 = vcmask 1041408
          %v4922 = vsel %vm4921, %v4915, 0.0
          %v4923 = vsel %vm4921, %v4917, 0.0
          %v4924 = vadd.f32 %v4922, %v4923
          %4925 = vadd.xlane.f32.xlu0 %v4924
          %v4926 = vpop.xlane.xlu0 %4925
          %v4927 = vmul.f32 %v4926, %v2741
          %v4928 = vsub.f32 %v4915, %v4927
          %v4929 = vsub.f32 %v4917, %v4927
          %v4930 = vmul.f32 %v4928, %v4928
          %v4931 = vmul.f32 %v4929, %v4929
          %v4932 = vsel %vm4921, %v4930, 0.0
          %v4933 = vsel %vm4921, %v4931, 0.0
          %v4934 = vadd.f32 %v4932, %v4933
          %4935 = vadd.xlane.f32.xlu0 %v4934
          %v4936 = vpop.xlane.xlu0 %4935
          %v4937 = vmul.f32 %v4936, %v2741
          %v4938 = vadd.f32 %v4937, 1e-05
          %v4939 = vrsqrt.pop %v4938
          %v4940 = vmul.f32 %v4928, %v4939
          %v4941 = vmul.f32 %v4929, %v4939
          %v4943 = vlaneseq
          %v4944 = vshrl.u32 %v4943, 7
          %v4945 = vsub.s32 0, %v4944
          %v4946 = vrot.slane %v4919, %v4945
          %v4947 = vlaneseq
          %v4948 = vshrl.u32 %v4947, 7
          %v4949 = vsub.s32 1, %v4948
          %v4950 = vrot.slane %v4919, %v4949
          %v4953 = vmul.f32 %v4940, %v4946
          %v4954 = vmul.f32 %v4941, %v4950
          %v4956 = vlaneseq
          %v4957 = vshrl.u32 %v4956, 7
          %v4958 = vsub.s32 0, %v4957
          %v4959 = vrot.slane %v4920, %v4958
          %v4960 = vlaneseq
          %v4961 = vshrl.u32 %v4960, 7
          %v4962 = vsub.s32 1, %v4961
          %v4963 = vrot.slane %v4920, %v4962
          %v4966 = vadd.f32 %v4953, %v4959
          %v4967 = vadd.f32 %v4954, %v4963
          %v4968 = vld [vmem:[#allocation23] sm:$0xff]
          %v4969 = vld [vmem:[#allocation23 + $0x8] sm:$0xff]
          %v4970 = vld [vmem:[#allocation23 + $0x10] sm:$0xff]
          %v4971 = vld [vmem:[#allocation23 + $0x18] sm:$0xff]
          %v4972 = vld [vmem:[#allocation23 + $0x20] sm:$0xff]
          %v4973 = vld [vmem:[#allocation23 + $0x28] sm:$0xff]
          %v4974 = vld [vmem:[#allocation23 + $0x30] sm:$0xff]
          %v4975 = vld [vmem:[#allocation23 + $0x38] sm:$0xff]
          %v4976 = vld [vmem:[#allocation23 + $0x40] sm:$0xff]
          %v4977 = vld [vmem:[#allocation23 + $0x48] sm:$0xff]
          %v4978 = vld [vmem:[#allocation23 + $0x50] sm:$0xff]
          %v4979 = vld [vmem:[#allocation23 + $0x58] sm:$0xff]
          %v4980 = vld [vmem:[#allocation23 + $0x60] sm:$0xff]
          %v4981 = vld [vmem:[#allocation23 + $0x68] sm:$0xff]
          %v4982 = vld [vmem:[#allocation23 + $0x70] sm:$0xff]
          %v4983 = vld [vmem:[#allocation23 + $0x78] sm:$0xff]
          %v4984 = vld [vmem:[#allocation23 + $0x80] sm:$0xff]
          %v4985 = vld [vmem:[#allocation23 + $0x88] sm:$0xff]
          %v4986 = vld [vmem:[#allocation23 + $0x90] sm:$0xff]
          %v4987 = vld [vmem:[#allocation23 + $0x98] sm:$0xff]
          %v4988 = vld [vmem:[#allocation23 + $0xa0] sm:$0xff]
          %v4989 = vld [vmem:[#allocation23 + $0xa8] sm:$0xff]
          %v4990 = vld [vmem:[#allocation23 + $0xb0] sm:$0xff]
          %v4991 = vld [vmem:[#allocation23 + $0xb8] sm:$0xff]
          %v4992 = vld [vmem:[#allocation23 + $0xc0] sm:$0xff]
          %v4993 = vld [vmem:[#allocation23 + $0xc8] sm:$0xff]
          %v4994 = vld [vmem:[#allocation23 + $0xd0] sm:$0xff]
          %v4995 = vld [vmem:[#allocation23 + $0xd8] sm:$0xff]
          %v4996 = vld [vmem:[#allocation23 + $0xe0] sm:$0xff]
          %v4997 = vld [vmem:[#allocation23 + $0xe8] sm:$0xff]
          %v4998 = vld [vmem:[#allocation23 + $0xf0] sm:$0xff]
          %v4999 = vld [vmem:[#allocation23 + $0xf8] sm:$0xff]
          %v5000 = vld [vmem:[#allocation24] sm:$0x1]
          %v5002 = vlaneseq
          %v5003 = vshrl.u32 %v5002, 7
          %v5004 = vsub.s32 0, %v5003
          %v5005 = vrot.slane %v5000, %v5004
          %5007 = vmatprep.subr.mxu0 0.0
          %5008 = vmatpush1.msra.mxu0 %v4983
          %5009 = vmatprep.subr.mxu0 0.0
          %5010 = vmatpush1.msra.mxu0 %v4982
          %5011 = vmatprep.subr.mxu0 0.0
          %5012 = vmatpush1.msra.mxu0 %v4981
          %5013 = vmatprep.subr.mxu0 0.0
          %5014 = vmatpush1.msra.mxu0 %v4980
          %5015 = vmatprep.subr.mxu0 0.0
          %5016 = vmatpush1.msra.mxu0 %v4979
          %5017 = vmatprep.subr.mxu0 0.0
          %5018 = vmatpush1.msra.mxu0 %v4978
          %5019 = vmatprep.subr.mxu0 0.0
          %5020 = vmatpush1.msra.mxu0 %v4977
          %5021 = vmatprep.subr.mxu0 0.0
          %5022 = vmatpush1.msra.mxu0 %v4976
          %5023 = vmatprep.subr.mxu0 0.0
          %5024 = vmatpush1.msra.mxu0 %v4975
          %5025 = vmatprep.subr.mxu0 0.0
          %5026 = vmatpush1.msra.mxu0 %v4974
          %5027 = vmatprep.subr.mxu0 0.0
          %5028 = vmatpush1.msra.mxu0 %v4973
          %5029 = vmatprep.subr.mxu0 0.0
          %5030 = vmatpush1.msra.mxu0 %v4972
          %5031 = vmatprep.subr.mxu0 0.0
          %5032 = vmatpush1.msra.mxu0 %v4971
          %5033 = vmatprep.subr.mxu0 0.0
          %5034 = vmatpush1.msra.mxu0 %v4970
          %5035 = vmatprep.subr.mxu0 0.0
          %5036 = vmatpush1.msra.mxu0 %v4969
          %5037 = vmatprep.subr.mxu0 0.0
          %5038 = vmatpush1.msra.mxu0 %v4968
          %5039 = vmatprep.subr.mxu0 0.0
          %5040 = vmatpush2.msra.mxu0 %v4999
          %5041 = vmatprep.subr.mxu0 0.0
          %5042 = vmatpush2.msra.mxu0 %v4998
          %5043 = vmatprep.subr.mxu0 0.0
          %5044 = vmatpush2.msra.mxu0 %v4997
          %5045 = vmatprep.subr.mxu0 0.0
          %5046 = vmatpush2.msra.mxu0 %v4996
          %5047 = vmatprep.subr.mxu0 0.0
          %5048 = vmatpush2.msra.mxu0 %v4995
          %5049 = vmatprep.subr.mxu0 0.0
          %5050 = vmatpush2.msra.mxu0 %v4994
          %5051 = vmatprep.subr.mxu0 0.0
          %5052 = vmatpush2.msra.mxu0 %v4993
          %5053 = vmatprep.subr.mxu0 0.0
          %5054 = vmatpush2.msra.mxu0 %v4992
          %5055 = vmatprep.subr.mxu0 0.0
          %5056 = vmatpush2.msra.mxu0 %v4991
          %5057 = vmatprep.subr.mxu0 0.0
          %5058 = vmatpush2.msra.mxu0 %v4990
          %5059 = vmatprep.subr.mxu0 0.0
          %5060 = vmatpush2.msra.mxu0 %v4989
          %5061 = vmatprep.subr.mxu0 0.0
          %5062 = vmatpush2.msra.mxu0 %v4988
          %5063 = vmatprep.subr.mxu0 0.0
          %5064 = vmatpush2.msra.mxu0 %v4987
          %5065 = vmatprep.subr.mxu0 0.0
          %5066 = vmatpush2.msra.mxu0 %v4986
          %5067 = vmatprep.subr.mxu0 0.0
          %5068 = vmatpush2.msra.mxu0 %v4985
          %5069 = vmatprep.subr.mxu0 0.0
          %5070 = vmatpush2.msra.mxu0 %v4984
          %5071 = vmatprep.mubr.f32.mxu0 %v4967
          %5072 = vmatmul.mubr.f32.gmra.mxu0 %v4966
          %v5073 = vpop.f32.mrf.mxu0
          %v5074 = vadd.f32 %v5005, %v5073
          %v5075 = vpop.f32.mrf.mxu0
          %5076 = vdwg.mxu0
          %v5077 = vmax.f32 %v5074, 0.0
          %v5078 = vld [vmem:[%s21] sm:$0xff]
          %v5079 = vld [vmem:[%s21 + $0x8] sm:$0xff]
          %v5080 = vld [vmem:[%s21 + $0x10] sm:$0xff]
          %v5081 = vld [vmem:[%s21 + $0x18] sm:$0xff]
          %v5082 = vld [vmem:[%s21 + $0x20] sm:$0xff]
          %v5083 = vld [vmem:[%s21 + $0x28] sm:$0xff]
          %v5084 = vld [vmem:[%s21 + $0x30] sm:$0xff]
          %v5085 = vld [vmem:[%s21 + $0x38] sm:$0xff]
          %v5086 = vld [vmem:[%s21 + $0x40] sm:$0xff]
          %v5087 = vld [vmem:[%s21 + $0x48] sm:$0xff]
          %v5088 = vld [vmem:[%s21 + $0x50] sm:$0xff]
          %v5089 = vld [vmem:[%s21 + $0x58] sm:$0xff]
          %v5090 = vld [vmem:[%s21 + $0x60] sm:$0xff]
          %v5091 = vld [vmem:[%s21 + $0x68] sm:$0xff]
          %v5092 = vld [vmem:[%s21 + $0x70] sm:$0xff]
          %v5093 = vld [vmem:[%s21 + $0x78] sm:$0xff]
          %v5094 = vld [vmem:[#allocation26] sm:$0x1]
          %v5096 = vlaneseq
          %v5097 = vshrl.u32 %v5096, 7
          %v5098 = vsub.s32 0, %v5097
          %v5099 = vrot.slane %v5094, %v5098
          %5101 = vmatprep.subr.mxu0 0.0
          %5102 = vmatpush1.msra.mxu0 %v5093
          %5103 = vmatprep.subr.mxu0 0.0
          %5104 = vmatpush1.msra.mxu0 %v5092
          %5105 = vmatprep.subr.mxu0 0.0
          %5106 = vmatpush1.msra.mxu0 %v5091
          %5107 = vmatprep.subr.mxu0 0.0
          %5108 = vmatpush1.msra.mxu0 %v5090
          %5109 = vmatprep.subr.mxu0 0.0
          %5110 = vmatpush1.msra.mxu0 %v5089
          %5111 = vmatprep.subr.mxu0 0.0
          %5112 = vmatpush1.msra.mxu0 %v5088
          %5113 = vmatprep.subr.mxu0 0.0
          %5114 = vmatpush1.msra.mxu0 %v5087
          %5115 = vmatprep.subr.mxu0 0.0
          %5116 = vmatpush1.msra.mxu0 %v5086
          %5117 = vmatprep.subr.mxu0 0.0
          %5118 = vmatpush1.msra.mxu0 %v5085
          %5119 = vmatprep.subr.mxu0 0.0
          %5120 = vmatpush1.msra.mxu0 %v5084
          %5121 = vmatprep.subr.mxu0 0.0
          %5122 = vmatpush1.msra.mxu0 %v5083
          %5123 = vmatprep.subr.mxu0 0.0
          %5124 = vmatpush1.msra.mxu0 %v5082
          %5125 = vmatprep.subr.mxu0 0.0
          %5126 = vmatpush1.msra.mxu0 %v5081
          %5127 = vmatprep.subr.mxu0 0.0
          %5128 = vmatpush1.msra.mxu0 %v5080
          %5129 = vmatprep.subr.mxu0 0.0
          %5130 = vmatpush1.msra.mxu0 %v5079
          %5131 = vmatprep.subr.mxu0 0.0
          %5132 = vmatpush1.msra.mxu0 %v5078
          %5133 = vmatprep.subr.mxu0 0.0
          %5134 = vmatpush2.msra.mxu0 0.0
          %5135 = vmatprep.subr.mxu0 0.0
          %5136 = vmatpush2.msra.mxu0 0.0
          %5137 = vmatprep.subr.mxu0 0.0
          %5138 = vmatpush2.msra.mxu0 0.0
          %5139 = vmatprep.subr.mxu0 0.0
          %5140 = vmatpush2.msra.mxu0 0.0
          %5141 = vmatprep.subr.mxu0 0.0
          %5142 = vmatpush2.msra.mxu0 0.0
          %5143 = vmatprep.subr.mxu0 0.0
          %5144 = vmatpush2.msra.mxu0 0.0
          %5145 = vmatprep.subr.mxu0 0.0
          %5146 = vmatpush2.msra.mxu0 0.0
          %5147 = vmatprep.subr.mxu0 0.0
          %5148 = vmatpush2.msra.mxu0 0.0
          %5149 = vmatprep.subr.mxu0 0.0
          %5150 = vmatpush2.msra.mxu0 0.0
          %5151 = vmatprep.subr.mxu0 0.0
          %5152 = vmatpush2.msra.mxu0 0.0
          %5153 = vmatprep.subr.mxu0 0.0
          %5154 = vmatpush2.msra.mxu0 0.0
          %5155 = vmatprep.subr.mxu0 0.0
          %5156 = vmatpush2.msra.mxu0 0.0
          %5157 = vmatprep.subr.mxu0 0.0
          %5158 = vmatpush2.msra.mxu0 0.0
          %5159 = vmatprep.subr.mxu0 0.0
          %5160 = vmatpush2.msra.mxu0 0.0
          %5161 = vmatprep.subr.mxu0 0.0
          %5162 = vmatpush2.msra.mxu0 0.0
          %5163 = vmatprep.subr.mxu0 0.0
          %5164 = vmatpush2.msra.mxu0 0.0
          %5165 = vmatprep.mubr.f32.mxu0 0.0
          %5166 = vmatmul.mubr.f32.gmra.mxu0 %v5077
          %v5167 = vpop.f32.mrf.mxu0
          %v5168 = vadd.f32 %v5099, %v5167
          %v5169 = vpop.f32.mrf.mxu0
          %5170 = vdwg.mxu0
          %vm5171 = vcmask 238592
          %5172 = vst.msk [vmem:[#allocation27] sm:$0x3] %vm5171, %v5168
        $region196: #{soh_transformer_forward.1} parent=111 // pred_fallthru
          _
        // Predicated region
        $region197: #{soh_transformer_forward.1} parent=111 // pred_check
          %p5173 = pneg %p595
        $region198: #{soh_transformer_forward.1} parent=111 // pred_check_branch
          %5175 = sbr.rel (%p5173) target = $region200
        $region199: #{soh_transformer_forward.1} parent=111 // pred_region
          %s5177 = ssub.s32 32, 32
          %5178 = vsyncadd [#allocation5], %s5177
          %s5180 = sshll.u32 [#allocation27], 4
          %s5181 = int_to_ptr.vmem [resolvable:$true] %s5180
          %5183 = dma.vmem_to_hbm [thread:$0]  %s5181, 32, %s23, [#allocation5]
        $region200: #{soh_transformer_forward.1} parent=111 // pred_fallthru
          _
        // Predicated region
        $region201: #{soh_transformer_forward.1} parent=111 // pred_check
          %p5184 = pneg %p595
        $region202: #{soh_transformer_forward.1} parent=111 // pred_check_branch
          %5186 = sbr.rel (%p5184) target = $region204
        $region203: #{soh_transformer_forward.1} parent=111 // pred_region
          %5187 = dma.done [#allocation5], 32
        $region204: #{soh_transformer_forward.1} parent=111 // pred_fallthru
          _
      $region112: #{soh_transformer_forward.1} parent=5 // pred_fallthru
        _
      %p5188 = scmp.le.s32.totalorder 2, %s34
      // Predicated region
      $region205: #{soh_transformer_forward.1} parent=5 // pred_check
        %p5189 = pneg %p5188
      $region206: #{soh_transformer_forward.1} parent=5 // pred_check_branch
        %5191 = sbr.rel (%p5189) target = $region208
      $region207: #{soh_transformer_forward.1} parent=5 // pred_region
        %s5192 = ssub.s32 %s34, 2
      $region208: #{soh_transformer_forward.1} parent=5 // pred_fallthru
        _
    $region6: #{soh_transformer_forward.1} parent=1 // loop_footer
      %s38 = sadd.s32 1, %s34
    $region7: #{soh_transformer_forward.1} parent=1 // loop_footer_branch
      %33 = sbr.rel target = $region3
    $region8: #{soh_transformer_forward.1} parent=1 // loop_exit
      _
    %5193 = vsyncpa [#allocation4], 1
    %s5194 = scalar_lea.sflag [#allocation4], 1
    %5195 = vsyncpa %s5194, 1
    %5196 = vsyncpa [#allocation7], 1
    %5197 = vsyncpa [#allocation22], 1
    %5198 = vsyncpa [#allocation25], 1
    %5199 = vsyncpa [#allocation5], 1
    %s5200 = scalar_lea.sflag [#allocation5], 1
    %5201 = vsyncpa %s5200, 1

</llo_original>
